<compile_context>
chip_gen: v6e
topology: v6e:2x2x1
jax: 0.10.0
libtpu: 0.0.40
codegen_flags: <defaults>
</compile_context>

<pallas_src>
import math
import functools

import jax
import jax.numpy as jnp
from jax import lax
from jax.experimental import pallas as pl
from jax.experimental.pallas import tpu as pltpu


# ----------------------------------------------------------------------------
# In-kernel helper (pure value math, traced inside the fused kernel)
# ----------------------------------------------------------------------------

def _deconv_k3_s2(x, we, wo, bias):
    """stride-2, kernel-3 ConvTranspose along H in even/odd form.

      x    : (B, H, Cin)  f32, already ReLU'd
      we   : (2*Cin, Cout) bf16  == concat([w_tap0, w_tap2], axis=0)
      wo   : (Cin, Cout)   bf16  == w_tap1
      bias : (1, Cout)     f32
      out  : (B, 2H+1, Cout) f32

    out[2m]   = x[m] @ w0 + x[m-1] @ w2   (zero where out of range)
    out[2m+1] = x[m] @ w1
    """
    b, h, cin = x.shape
    cout = wo.shape[1]
    xb = x.astype(jnp.bfloat16)

    # even rows: im2col of the two even taps -> one matmul
    zrow = jnp.zeros((b, 1, cin), jnp.bfloat16)
    xe = jnp.concatenate([zrow, xb, zrow], axis=1)                    # (B, H+2, Cin)
    cols = jnp.concatenate([xe[:, 1:h + 2, :], xe[:, 0:h + 1, :]], axis=-1)
    out_e = lax.dot_general(cols.reshape(b * (h + 1), 2 * cin), we,
                            (((1,), (0,)), ((), ())),
                            preferred_element_type=jnp.float32)
    out_e = out_e.reshape(b, h + 1, cout)

    # odd rows: single matmul with the middle tap
    out_o = lax.dot_general(xb.reshape(b * h, cin), wo,
                            (((1,), (0,)), ((), ())),
                            preferred_element_type=jnp.float32)
    out_o = out_o.reshape(b, h, cout)
    out_o = jnp.concatenate([out_o, jnp.zeros((b, 1, cout), jnp.float32)], axis=1)

    # interleave even/odd rows -> (B, 2H+1, Cout)
    y = jnp.stack([out_e, out_o], axis=2).reshape(b, 2 * (h + 1), cout)
    y = y[:, :2 * h + 1, :]
    return y + bias[None]                                             # (1,1,Cout) bcast


# ----------------------------------------------------------------------------
# Fused forward kernel
# ----------------------------------------------------------------------------

def _fused_decoder_kernel(*refs, num_mid, tau, filter_shape, sentence_len, eps):
    """relu -> deconv0 (single matmul, H_in==1)
       -> [relu -> even/odd stride-2 deconv] * num_mid        (no ReLU after last)
       -> cosine logits vs pre-normalized embedding
       -> summed NLL (via lse - target logit) / argmax-correct / valid-count.
    Scalar results land in SMEM."""
    n_in = 3 + 3 * num_mid + 2
    in_refs = refs[:n_in]
    loss_ref, correct_ref, total_ref = refs[n_in:]

    h_ref, w0_ref, b0_ref = in_refs[:3]
    layer_refs = in_refs[3:3 + 3 * num_mid]
    wn_ref, tgt_ref = in_refs[3 + 3 * num_mid:]

    b = h_ref.shape[0]

    # ---- layer 0: ReLU(input) then ConvTranspose with H_in == 1 -> one matmul
    cout0 = b0_ref.shape[1]
    k0 = w0_ref.shape[1] // cout0
    x0 = jnp.maximum(h_ref[...], 0.0).astype(jnp.bfloat16)           # (B, Cin0)
    y = lax.dot_general(x0, w0_ref[...], (((1,), (0,)), ((), ())),
                        preferred_element_type=jnp.float32)          # (B, k0*Cout0)
    y = y.reshape(b, k0, cout0) + b0_ref[...][None]                  # (B, k0, Cout0)

    # ---- remaining deconv layers (ReLU precedes each deconv, as in PyTorch) ----
    for l in range(num_mid):
        we_ref, wo_ref, bias_ref = layer_refs[3 * l:3 * l + 3]
        y = _deconv_k3_s2(jnp.maximum(y, 0.0), we_ref[...], wo_ref[...],
                          bias_ref[...])
    # y == x_hat: (B, sentence_len + 2*(filter_shape-1), embed_dim); no final ReLU.

    # ---- pred_emb head, only on the sentence window (boundary rows dropped) ----
    s = filter_shape - 1
    xh = y[:, s:s + sentence_len, :]                                  # (B, L, E)
    e = xh.shape[-1]
    v = wn_ref.shape[1]
    inv_n = lax.rsqrt(jnp.sum(xh * xh, axis=-1, keepdims=True) + eps)
    xn = (xh * inv_n).astype(jnp.bfloat16)
    logits = lax.dot_general(xn.reshape(b * sentence_len, e), wn_ref[...],
                             (((1,), (0,)), ((), ())),
                             preferred_element_type=jnp.float32)
    logits = (logits * (1.0 / tau)).reshape(b, sentence_len, v)

    # row-wise log-sum-exp (row max reused below for the argmax)
    m = jnp.max(logits, axis=-1, keepdims=True)                       # (B, L, 1)
    lse = m + jnp.log(jnp.sum(jnp.exp(logits - m), axis=-1, keepdims=True))

    tgt = tgt_ref[...]                                                # (B, L) int32
    iota_v = lax.broadcasted_iota(jnp.int32, (b, sentence_len, v), 2)
    onehot = iota_v == tgt[:, :, None]

    # summed NLL over all (b, l):  sum(lse) - sum(logit at target)
    tgt_logit_sum = jnp.sum(jnp.where(onehot, logits, 0.0))
    loss_ref[0] = jnp.sum(lse) - tgt_logit_sum

    # argmax (lowest index among ties) accuracy — log_softmax is monotone,
    # so argmax(logits) == argmax(log_prob)
    pred = jnp.min(jnp.where(logits == m, iota_v, v), axis=-1)
    correct_ref[0] = jnp.sum((pred == tgt).astype(jnp.int32))

    # total = (ids != -1).float().sum()
    total_ref[0] = jnp.sum((tgt != -1).astype(jnp.float32))


# ----------------------------------------------------------------------------
# Parameter construction / one-time packing
# ----------------------------------------------------------------------------

def compute_last_filter_shape(cfg):
    t = cfg['sentence_len'] + 2 * (cfg['filter_shape'] - 1)
    for _ in range(cfg['num_layer'] - 1):
        t = int(math.floor((t - cfg['filter_shape']) / 2) + 1)
    return t - cfg['num_feature'] * 2 + 2


def init_params(key, cfg):
    """Raw parameters mirroring the PyTorch module (weights as (k, Cin, Cout))."""
    last_k = compute_last_filter_shape(cfg)
    fs, f, nl = cfg['filter_shape'], cfg['filter_size'], cfg['num_layer']
    shapes = [(cfg['latent_size'], f * 2 ** (nl - 2), last_k)]
    shapes += [(f * 2 ** l, f * 2 ** (l - 1), fs) for l in range(nl - 2, 0, -1)]
    shapes += [(f, cfg['embed_dim'], fs)]                              # pred_emb head

    keys = jax.random.split(key, 2 * len(shapes) + 1)
    deconv = []
    for i, (cin, cout, kh) in enumerate(shapes):
        n = kh * 1 * cin
        w = jax.random.normal(keys[2 * i], (kh, cin, cout),
                              jnp.float32) * math.sqrt(2.0 / n)
        bound = 1.0 / math.sqrt(n)
        bias = jax.random.uniform(keys[2 * i + 1], (1, cout), jnp.float32,
                                  -bound, bound)
        deconv.append((w, bias))
    embed = jax.random.normal(keys[-1], (cfg['vocab_size'], cfg['embed_dim']),
                              jnp.float32)
    return {'deconv': deconv, 'embed': embed}


def pack_decoder_params(params, cfg):
    """One-time layout prep (hoisted out of the per-call path):
       flatten layer-0 weight, split k=3 layers into even/odd tap matrices,
       L2-normalize + transpose the embedding, cast matmul operands to bf16."""
    assert cfg['num_feature'] == 1, "layer-0 single-matmul path assumes H_in == 1"
    assert cfg['filter_shape'] == 3, "even/odd deconv path assumes filter_shape == 3"
    deconv = params['deconv']

    w0, b0 = deconv[0]
    k0, cin0, cout0 = w0.shape
    w0_flat = jnp.transpose(w0, (1, 0, 2)).reshape(cin0, k0 * cout0)

    layers = []
    for w, bias in deconv[1:]:
        we = jnp.concatenate([w[0], w[2]], axis=0)     # taps 0 & 2 -> even rows
        wo = w[1]                                      # tap 1      -> odd rows
        layers.append((we.astype(jnp.bfloat16), wo.astype(jnp.bfloat16),
                       bias.astype(jnp.float32)))

    emb = params['embed'].astype(jnp.float32)          # (V, E)
    wn = emb * lax.rsqrt(jnp.sum(emb * emb, axis=-1, keepdims=True) + 1e-12)
    return {
        'w0': w0_flat.astype(jnp.bfloat16),            # (Cin0, k0*Cout0)
        'b0': b0.astype(jnp.float32),                  # (1, Cout0)
        'layers': layers,
        'wn_t': jnp.transpose(wn).astype(jnp.bfloat16),  # (E, V), lane-dense V
    }


# ----------------------------------------------------------------------------
# Forward wrapper
# ----------------------------------------------------------------------------

def decoder_forward(packed, hidden_state, input_ids_dec, cfg):
    """Mirrors DeconvolutionDecoder.forward (eval mode: dropout = identity).

    hidden_state : (B, latent_size, num_feature=1)
    input_ids_dec: (B, >= sentence_len) int token ids
    returns (average_loss, correct, total, hidden_state)
    """
    b = hidden_state.shape[0]
    # NCH with H == 1 -> lane-dense (B, C); deconv stack runs channels-last.
    h2d = hidden_state[:, :, 0].astype(jnp.float32)
    # self.padding(ids[:, :sentence_len], 1) is a no-op for full-length inputs.
    tgt = input_ids_dec[:, :cfg['sentence_len']].astype(jnp.int32)

    inputs = [h2d, packed['w0'], packed['b0']]
    for we, wo, bias in packed['layers']:
        inputs += [we, wo, bias]
    inputs += [packed['wn_t'], tgt]

    kernel = functools.partial(
        _fused_decoder_kernel, num_mid=len(packed['layers']), tau=cfg['tau'],
        filter_shape=cfg['filter_shape'], sentence_len=cfg['sentence_len'],
        eps=1e-12)

    vmem = pl.BlockSpec(memory_space=pltpu.MemorySpace.VMEM)
    smem = pl.BlockSpec(memory_space=pltpu.MemorySpace.SMEM)
    # Whole problem is < 100 KiB -> a single grid-less call with everything
    # VMEM-resident is optimal on v5e/v6e/v7x.  For large batches, add a batch
    # grid with dimension_semantics=("parallel",) and keep the per-block
    # footprint under ~32 MiB (v7x scoped-VMEM default).
    loss_sum, correct, total = pl.pallas_call(
        kernel,
        out_shape=(jax.ShapeDtypeStruct((1,), jnp.float32),
                   jax.ShapeDtypeStruct((1,), jnp.int32),
                   jax.ShapeDtypeStruct((1,), jnp.float32)),
        in_specs=[vmem] * len(inputs),
        out_specs=(smem, smem, smem),
    )(*inputs)

    average_loss = loss_sum[0] / b / cfg['sentence_len']
    return average_loss, correct[0], total[0], hidden_state


# ----------------------------------------------------------------------------
# Pure-JAX reference (direct transposed-conv definition), for correctness check
# ----------------------------------------------------------------------------

def _ref_forward(params, hidden_state, input_ids_dec, cfg):
    h = jnp.transpose(hidden_state, (0, 2, 1)).astype(jnp.float32)     # (B, H, C)
    for w_kio, bias in params['deconv']:
        x = jnp.maximum(h, 0.0)
        b, hin, cin = x.shape
        k, _, cout = w_kio.shape
        hout = 2 * (hin - 1) + k
        y = jnp.zeros((b, hout, cout), jnp.float32)
        for i in range(hin):
            for j in range(k):
                y = y.at[:, 2 * i + j, :].add(x[:, i, :] @ w_kio[j])
        h = y + bias[None]
    x_hat = h
    emb = params['embed']
    xn = x_hat / jnp.sqrt(jnp.sum(x_hat * x_hat, axis=-1, keepdims=True))
    wn = emb / jnp.sqrt(jnp.sum(emb * emb, axis=-1, keepdims=True))
    logits = jnp.einsum('ble,ve->blv', xn, wn) / cfg['tau']
    logp = jax.nn.log_softmax(logits, axis=-1)
    s = cfg['filter_shape'] - 1
    logp = logp[:, s:s + cfg['sentence_len'], :]
    tgt = input_ids_dec[:, :cfg['sentence_len']].astype(jnp.int32)
    nll = -jnp.take_along_axis(logp, tgt[:, :, None], axis=-1).sum()
    avg = nll / x_hat.shape[0] / cfg['sentence_len']
    correct = (jnp.argmax(logp, axis=-1) == tgt).sum()
    total = (tgt != -1).sum().astype(jnp.float32)
    return avg, correct, total


# ----------------------------------------------------------------------------
if __name__ == "__main__":
    cfg = dict(sentence_len=15, filter_shape=3, num_layer=3, filter_size=8,
               latent_size=32, embed_dim=64, num_feature=1, tau=0.5,
               vocab_size=256, dropout=0.0)

    root = jax.random.PRNGKey(0)
    k_p, k_h, k_ids = jax.random.split(root, 3)

    params = init_params(k_p, cfg)
    packed = pack_decoder_params(params, cfg)

    hidden_state = jax.random.normal(
        k_h, (2, cfg['latent_size'], cfg['num_feature']), jnp.float32)
    input_ids_dec = jax.random.randint(
        k_ids, (2, cfg['sentence_len']), 0, cfg['vocab_size'], jnp.int32)

    avg_loss, correct, total, h_out = decoder_forward(
        packed, hidden_state, input_ids_dec, cfg)
    jax.block_until_ready((avg_loss, correct, total, h_out))

    # sanity + numeric check against a pure-JAX reference (loose tol: bf16 MXU inputs)
    avg_ref, cor_ref, tot_ref = _ref_forward(params, hidden_state, input_ids_dec, cfg)
    assert h_out.shape == hidden_state.shape
    assert bool(jnp.isfinite(avg_loss))
    assert float(total) == 2 * cfg['sentence_len'] == float(tot_ref)
    assert abs(float(avg_loss) - float(avg_ref)) <= 0.05 * max(1.0, abs(float(avg_ref))), \
        (float(avg_loss), float(avg_ref))
    assert 0 <= int(correct) <= 2 * cfg['sentence_len']

    # TODO(synk): BertTokenizer / generate_from text decoding has no Pallas
    # equivalent (host-side string ops); vocab is synthetic here.
    print("KERNEL_OK")
</pallas_src>

<mosaic_0001>
module attributes {stable_mosaic.version = 11 : i64} {
  func.func @_fused_decoder_kernel(%arg0: memref<2x32xf32, #tpu.memory_space<vmem>>, %arg1: memref<32x64xbf16, #tpu.memory_space<vmem>>, %arg2: memref<1x16xf32, #tpu.memory_space<vmem>>, %arg3: memref<32x8xbf16, #tpu.memory_space<vmem>>, %arg4: memref<16x8xbf16, #tpu.memory_space<vmem>>, %arg5: memref<1x8xf32, #tpu.memory_space<vmem>>, %arg6: memref<16x64xbf16, #tpu.memory_space<vmem>>, %arg7: memref<8x64xbf16, #tpu.memory_space<vmem>>, %arg8: memref<1x64xf32, #tpu.memory_space<vmem>>, %arg9: memref<64x256xbf16, #tpu.memory_space<vmem>>, %arg10: memref<2x15xi32, #tpu.memory_space<vmem>>, %arg11: memref<1xf32, #tpu.memory_space<smem>>, %arg12: memref<1xi32, #tpu.memory_space<smem>>, %arg13: memref<1xf32, #tpu.memory_space<smem>>) attributes {dimension_semantics = [], scalar_prefetch = 0 : i64, scratch_operands = 0 : i64, tpu.core_type = #tpu.core_type<tc>} {
    %c0 = arith.constant 0 : index
    %c0_0 = arith.constant 0 : index
    %0 = vector.load %arg0[%c0, %c0_0] : memref<2x32xf32, #tpu.memory_space<vmem>>, vector<2x32xf32>
    %cst = arith.constant 0.000000e+00 : f32
    %1 = vector.broadcast %cst : f32 to vector<2x32xf32>
    %2 = arith.maximumf %0, %1 : vector<2x32xf32>
    %3 = arith.truncf %2 : vector<2x32xf32> to vector<2x32xbf16>
    %c0_1 = arith.constant 0 : index
    %c0_2 = arith.constant 0 : index
    %4 = vector.load %arg1[%c0_1, %c0_2] : memref<32x64xbf16, #tpu.memory_space<vmem>>, vector<32x64xbf16>
    %cst_3 = arith.constant dense<0.000000e+00> : vector<2x64xf32>
    %5 = tpu.matmul %3, %4, %cst_3 {dimension_numbers = #tpu.dot_dimension_numbers<[1], [0], [0], [1], [0, 0, 1, 1], [], []>} : vector<2x32xbf16>, vector<32x64xbf16>, vector<2x64xf32> -> vector<2x64xf32>
    %6 = vector.shape_cast %5 : vector<2x64xf32> to vector<2x4x16xf32>
    %c0_4 = arith.constant 0 : index
    %c0_5 = arith.constant 0 : index
    %7 = vector.load %arg2[%c0_4, %c0_5] : memref<1x16xf32, #tpu.memory_space<vmem>>, vector<1x16xf32>
    %8 = vector.shape_cast %7 : vector<1x16xf32> to vector<1x1x16xf32>
    %9 = vector.broadcast %8 : vector<1x1x16xf32> to vector<2x4x16xf32>
    %10 = arith.addf %6, %9 : vector<2x4x16xf32>
    %cst_6 = arith.constant 0.000000e+00 : f32
    %11 = vector.broadcast %cst_6 : f32 to vector<2x4x16xf32>
    %12 = arith.maximumf %10, %11 : vector<2x4x16xf32>
    %c0_7 = arith.constant 0 : index
    %c0_8 = arith.constant 0 : index
    %13 = vector.load %arg3[%c0_7, %c0_8] : memref<32x8xbf16, #tpu.memory_space<vmem>>, vector<32x8xbf16>
    %c0_9 = arith.constant 0 : index
    %c0_10 = arith.constant 0 : index
    %14 = vector.load %arg4[%c0_9, %c0_10] : memref<16x8xbf16, #tpu.memory_space<vmem>>, vector<16x8xbf16>
    %c0_11 = arith.constant 0 : index
    %c0_12 = arith.constant 0 : index
    %15 = vector.load %arg5[%c0_11, %c0_12] : memref<1x8xf32, #tpu.memory_space<vmem>>, vector<1x8xf32>
    %16 = arith.truncf %12 : vector<2x4x16xf32> to vector<2x4x16xbf16>
    %cst_13 = arith.constant 0.000000e+00 : bf16
    %17 = vector.broadcast %cst_13 : bf16 to vector<2x1x16xbf16>
    %18 = tpu.concatenate %17, %16, %17 in 1 : vector<2x1x16xbf16>, vector<2x4x16xbf16>, vector<2x1x16xbf16> -> vector<2x6x16xbf16>
    %19 = vector.extract_strided_slice %18 {offsets = [0, 1, 0], sizes = [2, 5, 16], strides = [1, 1, 1]} : vector<2x6x16xbf16> to vector<2x5x16xbf16>
    %20 = vector.extract_strided_slice %18 {offsets = [0, 0, 0], sizes = [2, 5, 16], strides = [1, 1, 1]} : vector<2x6x16xbf16> to vector<2x5x16xbf16>
    %21 = tpu.concatenate %19, %20 in 2 : vector<2x5x16xbf16>, vector<2x5x16xbf16> -> vector<2x5x32xbf16>
    %22 = vector.shape_cast %21 : vector<2x5x32xbf16> to vector<10x32xbf16>
    %cst_14 = arith.constant dense<0.000000e+00> : vector<10x8xf32>
    %23 = tpu.matmul %22, %13, %cst_14 {dimension_numbers = #tpu.dot_dimension_numbers<[1], [0], [0], [1], [0, 0, 1, 1], [], []>} : vector<10x32xbf16>, vector<32x8xbf16>, vector<10x8xf32> -> vector<10x8xf32>
    %24 = vector.shape_cast %23 : vector<10x8xf32> to vector<2x5x8xf32>
    %25 = vector.shape_cast %16 : vector<2x4x16xbf16> to vector<8x16xbf16>
    %cst_15 = arith.constant dense<0.000000e+00> : vector<8x8xf32>
    %26 = tpu.matmul %25, %14, %cst_15 {dimension_numbers = #tpu.dot_dimension_numbers<[1], [0], [0], [1], [0, 0, 1, 1], [], []>} : vector<8x16xbf16>, vector<16x8xbf16>, vector<8x8xf32> -> vector<8x8xf32>
    %27 = vector.shape_cast %26 : vector<8x8xf32> to vector<2x4x8xf32>
    %cst_16 = arith.constant 0.000000e+00 : f32
    %28 = vector.broadcast %cst_16 : f32 to vector<2x1x8xf32>
    %29 = tpu.concatenate %27, %28 in 1 : vector<2x4x8xf32>, vector<2x1x8xf32> -> vector<2x5x8xf32>
    %30 = vector.shape_cast %24 : vector<2x5x8xf32> to vector<2x5x1x8xf32>
    %31 = vector.shape_cast %29 : vector<2x5x8xf32> to vector<2x5x1x8xf32>
    %32 = tpu.concatenate %30, %31 in 2 : vector<2x5x1x8xf32>, vector<2x5x1x8xf32> -> vector<2x5x2x8xf32>
    %33 = vector.shape_cast %32 : vector<2x5x2x8xf32> to vector<2x10x8xf32>
    %34 = vector.extract_strided_slice %33 {offsets = [0, 0, 0], sizes = [2, 9, 8], strides = [1, 1, 1]} : vector<2x10x8xf32> to vector<2x9x8xf32>
    %35 = vector.shape_cast %15 : vector<1x8xf32> to vector<1x1x8xf32>
    %36 = vector.broadcast %35 : vector<1x1x8xf32> to vector<2x9x8xf32>
    %37 = arith.addf %34, %36 : vector<2x9x8xf32>
    %cst_17 = arith.constant 0.000000e+00 : f32
    %38 = vector.broadcast %cst_17 : f32 to vector<2x9x8xf32>
    %39 = arith.maximumf %37, %38 : vector<2x9x8xf32>
    %c0_18 = arith.constant 0 : index
    %c0_19 = arith.constant 0 : index
    %40 = vector.load %arg6[%c0_18, %c0_19] : memref<16x64xbf16, #tpu.memory_space<vmem>>, vector<16x64xbf16>
    %c0_20 = arith.constant 0 : index
    %c0_21 = arith.constant 0 : index
    %41 = vector.load %arg7[%c0_20, %c0_21] : memref<8x64xbf16, #tpu.memory_space<vmem>>, vector<8x64xbf16>
    %c0_22 = arith.constant 0 : index
    %c0_23 = arith.constant 0 : index
    %42 = vector.load %arg8[%c0_22, %c0_23] : memref<1x64xf32, #tpu.memory_space<vmem>>, vector<1x64xf32>
    %43 = arith.truncf %39 : vector<2x9x8xf32> to vector<2x9x8xbf16>
    %cst_24 = arith.constant 0.000000e+00 : bf16
    %44 = vector.broadcast %cst_24 : bf16 to vector<2x1x8xbf16>
    %45 = tpu.concatenate %44, %43, %44 in 1 : vector<2x1x8xbf16>, vector<2x9x8xbf16>, vector<2x1x8xbf16> -> vector<2x11x8xbf16>
    %46 = vector.extract_strided_slice %45 {offsets = [0, 1, 0], sizes = [2, 10, 8], strides = [1, 1, 1]} : vector<2x11x8xbf16> to vector<2x10x8xbf16>
    %47 = vector.extract_strided_slice %45 {offsets = [0, 0, 0], sizes = [2, 10, 8], strides = [1, 1, 1]} : vector<2x11x8xbf16> to vector<2x10x8xbf16>
    %48 = tpu.concatenate %46, %47 in 2 : vector<2x10x8xbf16>, vector<2x10x8xbf16> -> vector<2x10x16xbf16>
    %49 = vector.shape_cast %48 : vector<2x10x16xbf16> to vector<20x16xbf16>
    %cst_25 = arith.constant dense<0.000000e+00> : vector<20x64xf32>
    %50 = tpu.matmul %49, %40, %cst_25 {dimension_numbers = #tpu.dot_dimension_numbers<[1], [0], [0], [1], [0, 0, 1, 1], [], []>} : vector<20x16xbf16>, vector<16x64xbf16>, vector<20x64xf32> -> vector<20x64xf32>
    %51 = vector.shape_cast %50 : vector<20x64xf32> to vector<2x10x64xf32>
    %52 = vector.shape_cast %43 : vector<2x9x8xbf16> to vector<18x8xbf16>
    %cst_26 = arith.constant dense<0.000000e+00> : vector<18x64xf32>
    %53 = tpu.matmul %52, %41, %cst_26 {dimension_numbers = #tpu.dot_dimension_numbers<[1], [0], [0], [1], [0, 0, 1, 1], [], []>} : vector<18x8xbf16>, vector<8x64xbf16>, vector<18x64xf32> -> vector<18x64xf32>
    %54 = vector.shape_cast %53 : vector<18x64xf32> to vector<2x9x64xf32>
    %cst_27 = arith.constant 0.000000e+00 : f32
    %55 = vector.broadcast %cst_27 : f32 to vector<2x1x64xf32>
    %56 = tpu.concatenate %54, %55 in 1 : vector<2x9x64xf32>, vector<2x1x64xf32> -> vector<2x10x64xf32>
    %57 = vector.shape_cast %51 : vector<2x10x64xf32> to vector<2x10x1x64xf32>
    %58 = vector.shape_cast %56 : vector<2x10x64xf32> to vector<2x10x1x64xf32>
    %59 = tpu.concatenate %57, %58 in 2 : vector<2x10x1x64xf32>, vector<2x10x1x64xf32> -> vector<2x10x2x64xf32>
    %60 = vector.shape_cast %59 : vector<2x10x2x64xf32> to vector<2x20x64xf32>
    %61 = vector.extract_strided_slice %60 {offsets = [0, 0, 0], sizes = [2, 19, 64], strides = [1, 1, 1]} : vector<2x20x64xf32> to vector<2x19x64xf32>
    %62 = vector.shape_cast %42 : vector<1x64xf32> to vector<1x1x64xf32>
    %63 = vector.broadcast %62 : vector<1x1x64xf32> to vector<2x19x64xf32>
    %64 = arith.addf %61, %63 : vector<2x19x64xf32>
    %65 = vector.extract_strided_slice %64 {offsets = [0, 2, 0], sizes = [2, 15, 64], strides = [1, 1, 1]} : vector<2x19x64xf32> to vector<2x15x64xf32>
    %66 = arith.mulf %65, %65 : vector<2x15x64xf32>
    %cst_28 = arith.constant dense<0.000000e+00> : vector<2x15xf32>
    %67 = vector.multi_reduction <add>, %66, %cst_28 [2] : vector<2x15x64xf32> to vector<2x15xf32>
    %68 = vector.shape_cast %67 : vector<2x15xf32> to vector<2x15x1xf32>
    %cst_29 = arith.constant 9.99999996E-13 : f32
    %69 = vector.broadcast %cst_29 : f32 to vector<2x15x1xf32>
    %70 = arith.addf %68, %69 : vector<2x15x1xf32>
    %71 = math.rsqrt %70 : vector<2x15x1xf32>
    %72 = vector.broadcast %71 : vector<2x15x1xf32> to vector<2x15x64xf32>
    %73 = arith.mulf %65, %72 : vector<2x15x64xf32>
    %74 = arith.truncf %73 : vector<2x15x64xf32> to vector<2x15x64xbf16>
    %75 = vector.shape_cast %74 : vector<2x15x64xbf16> to vector<30x64xbf16>
    %c0_30 = arith.constant 0 : index
    %c0_31 = arith.constant 0 : index
    %76 = vector.load %arg9[%c0_30, %c0_31] : memref<64x256xbf16, #tpu.memory_space<vmem>>, vector<64x256xbf16>
    %cst_32 = arith.constant dense<0.000000e+00> : vector<30x256xf32>
    %77 = tpu.matmul %75, %76, %cst_32 {dimension_numbers = #tpu.dot_dimension_numbers<[1], [0], [0], [1], [0, 0, 1, 1], [], []>} : vector<30x64xbf16>, vector<64x256xbf16>, vector<30x256xf32> -> vector<30x256xf32>
    %cst_33 = arith.constant 2.000000e+00 : f32
    %78 = vector.broadcast %cst_33 : f32 to vector<30x256xf32>
    %79 = arith.mulf %77, %78 : vector<30x256xf32>
    %80 = vector.shape_cast %79 : vector<30x256xf32> to vector<2x15x256xf32>
    %cst_34 = arith.constant dense<0xFF800000> : vector<2x15xf32>
    %81 = vector.multi_reduction <maximumf>, %80, %cst_34 [2] : vector<2x15x256xf32> to vector<2x15xf32>
    %82 = vector.shape_cast %81 : vector<2x15xf32> to vector<2x15x1xf32>
    %83 = vector.broadcast %82 : vector<2x15x1xf32> to vector<2x15x256xf32>
    %84 = arith.subf %80, %83 : vector<2x15x256xf32>
    %85 = math.exp %84 : vector<2x15x256xf32>
    %cst_35 = arith.constant dense<0.000000e+00> : vector<2x15xf32>
    %86 = vector.multi_reduction <add>, %85, %cst_35 [2] : vector<2x15x256xf32> to vector<2x15xf32>
    %87 = vector.shape_cast %86 : vector<2x15xf32> to vector<2x15x1xf32>
    %88 = math.log %87 : vector<2x15x1xf32>
    %89 = arith.addf %82, %88 : vector<2x15x1xf32>
    %c0_36 = arith.constant 0 : index
    %c0_37 = arith.constant 0 : index
    %90 = vector.load %arg10[%c0_36, %c0_37] : memref<2x15xi32, #tpu.memory_space<vmem>>, vector<2x15xi32>
    %91 = tpu.iota {dimensions = array<i32: 2>} : vector<2x15x256xi32>
    %92 = vector.shape_cast %90 : vector<2x15xi32> to vector<2x15x1xi32>
    %93 = vector.broadcast %92 : vector<2x15x1xi32> to vector<2x15x256xi32>
    %94 = arith.cmpi eq, %91, %93 : vector<2x15x256xi32>
    %cst_38 = arith.constant 0.000000e+00 : f32
    %95 = vector.broadcast %cst_38 : f32 to vector<2x15x256xf32>
    %96 = arith.select %94, %80, %95 : vector<2x15x256xi1>, vector<2x15x256xf32>
    %97 = vector.shape_cast %96 : vector<2x15x256xf32> to vector<1x2x15x256xf32>
    %cst_39 = arith.constant dense<0.000000e+00> : vector<1xf32>
    %98 = vector.multi_reduction <add>, %97, %cst_39 [1, 2, 3] : vector<1x2x15x256xf32> to vector<1xf32>
    %99 = vector.shape_cast %98 : vector<1xf32> to vector<1x1x1x1xf32>
    %100 = vector.extract %99[0, 0, 0, 0] : f32 from vector<1x1x1x1xf32>
    %101 = vector.shape_cast %89 : vector<2x15x1xf32> to vector<1x2x15x1xf32>
    %cst_40 = arith.constant dense<0.000000e+00> : vector<1xf32>
    %102 = vector.multi_reduction <add>, %101, %cst_40 [1, 2, 3] : vector<1x2x15x1xf32> to vector<1xf32>
    %103 = vector.shape_cast %102 : vector<1xf32> to vector<1x1x1x1xf32>
    %104 = vector.extract %103[0, 0, 0, 0] : f32 from vector<1x1x1x1xf32>
    %105 = arith.subf %104, %100 : f32
    %c0_41 = arith.constant 0 : index
    %106 = memref.load %arg11[%c0_41] : memref<1xf32, #tpu.memory_space<smem>>
    memref.store %105, %arg11[%c0_41] : memref<1xf32, #tpu.memory_space<smem>>
    %107 = vector.broadcast %82 : vector<2x15x1xf32> to vector<2x15x256xf32>
    %108 = arith.cmpf oeq, %80, %107 : vector<2x15x256xf32>
    %c256_i32 = arith.constant 256 : i32
    %109 = vector.broadcast %c256_i32 : i32 to vector<2x15x256xi32>
    %110 = arith.select %108, %91, %109 : vector<2x15x256xi1>, vector<2x15x256xi32>
    %cst_42 = arith.constant dense<2147483647> : vector<2x15xi32>
    %111 = vector.multi_reduction <minsi>, %110, %cst_42 [2] : vector<2x15x256xi32> to vector<2x15xi32>
    %112 = arith.cmpi eq, %111, %90 : vector<2x15xi32>
    %113 = arith.extui %112 : vector<2x15xi1> to vector<2x15xi32>
    %114 = vector.shape_cast %113 : vector<2x15xi32> to vector<1x2x15xi32>
    %cst_43 = arith.constant dense<0> : vector<1xi32>
    %115 = vector.multi_reduction <add>, %114, %cst_43 [1, 2] : vector<1x2x15xi32> to vector<1xi32>
    %116 = vector.shape_cast %115 : vector<1xi32> to vector<1x1x1xi32>
    %117 = vector.extract %116[0, 0, 0] : i32 from vector<1x1x1xi32>
    %c0_44 = arith.constant 0 : index
    %118 = memref.load %arg12[%c0_44] : memref<1xi32, #tpu.memory_space<smem>>
    memref.store %117, %arg12[%c0_44] : memref<1xi32, #tpu.memory_space<smem>>
    %c-1_i32 = arith.constant -1 : i32
    %119 = vector.broadcast %c-1_i32 : i32 to vector<2x15xi32>
    %120 = arith.cmpi ne, %90, %119 : vector<2x15xi32>
    %121 = arith.extui %120 : vector<2x15xi1> to vector<2x15xi32>
    %122 = arith.sitofp %121 : vector<2x15xi32> to vector<2x15xf32>
    %123 = vector.shape_cast %122 : vector<2x15xf32> to vector<1x2x15xf32>
    %cst_45 = arith.constant dense<0.000000e+00> : vector<1xf32>
    %124 = vector.multi_reduction <add>, %123, %cst_45 [1, 2] : vector<1x2x15xf32> to vector<1xf32>
    %125 = vector.shape_cast %124 : vector<1xf32> to vector<1x1x1xf32>
    %126 = vector.extract %125[0, 0, 0] : f32 from vector<1x1x1xf32>
    %c0_46 = arith.constant 0 : index
    %127 = memref.load %arg13[%c0_46] : memref<1xf32, #tpu.memory_space<smem>>
    memref.store %126, %arg13[%c0_46] : memref<1xf32, #tpu.memory_space<smem>>
    return
  }
}

</mosaic_0001>

<llo_original>
// kernel: tpu_custom_call.1
$region0: #{tpu_custom_call.1}
  #allocation0 [shape = 'u32[]', space=smem, size = 0x4, offset = 0x4, fixed_abs, tag = 'smem constant byte address 0x4 - core index']
  #allocation1 [shape = 'u32[144,128]{1,0:T(1,128)}', space=vmem, size = 0x12000, scoped, tag = 'internal scratch']
  %s0 = inlined_call_operand.hbm [shape: f32[2,32], index: 0, kind: input, shape index: {}]
  %s1 = inlined_call_operand.vmem [shape: bf16[32,64], index: 1, kind: input, shape index: {}]
  %s2 = inlined_call_operand.vmem [shape: f32[1,16], index: 2, kind: input, shape index: {}]
  %s3 = inlined_call_operand.vmem [shape: bf16[32,8], index: 3, kind: input, shape index: {}]
  %s4 = inlined_call_operand.vmem [shape: bf16[16,8], index: 4, kind: input, shape index: {}]
  %s5 = inlined_call_operand.vmem [shape: f32[1,8], index: 5, kind: input, shape index: {}]
  %s6 = inlined_call_operand.vmem [shape: bf16[16,64], index: 6, kind: input, shape index: {}]
  %s7 = inlined_call_operand.vmem [shape: bf16[8,64], index: 7, kind: input, shape index: {}]
  %s8 = inlined_call_operand.vmem [shape: f32[1,64], index: 8, kind: input, shape index: {}]
  %s9 = inlined_call_operand.hbm [shape: bf16[64,256], index: 9, kind: input, shape index: {}]
  %s10 = inlined_call_operand.vmem [shape: s32[2,15], index: 10, kind: input, shape index: {}]
  %s11 = inlined_call_operand.hbm [shape: f32[1], index: 11, kind: output, shape index: {0}]
  %s12 = inlined_call_operand.hbm [shape: s32[1], index: 12, kind: output, shape index: {1}]
  %s13 = inlined_call_operand.hbm [shape: f32[1], index: 13, kind: output, shape index: {2}]
  %14 = xla_tuple %s11, %s12, %s13
  %s15 = sld [smem:[#allocation0]]
  $region78: #{tpu_custom_call.1} parent=0
    _
  %s17 = ssub.s32 1, %s15
  %s18 = scalar_select 0, %s17, %s15
  $region1: #{tpu_custom_call.1} parent=0
    #allocation2 [shape = 'u8[1024]{0}', space=vmem, size = 0x400, scoped, tag = 'input window, operand 0, single buffered']
    #allocation3 [shape = 's32[1]{0}', space=sflag, size = 0x4, scoped, tag = 'scoped memory for tpu_custom_call.1']
    #allocation4 [shape = 's32[1]{0}', space=sflag, size = 0x4, scoped, tag = 'scoped memory for tpu_custom_call.1']
    #allocation5 [shape = 'u8[32768]{0}', space=vmem, size = 0x8000, scoped, tag = 'input window, operand 9, single buffered']
    #allocation6 [shape = 's32[1]{0}', space=sflag, size = 0x4, scoped, tag = 'scoped memory for tpu_custom_call.1']
    #allocation7 [shape = 'u8[512]{0}', space=smem, size = 0x200, scoped, tag = 'output window, operand 0, single buffered']
    #allocation8 [shape = 'u8[512]{0}', space=smem, size = 0x200, scoped, tag = 'output window, operand 1, single buffered']
    #allocation9 [shape = 's32[1]{0}', space=sflag, size = 0x4, scoped, tag = 'scoped memory for tpu_custom_call.1']
    #allocation10 [shape = 'u8[512]{0}', space=smem, size = 0x200, scoped, tag = 'output window, operand 2, single buffered']
    %19 = vsyncpa [#allocation3], 0
    %20 = vsyncpa [#allocation6], 0
    %21 = vsyncpa [#allocation4], 0
    %22 = vsyncpa [#allocation9], 0
    // Predicated region
    $region2: #{tpu_custom_call.1} parent=1 // pred_check
      _
    $region3: #{tpu_custom_call.1} parent=1 // pred_check_branch
      %24 = sbr.rel (0) target = $region5
    $region4: #{tpu_custom_call.1} parent=1 // pred_region
      %s26 = ssub.s32 32, 32
      %27 = vsyncadd [#allocation3], %s26
      %s29 = sshll.u32 [#allocation2], 4
      %s30 = int_to_ptr.vmem [resolvable:$true] %s29
      %32 = dma.hbm_to_vmem [thread:$0]  %s0, 32, %s30, [#allocation3]
    $region5: #{tpu_custom_call.1} parent=1 // pred_fallthru
      _
    // Predicated region
    $region6: #{tpu_custom_call.1} parent=1 // pred_check
      _
    $region7: #{tpu_custom_call.1} parent=1 // pred_check_branch
      %34 = sbr.rel (0) target = $region9
    $region8: #{tpu_custom_call.1} parent=1 // pred_region
      _
    $region9: #{tpu_custom_call.1} parent=1 // pred_fallthru
      _
    // Predicated region
    $region10: #{tpu_custom_call.1} parent=1 // pred_check
      _
    $region11: #{tpu_custom_call.1} parent=1 // pred_check_branch
      %36 = sbr.rel (0) target = $region13
    $region12: #{tpu_custom_call.1} parent=1 // pred_region
      _
    $region13: #{tpu_custom_call.1} parent=1 // pred_fallthru
      _
    // Predicated region
    $region14: #{tpu_custom_call.1} parent=1 // pred_check
      _
    $region15: #{tpu_custom_call.1} parent=1 // pred_check_branch
      %38 = sbr.rel (0) target = $region17
    $region16: #{tpu_custom_call.1} parent=1 // pred_region
      _
    $region17: #{tpu_custom_call.1} parent=1 // pred_fallthru
      _
    // Predicated region
    $region18: #{tpu_custom_call.1} parent=1 // pred_check
      _
    $region19: #{tpu_custom_call.1} parent=1 // pred_check_branch
      %40 = sbr.rel (0) target = $region21
    $region20: #{tpu_custom_call.1} parent=1 // pred_region
      _
    $region21: #{tpu_custom_call.1} parent=1 // pred_fallthru
      _
    // Predicated region
    $region22: #{tpu_custom_call.1} parent=1 // pred_check
      _
    $region23: #{tpu_custom_call.1} parent=1 // pred_check_branch
      %42 = sbr.rel (0) target = $region25
    $region24: #{tpu_custom_call.1} parent=1 // pred_region
      _
    $region25: #{tpu_custom_call.1} parent=1 // pred_fallthru
      _
    // Predicated region
    $region26: #{tpu_custom_call.1} parent=1 // pred_check
      _
    $region27: #{tpu_custom_call.1} parent=1 // pred_check_branch
      %44 = sbr.rel (0) target = $region29
    $region28: #{tpu_custom_call.1} parent=1 // pred_region
      _
    $region29: #{tpu_custom_call.1} parent=1 // pred_fallthru
      _
    // Predicated region
    $region30: #{tpu_custom_call.1} parent=1 // pred_check
      _
    $region31: #{tpu_custom_call.1} parent=1 // pred_check_branch
      %46 = sbr.rel (0) target = $region33
    $region32: #{tpu_custom_call.1} parent=1 // pred_region
      _
    $region33: #{tpu_custom_call.1} parent=1 // pred_fallthru
      _
    // Predicated region
    $region34: #{tpu_custom_call.1} parent=1 // pred_check
      _
    $region35: #{tpu_custom_call.1} parent=1 // pred_check_branch
      %48 = sbr.rel (0) target = $region37
    $region36: #{tpu_custom_call.1} parent=1 // pred_region
      _
    $region37: #{tpu_custom_call.1} parent=1 // pred_fallthru
      _
    // Predicated region
    $region38: #{tpu_custom_call.1} parent=1 // pred_check
      _
    $region39: #{tpu_custom_call.1} parent=1 // pred_check_branch
      %50 = sbr.rel (0) target = $region41
    $region40: #{tpu_custom_call.1} parent=1 // pred_region
      %s52 = ssub.s32 1024, 1024
      %53 = vsyncadd [#allocation6], %s52
      %s54 = sshll.u32 [#allocation5], 4
      %s55 = int_to_ptr.vmem [resolvable:$true] %s54
      %60 = dma.hbm_to_vmem [thread:$0]  %s9, 1024, %s55, [#allocation6], 128, 128, 8
    $region41: #{tpu_custom_call.1} parent=1 // pred_fallthru
      _
    // Predicated region
    $region42: #{tpu_custom_call.1} parent=1 // pred_check
      _
    $region43: #{tpu_custom_call.1} parent=1 // pred_check_branch
      %62 = sbr.rel (0) target = $region45
    $region44: #{tpu_custom_call.1} parent=1 // pred_region
      _
    $region45: #{tpu_custom_call.1} parent=1 // pred_fallthru
      _
    // Predicated region
    $region46: #{tpu_custom_call.1} parent=1 // pred_check
      _
    $region47: #{tpu_custom_call.1} parent=1 // pred_check_branch
      %64 = sbr.rel (0) target = $region49
    $region48: #{tpu_custom_call.1} parent=1 // pred_region
      %65 = dma.done [#allocation3], 32
    $region49: #{tpu_custom_call.1} parent=1 // pred_fallthru
      _
    // Predicated region
    $region50: #{tpu_custom_call.1} parent=1 // pred_check
      _
    $region51: #{tpu_custom_call.1} parent=1 // pred_check_branch
      %67 = sbr.rel (0) target = $region53
    $region52: #{tpu_custom_call.1} parent=1 // pred_region
      %68 = dma.done [#allocation6], 1024
    $region53: #{tpu_custom_call.1} parent=1 // pred_fallthru
      _
    %v70 = vld [vmem:[#allocation2] sm:$0x3]
    %v71 = vmax.f32 %v70, 0.0
    %v72 = vpack.c.bf16 %v71, %v71
    %v73 = vld [vmem:[%s1] sm:$0xf]
    %v74 = vld [vmem:[%s1 + $0x4] sm:$0xf]
    %v75 = vld [vmem:[%s1 + $0x8] sm:$0xf]
    %v76 = vld [vmem:[%s1 + $0xc] sm:$0xf]
    %v81 = vunpack.c.l.b16 %v73
    %v82 = vunpack.c.l.b16 %v74
    %v83 = vunpack.c.l.b16 %v75
    %v84 = vunpack.c.l.b16 %v76
    %v85 = vpack.c.b16 %v82, %v81
    %v86 = vpack.c.b16 %v84, %v83
    %vm89 = vcmask 261120
    %v91 = vsel %vm89, %v72, 0
    %93 = vmatprep.subr.bf16.mxu0 0
    %94 = vmatpush1.bf16.msra.mxu0 0
    %95 = vmatprep.subr.bf16.mxu0 0
    %96 = vmatpush1.bf16.msra.mxu0 0
    %97 = vmatprep.subr.bf16.mxu0 0
    %98 = vmatpush1.bf16.msra.mxu0 0
    %99 = vmatprep.subr.bf16.mxu0 0
    %100 = vmatpush1.bf16.msra.mxu0 0
    %101 = vmatprep.subr.bf16.mxu0 0
    %102 = vmatpush1.bf16.msra.mxu0 0
    %103 = vmatprep.subr.bf16.mxu0 0
    %104 = vmatpush1.bf16.msra.mxu0 0
    %105 = vmatprep.subr.bf16.mxu0 0
    %106 = vmatpush1.bf16.msra.mxu0 %v86
    %107 = vmatprep.subr.bf16.mxu0 0
    %108 = vmatpush1.bf16.msra.mxu0 %v85
    %109 = vmatprep.subr.bf16.mxu0 0
    %110 = vmatpush2.bf16.msra.mxu0 0
    %111 = vmatprep.subr.bf16.mxu0 0
    %112 = vmatpush2.bf16.msra.mxu0 0
    %113 = vmatprep.subr.bf16.mxu0 0
    %114 = vmatpush2.bf16.msra.mxu0 0
    %115 = vmatprep.subr.bf16.mxu0 0
    %116 = vmatpush2.bf16.msra.mxu0 0
    %117 = vmatprep.subr.bf16.mxu0 0
    %118 = vmatpush2.bf16.msra.mxu0 0
    %119 = vmatprep.subr.bf16.mxu0 0
    %120 = vmatpush2.bf16.msra.mxu0 0
    %121 = vmatprep.subr.bf16.mxu0 0
    %122 = vmatpush2.bf16.msra.mxu0 0
    %123 = vmatprep.subr.bf16.mxu0 0
    %124 = vmatpush2.bf16.msra.mxu0 0
    %125 = vmatprep.mubr.bf16.mxu0 0
    %126 = vmatmul.mubr.bf16.gmra.mxu0 %v91
    %v127 = vpop.f32.mrf.mxu0
    %v128 = vadd.f32 0.0, %v127
    %v129 = vpop.f32.mrf.mxu0
    %v130 = vpop.f32.mrf.mxu0
    %v131 = vpop.f32.mrf.mxu0
    %132 = vdwg.mxu0
    %134 = vrot.lane.b32.xlu0 %v128, 112
    %v135 = vpop.permute.xlu0 %134
    %137 = vrot.lane.b32.xlu0 %v128, 96
    %v138 = vpop.permute.xlu0 %137
    %140 = vrot.lane.b32.xlu0 %v128, 80
    %v141 = vpop.permute.xlu0 %140
    %v143 = vcombine.low %v128, %v138
    %v145 = vunpack.c.l.s4 1983009808
    %v146 = vunpack.c.0.s8 %v145
    %v147 = vlaneseq
    %v148 = vshrl.u32 %v147, 7
    %v149 = vsub.s32 %v146, %v148
    %v150 = vrot.slane %v143, %v149
    %v151 = vcombine.low %v135, %v141
    %v153 = vunpack.c.l.s4 1983009808
    %v154 = vunpack.c.0.s8 %v153
    %v155 = vlaneseq
    %v156 = vshrl.u32 %v155, 7
    %v157 = vsub.s32 %v154, %v156
    %v158 = vrot.slane %v151, %v157
    %v159 = vcombine.low %v150, %v158
    %v161 = vunpack.c.l.s4 1934713408
    %v162 = vunpack.c.0.s8 %v161
    %v163 = vlaneseq
    %v164 = vshrl.u32 %v163, 7
    %v165 = vsub.s32 %v162, %v164
    %v166 = vrot.slane %v159, %v165
    %v167 = vcombine.high %v166, 0.0
    %v168 = vld [vmem:[%s2] sm:$0x1]
    %v170 = vlaneseq
    %v171 = vshrl.u32 %v170, 7
    %v172 = vsub.s32 0, %v171
    %v173 = vrot.slane %v168, %v172
    %v175 = vadd.f32 %v166, %v173
    %v176 = vadd.f32 %v167, %v173
    %v177 = vmax.f32 %v175, 0.0
    %v178 = vmax.f32 %v176, 0.0
    %v179 = vld [vmem:[%s3] sm:$0xf]
    %v180 = vld [vmem:[%s3 + $0x4] sm:$0xf]
    %v181 = vld [vmem:[%s3 + $0x8] sm:$0xf]
    %v182 = vld [vmem:[%s3 + $0xc] sm:$0xf]
    %v183 = vld [vmem:[%s4] sm:$0xf]
    %v184 = vld [vmem:[%s4 + $0x4] sm:$0xf]
    %v185 = vld [vmem:[%s5] sm:$0x1]
    %v186 = vpack.c.bf16 %v177, %v177
    %v187 = vpack.c.bf16 %v178, %v178
    %v189 = vshrl.u32 %v186, 16
    %v191 = vrot.slane %v189, 7
    %v192 = vshll.u32 %v186, 16
    %v194 = vor.u32 %v191, %v192
    %v196 = vshrl.u32 %v187, 16
    %v198 = vrot.slane %v196, 7
    %v199 = vshll.u32 %v187, 16
    %v201 = vor.u32 %v198, %v199
    %vm204 = vcmask 1040384
    %vm205 = vsmask.f32 256
    %vm206 = vmand %vm204, %vm205
    %v207 = vsel %vm206, 0, %v194
    %v208 = vsel %vm206, 0, %v201
    %vm209 = vcmask 1042432
    %vm210 = vsmask.f32 2304
    %vm211 = vmand %vm209, %vm210
    %v212 = vsel %vm211, %v207, 0
    %v213 = vsel %vm211, %v208, 0
    %v215 = vshrl.u32 %v212, 16
    %v217 = vrot.slane %v215, 7
    %v218 = vshll.u32 %v212, 16
    %v220 = vor.u32 %v217, %v218
    %v222 = vshrl.u32 %v213, 16
    %v224 = vrot.slane %v222, 7
    %v225 = vshll.u32 %v213, 16
    %v227 = vor.u32 %v224, %v225
    %228 = vrot.lane.b32.xlu0 %v220, 16
    %v229 = vpop.permute.xlu0 %228
    %230 = vrot.lane.b32.xlu0 %v227, 16
    %v231 = vpop.permute.xlu0 %230
    %vm232 = vcmask 130048
    %v234 = vsel %vm232, %v212, %v229
    %v236 = vsel %vm232, %v213, %v231
    %v240 = vunpack.c.l.s4 1966171168
    %v241 = vunpack.c.0.s8 %v240
    %v242 = vlaneseq
    %v243 = vshrl.u32 %v242, 7
    %v244 = vsub.s32 %v241, %v243
    %v245 = vrot.slane %v234, %v244
    %v246 = vcombine.high %v245, %v245
    %v248 = vunpack.c.l.s4 1966171168
    %v249 = vunpack.c.0.s8 %v248
    %v250 = vlaneseq
    %v251 = vshrl.u32 %v250, 7
    %v252 = vsub.s32 %v249, %v251
    %v253 = vrot.slane %v245, %v252
    %v255 = vunpack.c.l.s4 1966171168
    %v256 = vunpack.c.0.s8 %v255
    %v257 = vlaneseq
    %v258 = vshrl.u32 %v257, 7
    %v259 = vsub.s32 %v256, %v258
    %v260 = vrot.slane %v246, %v259
    %v261 = vcombine.high %v253, %v253
    %v263 = vunpack.c.l.s4 1966171168
    %v264 = vunpack.c.0.s8 %v263
    %v265 = vlaneseq
    %v266 = vshrl.u32 %v265, 7
    %v267 = vsub.s32 %v264, %v266
    %v268 = vrot.slane %v236, %v267
    %v269 = vcombine.high %v268, %v268
    %v271 = vunpack.c.l.s4 1966171168
    %v272 = vunpack.c.0.s8 %v271
    %v273 = vlaneseq
    %v274 = vshrl.u32 %v273, 7
    %v275 = vsub.s32 %v272, %v274
    %v276 = vrot.slane %v268, %v275
    %v278 = vunpack.c.l.s4 1966171168
    %v279 = vunpack.c.0.s8 %v278
    %v280 = vlaneseq
    %v281 = vshrl.u32 %v280, 7
    %v282 = vsub.s32 %v279, %v281
    %v283 = vrot.slane %v269, %v282
    %v284 = vcombine.high %v276, %v276
    %v285 = vunpack.i.h.s16 %v253
    %v286 = vunpack.i.l.s16 %v260
    %v287 = vunpack.i.h.s16 %v260
    %v288 = vunpack.i.l.s16 %v261
    %v289 = vunpack.i.h.s16 %v261
    %v290 = vunpack.i.h.s16 %v276
    %v291 = vunpack.i.l.s16 %v283
    %v292 = vunpack.i.h.s16 %v283
    %v293 = vunpack.i.l.s16 %v284
    %v294 = vunpack.i.h.s16 %v284
    %v295 = vpack.i.b16 %v286, %v285
    %v296 = vpack.i.b16 %v288, %v287
    %v297 = vpack.i.b16 %v290, %v289
    %v298 = vpack.i.b16 %v292, %v291
    %v299 = vpack.i.b16 %v294, %v293
    %v300 = vcombine.low %v295, %v296
    %v301 = vcombine.low %v297, %v298
    %v303 = vunpack.c.l.s4 1966171168
    %v304 = vunpack.c.0.s8 %v303
    %v305 = vlaneseq
    %v306 = vshrl.u32 %v305, 7
    %v307 = vsub.s32 %v304, %v306
    %v308 = vrot.slane %v300, %v307
    %v310 = vunpack.c.l.s4 1966171168
    %v311 = vunpack.c.0.s8 %v310
    %v312 = vlaneseq
    %v313 = vshrl.u32 %v312, 7
    %v314 = vsub.s32 %v311, %v313
    %v315 = vrot.slane %v301, %v314
    %v317 = vunpack.c.l.s4 1966171168
    %v318 = vunpack.c.0.s8 %v317
    %v319 = vlaneseq
    %v320 = vshrl.u32 %v319, 7
    %v321 = vsub.s32 %v318, %v320
    %v322 = vrot.slane %v299, %v321
    %v323 = vcombine.low %v308, %v315
    %v325 = vunpack.c.l.s4 1966171168
    %v326 = vunpack.c.0.s8 %v325
    %v327 = vlaneseq
    %v328 = vshrl.u32 %v327, 7
    %v329 = vsub.s32 %v326, %v328
    %v330 = vrot.slane %v323, %v329
    %v332 = vunpack.c.l.s4 1966171168
    %v333 = vunpack.c.0.s8 %v332
    %v334 = vlaneseq
    %v335 = vshrl.u32 %v334, 7
    %v336 = vsub.s32 %v333, %v335
    %v337 = vrot.slane %v322, %v336
    %v338 = vcombine.low %v330, %v337
    %v343 = vunpack.c.l.b16 %v179
    %v344 = vunpack.c.l.b16 %v180
    %v345 = vunpack.c.l.b16 %v181
    %v346 = vunpack.c.l.b16 %v182
    %v347 = vpack.c.b16 %v344, %v343
    %v348 = vpack.c.b16 %v346, %v345
    %v352 = vsel %vm89, %v338, 0
    %354 = vmatprep.subr.bf16.mxu0 0
    %355 = vmatpush1.bf16.msra.mxu0 0
    %356 = vmatprep.subr.bf16.mxu0 0
    %357 = vmatpush1.bf16.msra.mxu0 0
    %358 = vmatprep.subr.bf16.mxu0 0
    %359 = vmatpush1.bf16.msra.mxu0 0
    %360 = vmatprep.subr.bf16.mxu0 0
    %361 = vmatpush1.bf16.msra.mxu0 0
    %362 = vmatprep.subr.bf16.mxu0 0
    %363 = vmatpush1.bf16.msra.mxu0 0
    %364 = vmatprep.subr.bf16.mxu0 0
    %365 = vmatpush1.bf16.msra.mxu0 0
    %366 = vmatprep.subr.bf16.mxu0 0
    %367 = vmatpush1.bf16.msra.mxu0 %v348
    %368 = vmatprep.subr.bf16.mxu0 0
    %369 = vmatpush1.bf16.msra.mxu0 %v347
    %370 = vmatprep.subr.bf16.mxu0 0
    %371 = vmatpush2.bf16.msra.mxu0 0
    %372 = vmatprep.subr.bf16.mxu0 0
    %373 = vmatpush2.bf16.msra.mxu0 0
    %374 = vmatprep.subr.bf16.mxu0 0
    %375 = vmatpush2.bf16.msra.mxu0 0
    %376 = vmatprep.subr.bf16.mxu0 0
    %377 = vmatpush2.bf16.msra.mxu0 0
    %378 = vmatprep.subr.bf16.mxu0 0
    %379 = vmatpush2.bf16.msra.mxu0 0
    %380 = vmatprep.subr.bf16.mxu0 0
    %381 = vmatpush2.bf16.msra.mxu0 0
    %382 = vmatprep.subr.bf16.mxu0 0
    %383 = vmatpush2.bf16.msra.mxu0 0
    %384 = vmatprep.subr.bf16.mxu0 0
    %385 = vmatpush2.bf16.msra.mxu0 0
    %386 = vmatprep.mubr.bf16.mxu0 0
    %387 = vmatmul.mubr.bf16.gmra.mxu0 %v352
    %v388 = vpop.f32.mrf.mxu0
    %v389 = vadd.f32 0.0, %v388
    %v390 = vpop.f32.mrf.mxu0
    %v391 = vpop.f32.mrf.mxu0
    %v392 = vadd.f32 0.0, %v391
    %v393 = vpop.f32.mrf.mxu0
    %394 = vdwg.mxu0
    %v397 = vcombine.low %v186, %v187
    %v399 = vunpack.c.l.s4 1983009808
    %v400 = vunpack.c.0.s8 %v399
    %v401 = vlaneseq
    %v402 = vshrl.u32 %v401, 7
    %v403 = vsub.s32 %v400, %v402
    %v404 = vrot.slane %v397, %v403
    %v407 = vunpack.c.l.b16 %v183
    %v408 = vunpack.c.l.b16 %v184
    %v409 = vpack.c.b16 %v408, %v407
    %v412 = vsel %vm232, %v404, 0
    %414 = vmatprep.subr.bf16.mxu0 0
    %415 = vmatpush1.bf16.msra.mxu0 0
    %416 = vmatprep.subr.bf16.mxu0 0
    %417 = vmatpush1.bf16.msra.mxu0 0
    %418 = vmatprep.subr.bf16.mxu0 0
    %419 = vmatpush1.bf16.msra.mxu0 0
    %420 = vmatprep.subr.bf16.mxu0 0
    %421 = vmatpush1.bf16.msra.mxu0 0
    %422 = vmatprep.subr.bf16.mxu0 0
    %423 = vmatpush1.bf16.msra.mxu0 0
    %424 = vmatprep.subr.bf16.mxu0 0
    %425 = vmatpush1.bf16.msra.mxu0 0
    %426 = vmatprep.subr.bf16.mxu0 0
    %427 = vmatpush1.bf16.msra.mxu0 0
    %428 = vmatprep.subr.bf16.mxu0 0
    %429 = vmatpush1.bf16.msra.mxu0 %v409
    %430 = vmatprep.subr.bf16.mxu0 0
    %431 = vmatpush2.bf16.msra.mxu0 0
    %432 = vmatprep.subr.bf16.mxu0 0
    %433 = vmatpush2.bf16.msra.mxu0 0
    %434 = vmatprep.subr.bf16.mxu0 0
    %435 = vmatpush2.bf16.msra.mxu0 0
    %436 = vmatprep.subr.bf16.mxu0 0
    %437 = vmatpush2.bf16.msra.mxu0 0
    %438 = vmatprep.subr.bf16.mxu0 0
    %439 = vmatpush2.bf16.msra.mxu0 0
    %440 = vmatprep.subr.bf16.mxu0 0
    %441 = vmatpush2.bf16.msra.mxu0 0
    %442 = vmatprep.subr.bf16.mxu0 0
    %443 = vmatpush2.bf16.msra.mxu0 0
    %444 = vmatprep.subr.bf16.mxu0 0
    %445 = vmatpush2.bf16.msra.mxu0 0
    %446 = vmatprep.mubr.bf16.mxu0 0
    %447 = vmatmul.mubr.bf16.gmra.mxu0 %v412
    %v448 = vpop.f32.mrf.mxu0
    %v449 = vadd.f32 0.0, %v448
    %v450 = vpop.f32.mrf.mxu0
    %v451 = vpop.f32.mrf.mxu0
    %v452 = vpop.f32.mrf.mxu0
    %453 = vdwg.mxu0
    %v455 = vcombine.high %v449, %v449
    %vm457 = vcmask 1043456
    %v458 = vsel %vm457, %v449, 0.0
    %v459 = vsel %vm457, %v455, 0.0
    %v462 = vcombine.high %v389, %v389
    %v464 = vunpack.c.l.s4 1966171168
    %v465 = vunpack.c.0.s8 %v464
    %v466 = vlaneseq
    %v467 = vshrl.u32 %v466, 7
    %v468 = vsub.s32 %v465, %v467
    %v469 = vrot.slane %v389, %v468
    %v471 = vunpack.c.l.s4 1966171168
    %v472 = vunpack.c.0.s8 %v471
    %v473 = vlaneseq
    %v474 = vshrl.u32 %v473, 7
    %v475 = vsub.s32 %v472, %v474
    %v476 = vrot.slane %v462, %v475
    %v477 = vcombine.high %v469, %v469
    %v478 = vcombine.high %v476, %v476
    %v480 = vunpack.c.l.s4 1966171168
    %v481 = vunpack.c.0.s8 %v480
    %v482 = vlaneseq
    %v483 = vshrl.u32 %v482, 7
    %v484 = vsub.s32 %v481, %v483
    %v485 = vrot.slane %v469, %v484
    %v487 = vunpack.c.l.s4 1966171168
    %v488 = vunpack.c.0.s8 %v487
    %v489 = vlaneseq
    %v490 = vshrl.u32 %v489, 7
    %v491 = vsub.s32 %v488, %v490
    %v492 = vrot.slane %v476, %v491
    %v494 = vunpack.c.l.s4 1966171168
    %v495 = vunpack.c.0.s8 %v494
    %v496 = vlaneseq
    %v497 = vshrl.u32 %v496, 7
    %v498 = vsub.s32 %v495, %v497
    %v499 = vrot.slane %v477, %v498
    %v501 = vunpack.c.l.s4 1966171168
    %v502 = vunpack.c.0.s8 %v501
    %v503 = vlaneseq
    %v504 = vshrl.u32 %v503, 7
    %v505 = vsub.s32 %v502, %v504
    %v506 = vrot.slane %v478, %v505
    %v507 = vcombine.high %v485, %v485
    %v508 = vcombine.high %v492, %v492
    %v509 = vcombine.high %v499, %v499
    %v510 = vcombine.high %v506, %v506
    %v512 = vunpack.c.l.s4 1966171168
    %v513 = vunpack.c.0.s8 %v512
    %v514 = vlaneseq
    %v515 = vshrl.u32 %v514, 7
    %v516 = vsub.s32 %v513, %v515
    %v517 = vrot.slane %v392, %v516
    %v518 = vcombine.high %v517, %v517
    %v520 = vunpack.c.l.s4 1966171168
    %v521 = vunpack.c.0.s8 %v520
    %v522 = vlaneseq
    %v523 = vshrl.u32 %v522, 7
    %v524 = vsub.s32 %v521, %v523
    %v525 = vrot.slane %v517, %v524
    %v527 = vunpack.c.l.s4 1966171168
    %v528 = vunpack.c.0.s8 %v527
    %v529 = vlaneseq
    %v530 = vshrl.u32 %v529, 7
    %v531 = vsub.s32 %v528, %v530
    %v532 = vrot.slane %v518, %v531
    %v545 = vcombine.high %v458, %v458
    %v547 = vunpack.c.l.s4 1966171168
    %v548 = vunpack.c.0.s8 %v547
    %v549 = vlaneseq
    %v550 = vshrl.u32 %v549, 7
    %v551 = vsub.s32 %v548, %v550
    %v552 = vrot.slane %v458, %v551
    %v554 = vunpack.c.l.s4 1966171168
    %v555 = vunpack.c.0.s8 %v554
    %v556 = vlaneseq
    %v557 = vshrl.u32 %v556, 7
    %v558 = vsub.s32 %v555, %v557
    %v559 = vrot.slane %v545, %v558
    %v560 = vcombine.high %v552, %v552
    %v562 = vunpack.c.l.s4 1966171168
    %v563 = vunpack.c.0.s8 %v562
    %v564 = vlaneseq
    %v565 = vshrl.u32 %v564, 7
    %v566 = vsub.s32 %v563, %v565
    %v567 = vrot.slane %v552, %v566
    %v569 = vunpack.c.l.s4 1966171168
    %v570 = vunpack.c.0.s8 %v569
    %v571 = vlaneseq
    %v572 = vshrl.u32 %v571, 7
    %v573 = vsub.s32 %v570, %v572
    %v574 = vrot.slane %v559, %v573
    %v576 = vunpack.c.l.s4 1966171168
    %v577 = vunpack.c.0.s8 %v576
    %v578 = vlaneseq
    %v579 = vshrl.u32 %v578, 7
    %v580 = vsub.s32 %v577, %v579
    %v581 = vrot.slane %v560, %v580
    %v582 = vcombine.high %v567, %v567
    %v583 = vcombine.high %v581, %v581
    %v584 = vcombine.high %v459, %v459
    %v586 = vunpack.c.l.s4 1966171168
    %v587 = vunpack.c.0.s8 %v586
    %v588 = vlaneseq
    %v589 = vshrl.u32 %v588, 7
    %v590 = vsub.s32 %v587, %v589
    %v591 = vrot.slane %v459, %v590
    %v593 = vunpack.c.l.s4 1966171168
    %v594 = vunpack.c.0.s8 %v593
    %v595 = vlaneseq
    %v596 = vshrl.u32 %v595, 7
    %v597 = vsub.s32 %v594, %v596
    %v598 = vrot.slane %v584, %v597
    %v599 = vcombine.high %v591, %v591
    %v601 = vunpack.c.l.s4 1966171168
    %v602 = vunpack.c.0.s8 %v601
    %v603 = vlaneseq
    %v604 = vshrl.u32 %v603, 7
    %v605 = vsub.s32 %v602, %v604
    %v606 = vrot.slane %v591, %v605
    %v608 = vunpack.c.l.s4 1966171168
    %v609 = vunpack.c.0.s8 %v608
    %v610 = vlaneseq
    %v611 = vshrl.u32 %v610, 7
    %v612 = vsub.s32 %v609, %v611
    %v613 = vrot.slane %v598, %v612
    %v615 = vunpack.c.l.s4 1966171168
    %v616 = vunpack.c.0.s8 %v615
    %v617 = vlaneseq
    %v618 = vshrl.u32 %v617, 7
    %v619 = vsub.s32 %v616, %v618
    %v620 = vrot.slane %v599, %v619
    %v621 = vcombine.high %v606, %v606
    %v622 = vcombine.high %v620, %v620
    %v623 = vlaneseq
    %v624 = vshrl.u32 %v623, 7
    %v625 = vsub.s32 0, %v624
    %v626 = vrot.slane %v567, %v625
    %v627 = vlaneseq
    %v628 = vshrl.u32 %v627, 7
    %v629 = vsub.s32 0, %v628
    %v630 = vrot.slane %v581, %v629
    %v631 = vlaneseq
    %v632 = vshrl.u32 %v631, 7
    %v633 = vsub.s32 0, %v632
    %v634 = vrot.slane %v582, %v633
    %v635 = vlaneseq
    %v636 = vshrl.u32 %v635, 7
    %v637 = vsub.s32 0, %v636
    %v638 = vrot.slane %v583, %v637
    %v639 = vlaneseq
    %v640 = vshrl.u32 %v639, 7
    %v641 = vsub.s32 0, %v640
    %v642 = vrot.slane %v574, %v641
    %v643 = vlaneseq
    %v644 = vshrl.u32 %v643, 7
    %v645 = vsub.s32 0, %v644
    %v646 = vrot.slane %v606, %v645
    %v647 = vlaneseq
    %v648 = vshrl.u32 %v647, 7
    %v649 = vsub.s32 0, %v648
    %v650 = vrot.slane %v620, %v649
    %v651 = vlaneseq
    %v652 = vshrl.u32 %v651, 7
    %v653 = vsub.s32 0, %v652
    %v654 = vrot.slane %v621, %v653
    %v655 = vlaneseq
    %v656 = vshrl.u32 %v655, 7
    %v657 = vsub.s32 0, %v656
    %v658 = vrot.slane %v622, %v657
    %v659 = vlaneseq
    %v660 = vshrl.u32 %v659, 7
    %v661 = vsub.s32 0, %v660
    %v662 = vrot.slane %v613, %v661
    %vm673 = vcmask 1040384
    %v674 = vsel %vm673, %v485, %v626
    %v675 = vsel %vm673, %v499, %v630
    %v676 = vsel %vm673, %v507, %v634
    %v677 = vsel %vm673, %v509, %v638
    %v678 = vsel %vm673, %v492, %v642
    %v679 = vsel %vm673, %v506, %v646
    %v680 = vsel %vm673, %v508, %v650
    %v681 = vsel %vm673, %v510, %v654
    %v682 = vsel %vm673, %v525, %v658
    %v683 = vsel %vm673, %v532, %v662
    %v685 = vlaneseq
    %v686 = vshrl.u32 %v685, 7
    %v687 = vsub.s32 0, %v686
    %v688 = vrot.slane %v185, %v687
    %v689 = vcombine.high %v688, %v688
    %v691 = vunpack.c.l.s4 1983009808
    %v692 = vunpack.c.0.s8 %v691
    %v693 = vlaneseq
    %v694 = vshrl.u32 %v693, 7
    %v695 = vsub.s32 %v692, %v694
    %v696 = vrot.slane %v688, %v695
    %v698 = vunpack.c.l.s4 1983009808
    %v699 = vunpack.c.0.s8 %v698
    %v700 = vlaneseq
    %v701 = vshrl.u32 %v700, 7
    %v702 = vsub.s32 %v699, %v701
    %v703 = vrot.slane %v689, %v702
    %v704 = vcombine.high %v696, %v696
    %v705 = vcombine.high %v703, %v703
    %v710 = vadd.f32 %v674, %v696
    %v711 = vadd.f32 %v675, %v704
    %v712 = vadd.f32 %v676, %v703
    %v713 = vadd.f32 %v677, %v705
    %v714 = vadd.f32 %v678, %v696
    %v715 = vadd.f32 %v679, %v696
    %v716 = vadd.f32 %v680, %v704
    %v717 = vadd.f32 %v681, %v703
    %v718 = vadd.f32 %v682, %v705
    %v719 = vadd.f32 %v683, %v696
    %v720 = vmax.f32 %v710, 0.0
    %v721 = vmax.f32 %v711, 0.0
    %v722 = vmax.f32 %v712, 0.0
    %v723 = vmax.f32 %v713, 0.0
    %v724 = vmax.f32 %v714, 0.0
    %v725 = vmax.f32 %v715, 0.0
    %v726 = vmax.f32 %v716, 0.0
    %v727 = vmax.f32 %v717, 0.0
    %v728 = vmax.f32 %v718, 0.0
    %v729 = vmax.f32 %v719, 0.0
    %v730 = vld [vmem:[%s6] sm:$0xf]
    %v731 = vld [vmem:[%s6 + $0x4] sm:$0xf]
    %v732 = vld [vmem:[%s7] sm:$0xf]
    %v733 = vld [vmem:[%s8] sm:$0x1]
    %v744 = vcombine.low %v720, %v721
    %v745 = vcombine.low %v722, %v723
    %v747 = vunpack.c.l.s4 1983009808
    %v748 = vunpack.c.0.s8 %v747
    %v749 = vlaneseq
    %v750 = vshrl.u32 %v749, 7
    %v751 = vsub.s32 %v748, %v750
    %v752 = vrot.slane %v744, %v751
    %v754 = vunpack.c.l.s4 1983009808
    %v755 = vunpack.c.0.s8 %v754
    %v756 = vlaneseq
    %v757 = vshrl.u32 %v756, 7
    %v758 = vsub.s32 %v755, %v757
    %v759 = vrot.slane %v745, %v758
    %v760 = vcombine.low %v752, %v759
    %v762 = vunpack.c.l.s4 1983009808
    %v763 = vunpack.c.0.s8 %v762
    %v764 = vlaneseq
    %v765 = vshrl.u32 %v764, 7
    %v766 = vsub.s32 %v763, %v765
    %v767 = vrot.slane %v724, %v766
    %v768 = vcombine.low %v725, %v726
    %v769 = vcombine.low %v727, %v728
    %v771 = vunpack.c.l.s4 1983009808
    %v772 = vunpack.c.0.s8 %v771
    %v773 = vlaneseq
    %v774 = vshrl.u32 %v773, 7
    %v775 = vsub.s32 %v772, %v774
    %v776 = vrot.slane %v768, %v775
    %v778 = vunpack.c.l.s4 1983009808
    %v779 = vunpack.c.0.s8 %v778
    %v780 = vlaneseq
    %v781 = vshrl.u32 %v780, 7
    %v782 = vsub.s32 %v779, %v781
    %v783 = vrot.slane %v769, %v782
    %v784 = vcombine.low %v776, %v783
    %v786 = vunpack.c.l.s4 1983009808
    %v787 = vunpack.c.0.s8 %v786
    %v788 = vlaneseq
    %v789 = vshrl.u32 %v788, 7
    %v790 = vsub.s32 %v787, %v789
    %v791 = vrot.slane %v729, %v790
    %v796 = vpack.c.bf16 %v767, %v760
    %v797 = vpack.c.bf16 %v791, %v784
    %v799 = vshrl.u32 %v796, 16
    %v801 = vrot.slane %v799, 7
    %v802 = vshll.u32 %v796, 16
    %v804 = vor.u32 %v801, %v802
    %v806 = vshrl.u32 %v797, 16
    %v808 = vrot.slane %v806, 7
    %v809 = vshll.u32 %v797, 16
    %v811 = vor.u32 %v808, %v809
    %v814 = vsel %vm206, 0, %v804
    %v815 = vsel %vm206, 0, %v811
    %vm816 = vcmask 1044480
    %v819 = vsel %vm816, %v814, 0
    %v821 = vsel %vm816, %v815, 0
    %v822 = vshrl.u32 %v819, 16
    %v824 = vrot.slane %v822, 7
    %v825 = vshll.u32 %v819, 16
    %v827 = vor.u32 %v824, %v825
    %v828 = vshrl.u32 %v821, 16
    %v830 = vrot.slane %v828, 7
    %v831 = vshll.u32 %v821, 16
    %v833 = vor.u32 %v830, %v831
    %834 = vrot.lane.b32.xlu0 %v827, 8
    %v835 = vpop.permute.xlu0 %834
    %836 = vrot.lane.b32.xlu0 %v833, 8
    %v837 = vpop.permute.xlu0 %836
    %vm838 = vcmask 64512
    %v840 = vsel %vm838, %v819, %v835
    %v842 = vsel %vm838, %v821, %v837
    %v845 = vcombine.high %v840, %v840
    %v847 = vunpack.c.l.s4 1966171168
    %v848 = vunpack.c.0.s8 %v847
    %v849 = vlaneseq
    %v850 = vshrl.u32 %v849, 7
    %v851 = vsub.s32 %v848, %v850
    %v852 = vrot.slane %v840, %v851
    %v854 = vunpack.c.l.s4 1966171168
    %v855 = vunpack.c.0.s8 %v854
    %v856 = vlaneseq
    %v857 = vshrl.u32 %v856, 7
    %v858 = vsub.s32 %v855, %v857
    %v859 = vrot.slane %v845, %v858
    %v860 = vcombine.high %v852, %v852
    %v861 = vcombine.high %v859, %v859
    %v863 = vunpack.c.l.s4 1966171168
    %v864 = vunpack.c.0.s8 %v863
    %v865 = vlaneseq
    %v866 = vshrl.u32 %v865, 7
    %v867 = vsub.s32 %v864, %v866
    %v868 = vrot.slane %v852, %v867
    %v870 = vunpack.c.l.s4 1966171168
    %v871 = vunpack.c.0.s8 %v870
    %v872 = vlaneseq
    %v873 = vshrl.u32 %v872, 7
    %v874 = vsub.s32 %v871, %v873
    %v875 = vrot.slane %v859, %v874
    %v877 = vunpack.c.l.s4 1966171168
    %v878 = vunpack.c.0.s8 %v877
    %v879 = vlaneseq
    %v880 = vshrl.u32 %v879, 7
    %v881 = vsub.s32 %v878, %v880
    %v882 = vrot.slane %v860, %v881
    %v884 = vunpack.c.l.s4 1966171168
    %v885 = vunpack.c.0.s8 %v884
    %v886 = vlaneseq
    %v887 = vshrl.u32 %v886, 7
    %v888 = vsub.s32 %v885, %v887
    %v889 = vrot.slane %v861, %v888
    %v890 = vcombine.high %v868, %v868
    %v891 = vcombine.high %v882, %v882
    %v892 = vcombine.high %v842, %v842
    %v894 = vunpack.c.l.s4 1966171168
    %v895 = vunpack.c.0.s8 %v894
    %v896 = vlaneseq
    %v897 = vshrl.u32 %v896, 7
    %v898 = vsub.s32 %v895, %v897
    %v899 = vrot.slane %v842, %v898
    %v901 = vunpack.c.l.s4 1966171168
    %v902 = vunpack.c.0.s8 %v901
    %v903 = vlaneseq
    %v904 = vshrl.u32 %v903, 7
    %v905 = vsub.s32 %v902, %v904
    %v906 = vrot.slane %v892, %v905
    %v907 = vcombine.high %v899, %v899
    %v908 = vcombine.high %v906, %v906
    %v910 = vunpack.c.l.s4 1966171168
    %v911 = vunpack.c.0.s8 %v910
    %v912 = vlaneseq
    %v913 = vshrl.u32 %v912, 7
    %v914 = vsub.s32 %v911, %v913
    %v915 = vrot.slane %v899, %v914
    %v917 = vunpack.c.l.s4 1966171168
    %v918 = vunpack.c.0.s8 %v917
    %v919 = vlaneseq
    %v920 = vshrl.u32 %v919, 7
    %v921 = vsub.s32 %v918, %v920
    %v922 = vrot.slane %v906, %v921
    %v924 = vunpack.c.l.s4 1966171168
    %v925 = vunpack.c.0.s8 %v924
    %v926 = vlaneseq
    %v927 = vshrl.u32 %v926, 7
    %v928 = vsub.s32 %v925, %v927
    %v929 = vrot.slane %v907, %v928
    %v931 = vunpack.c.l.s4 1966171168
    %v932 = vunpack.c.0.s8 %v931
    %v933 = vlaneseq
    %v934 = vshrl.u32 %v933, 7
    %v935 = vsub.s32 %v932, %v934
    %v936 = vrot.slane %v908, %v935
    %v937 = vcombine.high %v915, %v915
    %v938 = vcombine.high %v929, %v929
    %vm939 = vsmask.f32 1284
    %vm940 = vmor %vm205, %vm939
    %vm941 = vsmask.f32 2312
    %vm942 = vmor %vm940, %vm941
    %vm943 = vsmask.f32 3340
    %vm944 = vmor %vm942, %vm943
    %vm945 = vsmask.f32 4368
    %vm946 = vmor %vm944, %vm945
    %vm947 = vsmask.f32 5396
    %vm948 = vmor %vm946, %vm947
    %vm949 = vsmask.f32 6424
    %vm950 = vmor %vm948, %vm949
    %vm951 = vsmask.f32 7452
    %vm952 = vmor %vm950, %vm951
    %v954 = vshrl.u32 %v868, 16
    %v956 = vrot.slane %v954, 7
    %v957 = vrot.slane %v956, 1
    %v959 = vshll.u32 %v882, 16
    %v961 = vsel %vm952, %v957, %v959
    %v962 = vshrl.u32 %v882, 16
    %v964 = vrot.slane %v962, 7
    %v965 = vrot.slane %v964, 1
    %v967 = vshll.u32 %v890, 16
    %v969 = vsel %vm952, %v965, %v967
    %v970 = vshrl.u32 %v890, 16
    %v972 = vrot.slane %v970, 7
    %v973 = vrot.slane %v972, 1
    %v975 = vshll.u32 %v891, 16
    %v977 = vsel %vm952, %v973, %v975
    %v978 = vshrl.u32 %v891, 16
    %v980 = vrot.slane %v978, 7
    %v981 = vrot.slane %v980, 1
    %v983 = vshll.u32 %v875, 16
    %v985 = vsel %vm952, %v981, %v983
    %v986 = vshrl.u32 %v875, 16
    %v988 = vrot.slane %v986, 7
    %v989 = vrot.slane %v988, 1
    %v991 = vshll.u32 %v889, 16
    %v993 = vsel %vm952, %v989, %v991
    %v995 = vshrl.u32 %v915, 16
    %v997 = vrot.slane %v995, 7
    %v998 = vrot.slane %v997, 1
    %v1000 = vshll.u32 %v929, 16
    %v1002 = vsel %vm952, %v998, %v1000
    %v1003 = vshrl.u32 %v929, 16
    %v1005 = vrot.slane %v1003, 7
    %v1006 = vrot.slane %v1005, 1
    %v1008 = vshll.u32 %v937, 16
    %v1010 = vsel %vm952, %v1006, %v1008
    %v1011 = vshrl.u32 %v937, 16
    %v1013 = vrot.slane %v1011, 7
    %v1014 = vrot.slane %v1013, 1
    %v1016 = vshll.u32 %v938, 16
    %v1018 = vsel %vm952, %v1014, %v1016
    %v1019 = vshrl.u32 %v938, 16
    %v1021 = vrot.slane %v1019, 7
    %v1022 = vrot.slane %v1021, 1
    %v1024 = vshll.u32 %v922, 16
    %v1026 = vsel %vm952, %v1022, %v1024
    %v1027 = vshrl.u32 %v922, 16
    %v1029 = vrot.slane %v1027, 7
    %v1030 = vrot.slane %v1029, 1
    %v1032 = vshll.u32 %v936, 16
    %v1034 = vsel %vm952, %v1030, %v1032
    %v1035 = vcombine.low %v961, %v969
    %v1036 = vcombine.low %v977, %v985
    %v1037 = vcombine.low %v993, %v1002
    %v1038 = vcombine.low %v1010, %v1018
    %v1040 = vunpack.c.l.s4 1966171168
    %v1041 = vunpack.c.0.s8 %v1040
    %v1042 = vlaneseq
    %v1043 = vshrl.u32 %v1042, 7
    %v1044 = vsub.s32 %v1041, %v1043
    %v1045 = vrot.slane %v1035, %v1044
    %v1047 = vunpack.c.l.s4 1966171168
    %v1048 = vunpack.c.0.s8 %v1047
    %v1049 = vlaneseq
    %v1050 = vshrl.u32 %v1049, 7
    %v1051 = vsub.s32 %v1048, %v1050
    %v1052 = vrot.slane %v1036, %v1051
    %v1054 = vunpack.c.l.s4 1966171168
    %v1055 = vunpack.c.0.s8 %v1054
    %v1056 = vlaneseq
    %v1057 = vshrl.u32 %v1056, 7
    %v1058 = vsub.s32 %v1055, %v1057
    %v1059 = vrot.slane %v1037, %v1058
    %v1061 = vunpack.c.l.s4 1966171168
    %v1062 = vunpack.c.0.s8 %v1061
    %v1063 = vlaneseq
    %v1064 = vshrl.u32 %v1063, 7
    %v1065 = vsub.s32 %v1062, %v1064
    %v1066 = vrot.slane %v1038, %v1065
    %v1067 = vcombine.low %v1045, %v1052
    %v1068 = vcombine.low %v1059, %v1066
    %v1070 = vunpack.c.l.s4 1966171168
    %v1071 = vunpack.c.0.s8 %v1070
    %v1072 = vlaneseq
    %v1073 = vshrl.u32 %v1072, 7
    %v1074 = vsub.s32 %v1071, %v1073
    %v1075 = vrot.slane %v1067, %v1074
    %v1077 = vunpack.c.l.s4 1966171168
    %v1078 = vunpack.c.0.s8 %v1077
    %v1079 = vlaneseq
    %v1080 = vshrl.u32 %v1079, 7
    %v1081 = vsub.s32 %v1078, %v1080
    %v1082 = vrot.slane %v1068, %v1081
    %v1083 = vcombine.low %v1075, %v1082
    %v1084 = vcombine.low %v1026, %v1034
    %v1086 = vunpack.c.l.s4 1966171168
    %v1087 = vunpack.c.0.s8 %v1086
    %v1088 = vlaneseq
    %v1089 = vshrl.u32 %v1088, 7
    %v1090 = vsub.s32 %v1087, %v1089
    %v1091 = vrot.slane %v1084, %v1090
    %v1093 = vunpack.c.l.s4 1966171168
    %v1094 = vunpack.c.0.s8 %v1093
    %v1095 = vlaneseq
    %v1096 = vshrl.u32 %v1095, 7
    %v1097 = vsub.s32 %v1094, %v1096
    %v1098 = vrot.slane %v1091, %v1097
    %v1101 = vunpack.c.l.b16 %v730
    %v1102 = vunpack.c.l.b16 %v731
    %v1103 = vpack.c.b16 %v1102, %v1101
    %v1106 = vsel %vm232, %v1083, 0
    %v1109 = vsel %vm232, %v1098, 0
    %1111 = vmatprep.subr.bf16.mxu0 0
    %1112 = vmatpush1.bf16.msra.mxu0 0
    %1113 = vmatprep.subr.bf16.mxu0 0
    %1114 = vmatpush1.bf16.msra.mxu0 0
    %1115 = vmatprep.subr.bf16.mxu0 0
    %1116 = vmatpush1.bf16.msra.mxu0 0
    %1117 = vmatprep.subr.bf16.mxu0 0
    %1118 = vmatpush1.bf16.msra.mxu0 0
    %1119 = vmatprep.subr.bf16.mxu0 0
    %1120 = vmatpush1.bf16.msra.mxu0 0
    %1121 = vmatprep.subr.bf16.mxu0 0
    %1122 = vmatpush1.bf16.msra.mxu0 0
    %1123 = vmatprep.subr.bf16.mxu0 0
    %1124 = vmatpush1.bf16.msra.mxu0 0
    %1125 = vmatprep.subr.bf16.mxu0 0
    %1126 = vmatpush1.bf16.msra.mxu0 %v1103
    %1127 = vmatprep.subr.bf16.mxu0 0
    %1128 = vmatpush2.bf16.msra.mxu0 0
    %1129 = vmatprep.subr.bf16.mxu0 0
    %1130 = vmatpush2.bf16.msra.mxu0 0
    %1131 = vmatprep.subr.bf16.mxu0 0
    %1132 = vmatpush2.bf16.msra.mxu0 0
    %1133 = vmatprep.subr.bf16.mxu0 0
    %1134 = vmatpush2.bf16.msra.mxu0 0
    %1135 = vmatprep.subr.bf16.mxu0 0
    %1136 = vmatpush2.bf16.msra.mxu0 0
    %1137 = vmatprep.subr.bf16.mxu0 0
    %1138 = vmatpush2.bf16.msra.mxu0 0
    %1139 = vmatprep.subr.bf16.mxu0 0
    %1140 = vmatpush2.bf16.msra.mxu0 0
    %1141 = vmatprep.subr.bf16.mxu0 0
    %1142 = vmatpush2.bf16.msra.mxu0 0
    %1143 = vmatprep.mubr.bf16.mxu0 0
    %1144 = vmatmul.mubr.bf16.gmra.mxu0 %v1106
    %v1145 = vpop.f32.mrf.mxu0
    %v1146 = vadd.f32 0.0, %v1145
    %v1147 = vpop.f32.mrf.mxu0
    %v1148 = vpop.f32.mrf.mxu0
    %v1149 = vadd.f32 0.0, %v1148
    %v1150 = vpop.f32.mrf.mxu0
    %1151 = vmatprep.mubr.bf16.mxu0 0
    %1152 = vmatmul.mubr.bf16.gmra.mxu0 %v1109
    %v1153 = vpop.f32.mrf.mxu0
    %v1154 = vadd.f32 0.0, %v1153
    %v1155 = vpop.f32.mrf.mxu0
    %v1156 = vpop.f32.mrf.mxu0
    %v1157 = vpop.f32.mrf.mxu0
    %1158 = vdwg.mxu0
    %v1161 = vcombine.high %v796, %v796
    %v1163 = vunpack.c.l.s4 1966171168
    %v1164 = vunpack.c.0.s8 %v1163
    %v1165 = vlaneseq
    %v1166 = vshrl.u32 %v1165, 7
    %v1167 = vsub.s32 %v1164, %v1166
    %v1168 = vrot.slane %v796, %v1167
    %v1170 = vunpack.c.l.s4 1966171168
    %v1171 = vunpack.c.0.s8 %v1170
    %v1172 = vlaneseq
    %v1173 = vshrl.u32 %v1172, 7
    %v1174 = vsub.s32 %v1171, %v1173
    %v1175 = vrot.slane %v1161, %v1174
    %v1176 = vcombine.high %v1168, %v1168
    %v1178 = vunpack.c.l.s4 1966171168
    %v1179 = vunpack.c.0.s8 %v1178
    %v1180 = vlaneseq
    %v1181 = vshrl.u32 %v1180, 7
    %v1182 = vsub.s32 %v1179, %v1181
    %v1183 = vrot.slane %v1168, %v1182
    %v1185 = vunpack.c.l.s4 1966171168
    %v1186 = vunpack.c.0.s8 %v1185
    %v1187 = vlaneseq
    %v1188 = vshrl.u32 %v1187, 7
    %v1189 = vsub.s32 %v1186, %v1188
    %v1190 = vrot.slane %v1175, %v1189
    %v1192 = vunpack.c.l.s4 1966171168
    %v1193 = vunpack.c.0.s8 %v1192
    %v1194 = vlaneseq
    %v1195 = vshrl.u32 %v1194, 7
    %v1196 = vsub.s32 %v1193, %v1195
    %v1197 = vrot.slane %v1176, %v1196
    %v1198 = vcombine.high %v1183, %v1183
    %v1199 = vcombine.high %v1197, %v1197
    %v1200 = vcombine.high %v797, %v797
    %v1202 = vunpack.c.l.s4 1966171168
    %v1203 = vunpack.c.0.s8 %v1202
    %v1204 = vlaneseq
    %v1205 = vshrl.u32 %v1204, 7
    %v1206 = vsub.s32 %v1203, %v1205
    %v1207 = vrot.slane %v797, %v1206
    %v1209 = vunpack.c.l.s4 1966171168
    %v1210 = vunpack.c.0.s8 %v1209
    %v1211 = vlaneseq
    %v1212 = vshrl.u32 %v1211, 7
    %v1213 = vsub.s32 %v1210, %v1212
    %v1214 = vrot.slane %v1200, %v1213
    %v1215 = vcombine.high %v1207, %v1207
    %v1217 = vunpack.c.l.s4 1966171168
    %v1218 = vunpack.c.0.s8 %v1217
    %v1219 = vlaneseq
    %v1220 = vshrl.u32 %v1219, 7
    %v1221 = vsub.s32 %v1218, %v1220
    %v1222 = vrot.slane %v1207, %v1221
    %v1224 = vunpack.c.l.s4 1966171168
    %v1225 = vunpack.c.0.s8 %v1224
    %v1226 = vlaneseq
    %v1227 = vshrl.u32 %v1226, 7
    %v1228 = vsub.s32 %v1225, %v1227
    %v1229 = vrot.slane %v1214, %v1228
    %v1231 = vunpack.c.l.s4 1966171168
    %v1232 = vunpack.c.0.s8 %v1231
    %v1233 = vlaneseq
    %v1234 = vshrl.u32 %v1233, 7
    %v1235 = vsub.s32 %v1232, %v1234
    %v1236 = vrot.slane %v1215, %v1235
    %v1237 = vcombine.high %v1222, %v1222
    %v1238 = vcombine.high %v1236, %v1236
    %v1239 = vunpack.i.l.s16 %v1183
    %v1240 = vunpack.i.h.s16 %v1183
    %v1241 = vunpack.i.l.s16 %v1197
    %v1242 = vunpack.i.h.s16 %v1197
    %v1243 = vunpack.i.l.s16 %v1198
    %v1244 = vunpack.i.h.s16 %v1198
    %v1245 = vunpack.i.l.s16 %v1199
    %v1246 = vunpack.i.h.s16 %v1199
    %v1247 = vunpack.i.l.s16 %v1190
    %v1248 = vunpack.i.l.s16 %v1222
    %v1249 = vunpack.i.h.s16 %v1222
    %v1250 = vunpack.i.l.s16 %v1236
    %v1251 = vunpack.i.h.s16 %v1236
    %v1252 = vunpack.i.l.s16 %v1237
    %v1253 = vunpack.i.h.s16 %v1237
    %v1254 = vunpack.i.l.s16 %v1238
    %v1255 = vunpack.i.h.s16 %v1238
    %v1256 = vunpack.i.l.s16 %v1229
    %v1257 = vpack.i.b16 %v1240, %v1239
    %v1258 = vpack.i.b16 %v1242, %v1241
    %v1259 = vpack.i.b16 %v1244, %v1243
    %v1260 = vpack.i.b16 %v1246, %v1245
    %v1261 = vpack.i.b16 %v1248, %v1247
    %v1262 = vpack.i.b16 %v1250, %v1249
    %v1263 = vpack.i.b16 %v1252, %v1251
    %v1264 = vpack.i.b16 %v1254, %v1253
    %v1265 = vpack.i.b16 %v1256, %v1255
    %v1266 = vcombine.low %v1257, %v1258
    %v1267 = vcombine.low %v1259, %v1260
    %v1268 = vcombine.low %v1261, %v1262
    %v1269 = vcombine.low %v1263, %v1264
    %v1271 = vunpack.c.l.s4 1966171168
    %v1272 = vunpack.c.0.s8 %v1271
    %v1273 = vlaneseq
    %v1274 = vshrl.u32 %v1273, 7
    %v1275 = vsub.s32 %v1272, %v1274
    %v1276 = vrot.slane %v1266, %v1275
    %v1278 = vunpack.c.l.s4 1966171168
    %v1279 = vunpack.c.0.s8 %v1278
    %v1280 = vlaneseq
    %v1281 = vshrl.u32 %v1280, 7
    %v1282 = vsub.s32 %v1279, %v1281
    %v1283 = vrot.slane %v1267, %v1282
    %v1285 = vunpack.c.l.s4 1966171168
    %v1286 = vunpack.c.0.s8 %v1285
    %v1287 = vlaneseq
    %v1288 = vshrl.u32 %v1287, 7
    %v1289 = vsub.s32 %v1286, %v1288
    %v1290 = vrot.slane %v1268, %v1289
    %v1292 = vunpack.c.l.s4 1966171168
    %v1293 = vunpack.c.0.s8 %v1292
    %v1294 = vlaneseq
    %v1295 = vshrl.u32 %v1294, 7
    %v1296 = vsub.s32 %v1293, %v1295
    %v1297 = vrot.slane %v1269, %v1296
    %v1298 = vcombine.low %v1276, %v1283
    %v1299 = vcombine.low %v1290, %v1297
    %v1301 = vunpack.c.l.s4 1966171168
    %v1302 = vunpack.c.0.s8 %v1301
    %v1303 = vlaneseq
    %v1304 = vshrl.u32 %v1303, 7
    %v1305 = vsub.s32 %v1302, %v1304
    %v1306 = vrot.slane %v1298, %v1305
    %v1308 = vunpack.c.l.s4 1966171168
    %v1309 = vunpack.c.0.s8 %v1308
    %v1310 = vlaneseq
    %v1311 = vshrl.u32 %v1310, 7
    %v1312 = vsub.s32 %v1309, %v1311
    %v1313 = vrot.slane %v1299, %v1312
    %v1314 = vcombine.low %v1306, %v1313
    %v1316 = vunpack.c.l.s4 1966171168
    %v1317 = vunpack.c.0.s8 %v1316
    %v1318 = vlaneseq
    %v1319 = vshrl.u32 %v1318, 7
    %v1320 = vsub.s32 %v1317, %v1319
    %v1321 = vrot.slane %v1265, %v1320
    %v1323 = vunpack.c.l.s4 1966171168
    %v1324 = vunpack.c.0.s8 %v1323
    %v1325 = vlaneseq
    %v1326 = vshrl.u32 %v1325, 7
    %v1327 = vsub.s32 %v1324, %v1326
    %v1328 = vrot.slane %v1321, %v1327
    %v1330 = vsel %vm838, %v1314, 0
    %v1333 = vsel %vm838, %v1328, 0
    %v1336 = vsel %vm457, %v732, 0
    %1338 = vmatprep.subr.bf16.mxu0 0
    %1339 = vmatpush1.bf16.msra.mxu0 0
    %1340 = vmatprep.subr.bf16.mxu0 0
    %1341 = vmatpush1.bf16.msra.mxu0 0
    %1342 = vmatprep.subr.bf16.mxu0 0
    %1343 = vmatpush1.bf16.msra.mxu0 0
    %1344 = vmatprep.subr.bf16.mxu0 0
    %1345 = vmatpush1.bf16.msra.mxu0 0
    %1346 = vmatprep.subr.bf16.mxu0 0
    %1347 = vmatpush1.bf16.msra.mxu0 0
    %1348 = vmatprep.subr.bf16.mxu0 0
    %1349 = vmatpush1.bf16.msra.mxu0 0
    %1350 = vmatprep.subr.bf16.mxu0 0
    %1351 = vmatpush1.bf16.msra.mxu0 0
    %1352 = vmatprep.subr.bf16.mxu0 0
    %1353 = vmatpush1.bf16.msra.mxu0 %v1336
    %1354 = vmatprep.subr.bf16.mxu0 0
    %1355 = vmatpush2.bf16.msra.mxu0 0
    %1356 = vmatprep.subr.bf16.mxu0 0
    %1357 = vmatpush2.bf16.msra.mxu0 0
    %1358 = vmatprep.subr.bf16.mxu0 0
    %1359 = vmatpush2.bf16.msra.mxu0 0
    %1360 = vmatprep.subr.bf16.mxu0 0
    %1361 = vmatpush2.bf16.msra.mxu0 0
    %1362 = vmatprep.subr.bf16.mxu0 0
    %1363 = vmatpush2.bf16.msra.mxu0 0
    %1364 = vmatprep.subr.bf16.mxu0 0
    %1365 = vmatpush2.bf16.msra.mxu0 0
    %1366 = vmatprep.subr.bf16.mxu0 0
    %1367 = vmatpush2.bf16.msra.mxu0 0
    %1368 = vmatprep.subr.bf16.mxu0 0
    %1369 = vmatpush2.bf16.msra.mxu0 0
    %1370 = vmatprep.mubr.bf16.mxu0 0
    %1371 = vmatmul.mubr.bf16.gmra.mxu0 %v1330
    %v1372 = vpop.f32.mrf.mxu0
    %v1373 = vadd.f32 0.0, %v1372
    %v1374 = vpop.f32.mrf.mxu0
    %v1375 = vpop.f32.mrf.mxu0
    %v1376 = vadd.f32 0.0, %v1375
    %v1377 = vpop.f32.mrf.mxu0
    %1378 = vmatprep.mubr.bf16.mxu0 0
    %1379 = vmatmul.mubr.bf16.gmra.mxu0 %v1333
    %v1380 = vpop.f32.mrf.mxu0
    %v1381 = vadd.f32 0.0, %v1380
    %v1382 = vpop.f32.mrf.mxu0
    %v1383 = vpop.f32.mrf.mxu0
    %v1384 = vpop.f32.mrf.mxu0
    %1385 = vdwg.mxu0
    %v1389 = vcombine.high %v1373, %v1373
    %v1391 = vunpack.c.l.s4 1966171168
    %v1392 = vunpack.c.0.s8 %v1391
    %v1393 = vlaneseq
    %v1394 = vshrl.u32 %v1393, 7
    %v1395 = vsub.s32 %v1392, %v1394
    %v1396 = vrot.slane %v1373, %v1395
    %v1398 = vunpack.c.l.s4 1966171168
    %v1399 = vunpack.c.0.s8 %v1398
    %v1400 = vlaneseq
    %v1401 = vshrl.u32 %v1400, 7
    %v1402 = vsub.s32 %v1399, %v1401
    %v1403 = vrot.slane %v1389, %v1402
    %v1404 = vcombine.high %v1396, %v1396
    %v1405 = vcombine.high %v1403, %v1403
    %v1407 = vunpack.c.l.s4 1966171168
    %v1408 = vunpack.c.0.s8 %v1407
    %v1409 = vlaneseq
    %v1410 = vshrl.u32 %v1409, 7
    %v1411 = vsub.s32 %v1408, %v1410
    %v1412 = vrot.slane %v1396, %v1411
    %v1414 = vunpack.c.l.s4 1966171168
    %v1415 = vunpack.c.0.s8 %v1414
    %v1416 = vlaneseq
    %v1417 = vshrl.u32 %v1416, 7
    %v1418 = vsub.s32 %v1415, %v1417
    %v1419 = vrot.slane %v1403, %v1418
    %v1421 = vunpack.c.l.s4 1966171168
    %v1422 = vunpack.c.0.s8 %v1421
    %v1423 = vlaneseq
    %v1424 = vshrl.u32 %v1423, 7
    %v1425 = vsub.s32 %v1422, %v1424
    %v1426 = vrot.slane %v1404, %v1425
    %v1428 = vunpack.c.l.s4 1966171168
    %v1429 = vunpack.c.0.s8 %v1428
    %v1430 = vlaneseq
    %v1431 = vshrl.u32 %v1430, 7
    %v1432 = vsub.s32 %v1429, %v1431
    %v1433 = vrot.slane %v1405, %v1432
    %v1434 = vcombine.high %v1412, %v1412
    %v1435 = vcombine.high %v1419, %v1419
    %v1436 = vcombine.high %v1426, %v1426
    %v1437 = vcombine.high %v1433, %v1433
    %v1438 = vcombine.high %v1376, %v1376
    %v1440 = vunpack.c.l.s4 1966171168
    %v1441 = vunpack.c.0.s8 %v1440
    %v1442 = vlaneseq
    %v1443 = vshrl.u32 %v1442, 7
    %v1444 = vsub.s32 %v1441, %v1443
    %v1445 = vrot.slane %v1376, %v1444
    %v1447 = vunpack.c.l.s4 1966171168
    %v1448 = vunpack.c.0.s8 %v1447
    %v1449 = vlaneseq
    %v1450 = vshrl.u32 %v1449, 7
    %v1451 = vsub.s32 %v1448, %v1450
    %v1452 = vrot.slane %v1438, %v1451
    %v1453 = vcombine.high %v1445, %v1445
    %v1454 = vcombine.high %v1452, %v1452
    %v1456 = vunpack.c.l.s4 1966171168
    %v1457 = vunpack.c.0.s8 %v1456
    %v1458 = vlaneseq
    %v1459 = vshrl.u32 %v1458, 7
    %v1460 = vsub.s32 %v1457, %v1459
    %v1461 = vrot.slane %v1445, %v1460
    %v1463 = vunpack.c.l.s4 1966171168
    %v1464 = vunpack.c.0.s8 %v1463
    %v1465 = vlaneseq
    %v1466 = vshrl.u32 %v1465, 7
    %v1467 = vsub.s32 %v1464, %v1466
    %v1468 = vrot.slane %v1452, %v1467
    %v1470 = vunpack.c.l.s4 1966171168
    %v1471 = vunpack.c.0.s8 %v1470
    %v1472 = vlaneseq
    %v1473 = vshrl.u32 %v1472, 7
    %v1474 = vsub.s32 %v1471, %v1473
    %v1475 = vrot.slane %v1453, %v1474
    %v1477 = vunpack.c.l.s4 1966171168
    %v1478 = vunpack.c.0.s8 %v1477
    %v1479 = vlaneseq
    %v1480 = vshrl.u32 %v1479, 7
    %v1481 = vsub.s32 %v1478, %v1480
    %v1482 = vrot.slane %v1454, %v1481
    %v1483 = vcombine.high %v1461, %v1461
    %v1484 = vcombine.high %v1468, %v1468
    %v1485 = vcombine.high %v1475, %v1475
    %v1486 = vcombine.high %v1482, %v1482
    %v1488 = vunpack.c.l.s4 1966171168
    %v1489 = vunpack.c.0.s8 %v1488
    %v1490 = vlaneseq
    %v1491 = vshrl.u32 %v1490, 7
    %v1492 = vsub.s32 %v1489, %v1491
    %v1493 = vrot.slane %v1381, %v1492
    %v1494 = vcombine.high %v1493, %v1493
    %v1496 = vunpack.c.l.s4 1966171168
    %v1497 = vunpack.c.0.s8 %v1496
    %v1498 = vlaneseq
    %v1499 = vshrl.u32 %v1498, 7
    %v1500 = vsub.s32 %v1497, %v1499
    %v1501 = vrot.slane %v1493, %v1500
    %v1503 = vunpack.c.l.s4 1966171168
    %v1504 = vunpack.c.0.s8 %v1503
    %v1505 = vlaneseq
    %v1506 = vshrl.u32 %v1505, 7
    %v1507 = vsub.s32 %v1504, %v1506
    %v1508 = vrot.slane %v1494, %v1507
    %v1509 = vcombine.low %v1412, %v1426
    %v1510 = vcombine.low %v1434, %v1436
    %v1511 = vcombine.low %v1419, %v1433
    %v1512 = vcombine.low %v1435, %v1437
    %v1514 = vunpack.c.l.s4 1966171168
    %v1515 = vunpack.c.0.s8 %v1514
    %v1516 = vlaneseq
    %v1517 = vshrl.u32 %v1516, 7
    %v1518 = vsub.s32 %v1515, %v1517
    %v1519 = vrot.slane %v1509, %v1518
    %v1521 = vunpack.c.l.s4 1966171168
    %v1522 = vunpack.c.0.s8 %v1521
    %v1523 = vlaneseq
    %v1524 = vshrl.u32 %v1523, 7
    %v1525 = vsub.s32 %v1522, %v1524
    %v1526 = vrot.slane %v1510, %v1525
    %v1528 = vunpack.c.l.s4 1966171168
    %v1529 = vunpack.c.0.s8 %v1528
    %v1530 = vlaneseq
    %v1531 = vshrl.u32 %v1530, 7
    %v1532 = vsub.s32 %v1529, %v1531
    %v1533 = vrot.slane %v1511, %v1532
    %v1535 = vunpack.c.l.s4 1966171168
    %v1536 = vunpack.c.0.s8 %v1535
    %v1537 = vlaneseq
    %v1538 = vshrl.u32 %v1537, 7
    %v1539 = vsub.s32 %v1536, %v1538
    %v1540 = vrot.slane %v1512, %v1539
    %v1541 = vcombine.low %v1519, %v1526
    %v1542 = vcombine.low %v1533, %v1540
    %v1544 = vunpack.c.l.s4 1966171168
    %v1545 = vunpack.c.0.s8 %v1544
    %v1546 = vlaneseq
    %v1547 = vshrl.u32 %v1546, 7
    %v1548 = vsub.s32 %v1545, %v1547
    %v1549 = vrot.slane %v1541, %v1548
    %v1551 = vunpack.c.l.s4 1966171168
    %v1552 = vunpack.c.0.s8 %v1551
    %v1553 = vlaneseq
    %v1554 = vshrl.u32 %v1553, 7
    %v1555 = vsub.s32 %v1552, %v1554
    %v1556 = vrot.slane %v1542, %v1555
    %v1557 = vcombine.low %v1549, %v1556
    %v1559 = vunpack.c.l.s4 1966171168
    %v1560 = vunpack.c.0.s8 %v1559
    %v1561 = vlaneseq
    %v1562 = vshrl.u32 %v1561, 7
    %v1563 = vsub.s32 %v1560, %v1562
    %v1564 = vrot.slane %v1461, %v1563
    %v1566 = vunpack.c.l.s4 1966171168
    %v1567 = vunpack.c.0.s8 %v1566
    %v1568 = vlaneseq
    %v1569 = vshrl.u32 %v1568, 7
    %v1570 = vsub.s32 %v1567, %v1569
    %v1571 = vrot.slane %v1564, %v1570
    %v1572 = vcombine.low %v1475, %v1483
    %v1573 = vcombine.low %v1485, %v1468
    %v1574 = vcombine.low %v1482, %v1484
    %v1575 = vcombine.low %v1486, %v1501
    %v1577 = vunpack.c.l.s4 1966171168
    %v1578 = vunpack.c.0.s8 %v1577
    %v1579 = vlaneseq
    %v1580 = vshrl.u32 %v1579, 7
    %v1581 = vsub.s32 %v1578, %v1580
    %v1582 = vrot.slane %v1572, %v1581
    %v1584 = vunpack.c.l.s4 1966171168
    %v1585 = vunpack.c.0.s8 %v1584
    %v1586 = vlaneseq
    %v1587 = vshrl.u32 %v1586, 7
    %v1588 = vsub.s32 %v1585, %v1587
    %v1589 = vrot.slane %v1573, %v1588
    %v1591 = vunpack.c.l.s4 1966171168
    %v1592 = vunpack.c.0.s8 %v1591
    %v1593 = vlaneseq
    %v1594 = vshrl.u32 %v1593, 7
    %v1595 = vsub.s32 %v1592, %v1594
    %v1596 = vrot.slane %v1574, %v1595
    %v1598 = vunpack.c.l.s4 1966171168
    %v1599 = vunpack.c.0.s8 %v1598
    %v1600 = vlaneseq
    %v1601 = vshrl.u32 %v1600, 7
    %v1602 = vsub.s32 %v1599, %v1601
    %v1603 = vrot.slane %v1575, %v1602
    %v1604 = vcombine.low %v1582, %v1589
    %v1605 = vcombine.low %v1596, %v1603
    %v1607 = vunpack.c.l.s4 1966171168
    %v1608 = vunpack.c.0.s8 %v1607
    %v1609 = vlaneseq
    %v1610 = vshrl.u32 %v1609, 7
    %v1611 = vsub.s32 %v1608, %v1610
    %v1612 = vrot.slane %v1604, %v1611
    %v1614 = vunpack.c.l.s4 1966171168
    %v1615 = vunpack.c.0.s8 %v1614
    %v1616 = vlaneseq
    %v1617 = vshrl.u32 %v1616, 7
    %v1618 = vsub.s32 %v1615, %v1617
    %v1619 = vrot.slane %v1605, %v1618
    %v1620 = vcombine.low %v1612, %v1619
    %v1622 = vunpack.c.l.s4 1966171168
    %v1623 = vunpack.c.0.s8 %v1622
    %v1624 = vlaneseq
    %v1625 = vshrl.u32 %v1624, 7
    %v1626 = vsub.s32 %v1623, %v1625
    %v1627 = vrot.slane %v1508, %v1626
    %v1629 = vunpack.c.l.s4 1966171168
    %v1630 = vunpack.c.0.s8 %v1629
    %v1631 = vlaneseq
    %v1632 = vshrl.u32 %v1631, 7
    %v1633 = vsub.s32 %v1630, %v1632
    %v1634 = vrot.slane %v1627, %v1633
    %v1637 = vsel %vm673, %v1571, 0.0
    %v1638 = vsel %vm673, %v1634, 0.0
    %v1642 = vcombine.high %v1146, %v1146
    %v1644 = vunpack.c.l.s4 1966171168
    %v1645 = vunpack.c.0.s8 %v1644
    %v1646 = vlaneseq
    %v1647 = vshrl.u32 %v1646, 7
    %v1648 = vsub.s32 %v1645, %v1647
    %v1649 = vrot.slane %v1146, %v1648
    %v1651 = vunpack.c.l.s4 1966171168
    %v1652 = vunpack.c.0.s8 %v1651
    %v1653 = vlaneseq
    %v1654 = vshrl.u32 %v1653, 7
    %v1655 = vsub.s32 %v1652, %v1654
    %v1656 = vrot.slane %v1642, %v1655
    %v1657 = vcombine.high %v1649, %v1649
    %v1658 = vcombine.high %v1656, %v1656
    %v1660 = vunpack.c.l.s4 1966171168
    %v1661 = vunpack.c.0.s8 %v1660
    %v1662 = vlaneseq
    %v1663 = vshrl.u32 %v1662, 7
    %v1664 = vsub.s32 %v1661, %v1663
    %v1665 = vrot.slane %v1649, %v1664
    %v1667 = vunpack.c.l.s4 1966171168
    %v1668 = vunpack.c.0.s8 %v1667
    %v1669 = vlaneseq
    %v1670 = vshrl.u32 %v1669, 7
    %v1671 = vsub.s32 %v1668, %v1670
    %v1672 = vrot.slane %v1656, %v1671
    %v1674 = vunpack.c.l.s4 1966171168
    %v1675 = vunpack.c.0.s8 %v1674
    %v1676 = vlaneseq
    %v1677 = vshrl.u32 %v1676, 7
    %v1678 = vsub.s32 %v1675, %v1677
    %v1679 = vrot.slane %v1657, %v1678
    %v1681 = vunpack.c.l.s4 1966171168
    %v1682 = vunpack.c.0.s8 %v1681
    %v1683 = vlaneseq
    %v1684 = vshrl.u32 %v1683, 7
    %v1685 = vsub.s32 %v1682, %v1684
    %v1686 = vrot.slane %v1658, %v1685
    %v1687 = vcombine.high %v1665, %v1665
    %v1688 = vcombine.high %v1672, %v1672
    %v1689 = vcombine.high %v1679, %v1679
    %v1690 = vcombine.high %v1686, %v1686
    %v1691 = vcombine.high %v1149, %v1149
    %v1693 = vunpack.c.l.s4 1966171168
    %v1694 = vunpack.c.0.s8 %v1693
    %v1695 = vlaneseq
    %v1696 = vshrl.u32 %v1695, 7
    %v1697 = vsub.s32 %v1694, %v1696
    %v1698 = vrot.slane %v1149, %v1697
    %v1700 = vunpack.c.l.s4 1966171168
    %v1701 = vunpack.c.0.s8 %v1700
    %v1702 = vlaneseq
    %v1703 = vshrl.u32 %v1702, 7
    %v1704 = vsub.s32 %v1701, %v1703
    %v1705 = vrot.slane %v1691, %v1704
    %v1706 = vcombine.high %v1698, %v1698
    %v1707 = vcombine.high %v1705, %v1705
    %v1709 = vunpack.c.l.s4 1966171168
    %v1710 = vunpack.c.0.s8 %v1709
    %v1711 = vlaneseq
    %v1712 = vshrl.u32 %v1711, 7
    %v1713 = vsub.s32 %v1710, %v1712
    %v1714 = vrot.slane %v1698, %v1713
    %v1716 = vunpack.c.l.s4 1966171168
    %v1717 = vunpack.c.0.s8 %v1716
    %v1718 = vlaneseq
    %v1719 = vshrl.u32 %v1718, 7
    %v1720 = vsub.s32 %v1717, %v1719
    %v1721 = vrot.slane %v1705, %v1720
    %v1723 = vunpack.c.l.s4 1966171168
    %v1724 = vunpack.c.0.s8 %v1723
    %v1725 = vlaneseq
    %v1726 = vshrl.u32 %v1725, 7
    %v1727 = vsub.s32 %v1724, %v1726
    %v1728 = vrot.slane %v1706, %v1727
    %v1730 = vunpack.c.l.s4 1966171168
    %v1731 = vunpack.c.0.s8 %v1730
    %v1732 = vlaneseq
    %v1733 = vshrl.u32 %v1732, 7
    %v1734 = vsub.s32 %v1731, %v1733
    %v1735 = vrot.slane %v1707, %v1734
    %v1736 = vcombine.high %v1721, %v1721
    %v1737 = vcombine.high %v1728, %v1728
    %v1738 = vcombine.high %v1735, %v1735
    %v1740 = vunpack.c.l.s4 1966171168
    %v1741 = vunpack.c.0.s8 %v1740
    %v1742 = vlaneseq
    %v1743 = vshrl.u32 %v1742, 7
    %v1744 = vsub.s32 %v1741, %v1743
    %v1745 = vrot.slane %v1154, %v1744
    %v1746 = vcombine.high %v1745, %v1745
    %v1748 = vunpack.c.l.s4 1966171168
    %v1749 = vunpack.c.0.s8 %v1748
    %v1750 = vlaneseq
    %v1751 = vshrl.u32 %v1750, 7
    %v1752 = vsub.s32 %v1749, %v1751
    %v1753 = vrot.slane %v1745, %v1752
    %v1755 = vunpack.c.l.s4 1966171168
    %v1756 = vunpack.c.0.s8 %v1755
    %v1757 = vlaneseq
    %v1758 = vshrl.u32 %v1757, 7
    %v1759 = vsub.s32 %v1756, %v1758
    %v1760 = vrot.slane %v1746, %v1759
    %v1761 = vcombine.high %v1753, %v1753
    %v1780 = vcombine.high %v1557, %v1557
    %v1782 = vunpack.c.l.s4 1966171168
    %v1783 = vunpack.c.0.s8 %v1782
    %v1784 = vlaneseq
    %v1785 = vshrl.u32 %v1784, 7
    %v1786 = vsub.s32 %v1783, %v1785
    %v1787 = vrot.slane %v1557, %v1786
    %v1789 = vunpack.c.l.s4 1966171168
    %v1790 = vunpack.c.0.s8 %v1789
    %v1791 = vlaneseq
    %v1792 = vshrl.u32 %v1791, 7
    %v1793 = vsub.s32 %v1790, %v1792
    %v1794 = vrot.slane %v1780, %v1793
    %v1795 = vcombine.high %v1787, %v1787
    %v1796 = vcombine.high %v1794, %v1794
    %v1798 = vunpack.c.l.s4 1966171168
    %v1799 = vunpack.c.0.s8 %v1798
    %v1800 = vlaneseq
    %v1801 = vshrl.u32 %v1800, 7
    %v1802 = vsub.s32 %v1799, %v1801
    %v1803 = vrot.slane %v1787, %v1802
    %v1805 = vunpack.c.l.s4 1966171168
    %v1806 = vunpack.c.0.s8 %v1805
    %v1807 = vlaneseq
    %v1808 = vshrl.u32 %v1807, 7
    %v1809 = vsub.s32 %v1806, %v1808
    %v1810 = vrot.slane %v1794, %v1809
    %v1812 = vunpack.c.l.s4 1966171168
    %v1813 = vunpack.c.0.s8 %v1812
    %v1814 = vlaneseq
    %v1815 = vshrl.u32 %v1814, 7
    %v1816 = vsub.s32 %v1813, %v1815
    %v1817 = vrot.slane %v1795, %v1816
    %v1819 = vunpack.c.l.s4 1966171168
    %v1820 = vunpack.c.0.s8 %v1819
    %v1821 = vlaneseq
    %v1822 = vshrl.u32 %v1821, 7
    %v1823 = vsub.s32 %v1820, %v1822
    %v1824 = vrot.slane %v1796, %v1823
    %v1825 = vcombine.high %v1803, %v1803
    %v1826 = vcombine.high %v1810, %v1810
    %v1827 = vcombine.high %v1817, %v1817
    %v1828 = vcombine.high %v1824, %v1824
    %v1830 = vunpack.c.l.s4 1966171168
    %v1831 = vunpack.c.0.s8 %v1830
    %v1832 = vlaneseq
    %v1833 = vshrl.u32 %v1832, 7
    %v1834 = vsub.s32 %v1831, %v1833
    %v1835 = vrot.slane %v1637, %v1834
    %v1837 = vunpack.c.l.s4 1966171168
    %v1838 = vunpack.c.0.s8 %v1837
    %v1839 = vlaneseq
    %v1840 = vshrl.u32 %v1839, 7
    %v1841 = vsub.s32 %v1838, %v1840
    %v1842 = vrot.slane %v1835, %v1841
    %v1843 = vcombine.high %v1620, %v1620
    %v1845 = vunpack.c.l.s4 1966171168
    %v1846 = vunpack.c.0.s8 %v1845
    %v1847 = vlaneseq
    %v1848 = vshrl.u32 %v1847, 7
    %v1849 = vsub.s32 %v1846, %v1848
    %v1850 = vrot.slane %v1620, %v1849
    %v1852 = vunpack.c.l.s4 1966171168
    %v1853 = vunpack.c.0.s8 %v1852
    %v1854 = vlaneseq
    %v1855 = vshrl.u32 %v1854, 7
    %v1856 = vsub.s32 %v1853, %v1855
    %v1857 = vrot.slane %v1843, %v1856
    %v1858 = vcombine.high %v1850, %v1850
    %v1859 = vcombine.high %v1857, %v1857
    %v1861 = vunpack.c.l.s4 1966171168
    %v1862 = vunpack.c.0.s8 %v1861
    %v1863 = vlaneseq
    %v1864 = vshrl.u32 %v1863, 7
    %v1865 = vsub.s32 %v1862, %v1864
    %v1866 = vrot.slane %v1850, %v1865
    %v1868 = vunpack.c.l.s4 1966171168
    %v1869 = vunpack.c.0.s8 %v1868
    %v1870 = vlaneseq
    %v1871 = vshrl.u32 %v1870, 7
    %v1872 = vsub.s32 %v1869, %v1871
    %v1873 = vrot.slane %v1857, %v1872
    %v1875 = vunpack.c.l.s4 1966171168
    %v1876 = vunpack.c.0.s8 %v1875
    %v1877 = vlaneseq
    %v1878 = vshrl.u32 %v1877, 7
    %v1879 = vsub.s32 %v1876, %v1878
    %v1880 = vrot.slane %v1858, %v1879
    %v1882 = vunpack.c.l.s4 1966171168
    %v1883 = vunpack.c.0.s8 %v1882
    %v1884 = vlaneseq
    %v1885 = vshrl.u32 %v1884, 7
    %v1886 = vsub.s32 %v1883, %v1885
    %v1887 = vrot.slane %v1859, %v1886
    %v1888 = vcombine.high %v1866, %v1866
    %v1889 = vcombine.high %v1873, %v1873
    %v1890 = vcombine.high %v1880, %v1880
    %v1891 = vcombine.high %v1887, %v1887
    %v1893 = vunpack.c.l.s4 1966171168
    %v1894 = vunpack.c.0.s8 %v1893
    %v1895 = vlaneseq
    %v1896 = vshrl.u32 %v1895, 7
    %v1897 = vsub.s32 %v1894, %v1896
    %v1898 = vrot.slane %v1638, %v1897
    %v1900 = vunpack.c.l.s4 1966171168
    %v1901 = vunpack.c.0.s8 %v1900
    %v1902 = vlaneseq
    %v1903 = vshrl.u32 %v1902, 7
    %v1904 = vsub.s32 %v1901, %v1903
    %v1905 = vrot.slane %v1898, %v1904
    %v1906 = vlaneseq
    %v1907 = vshrl.u32 %v1906, 7
    %v1908 = vsub.s32 0, %v1907
    %v1909 = vrot.slane %v1817, %v1908
    %v1910 = vlaneseq
    %v1911 = vshrl.u32 %v1910, 7
    %v1912 = vsub.s32 0, %v1911
    %v1913 = vrot.slane %v1825, %v1912
    %v1914 = vlaneseq
    %v1915 = vshrl.u32 %v1914, 7
    %v1916 = vsub.s32 0, %v1915
    %v1917 = vrot.slane %v1827, %v1916
    %v1918 = vlaneseq
    %v1919 = vshrl.u32 %v1918, 7
    %v1920 = vsub.s32 0, %v1919
    %v1921 = vrot.slane %v1810, %v1920
    %v1922 = vlaneseq
    %v1923 = vshrl.u32 %v1922, 7
    %v1924 = vsub.s32 0, %v1923
    %v1925 = vrot.slane %v1824, %v1924
    %v1926 = vlaneseq
    %v1927 = vshrl.u32 %v1926, 7
    %v1928 = vsub.s32 0, %v1927
    %v1929 = vrot.slane %v1826, %v1928
    %v1930 = vlaneseq
    %v1931 = vshrl.u32 %v1930, 7
    %v1932 = vsub.s32 0, %v1931
    %v1933 = vrot.slane %v1828, %v1932
    %v1934 = vlaneseq
    %v1935 = vshrl.u32 %v1934, 7
    %v1936 = vsub.s32 0, %v1935
    %v1937 = vrot.slane %v1842, %v1936
    %v1938 = vlaneseq
    %v1939 = vshrl.u32 %v1938, 7
    %v1940 = vsub.s32 0, %v1939
    %v1941 = vrot.slane %v1880, %v1940
    %v1942 = vlaneseq
    %v1943 = vshrl.u32 %v1942, 7
    %v1944 = vsub.s32 0, %v1943
    %v1945 = vrot.slane %v1888, %v1944
    %v1946 = vlaneseq
    %v1947 = vshrl.u32 %v1946, 7
    %v1948 = vsub.s32 0, %v1947
    %v1949 = vrot.slane %v1890, %v1948
    %v1950 = vlaneseq
    %v1951 = vshrl.u32 %v1950, 7
    %v1952 = vsub.s32 0, %v1951
    %v1953 = vrot.slane %v1873, %v1952
    %v1954 = vlaneseq
    %v1955 = vshrl.u32 %v1954, 7
    %v1956 = vsub.s32 0, %v1955
    %v1957 = vrot.slane %v1887, %v1956
    %v1958 = vlaneseq
    %v1959 = vshrl.u32 %v1958, 7
    %v1960 = vsub.s32 0, %v1959
    %v1961 = vrot.slane %v1889, %v1960
    %v1962 = vlaneseq
    %v1963 = vshrl.u32 %v1962, 7
    %v1964 = vsub.s32 0, %v1963
    %v1965 = vrot.slane %v1891, %v1964
    %v1966 = vlaneseq
    %v1967 = vshrl.u32 %v1966, 7
    %v1968 = vsub.s32 0, %v1967
    %v1969 = vrot.slane %v1905, %v1968
    %v1986 = vsel %vm673, %v1679, %v1909
    %v1987 = vsel %vm673, %v1687, %v1913
    %v1988 = vsel %vm673, %v1689, %v1917
    %v1989 = vsel %vm673, %v1672, %v1921
    %v1990 = vsel %vm673, %v1686, %v1925
    %v1991 = vsel %vm673, %v1688, %v1929
    %v1992 = vsel %vm673, %v1690, %v1933
    %v1993 = vsel %vm673, %v1714, %v1937
    %v1994 = vsel %vm673, %v1737, %v1941
    %v1995 = vsel %vm673, %v1721, %v1945
    %v1996 = vsel %vm673, %v1735, %v1949
    %v1997 = vsel %vm673, %v1736, %v1953
    %v1998 = vsel %vm673, %v1738, %v1957
    %v1999 = vsel %vm673, %v1753, %v1961
    %v2000 = vsel %vm673, %v1760, %v1965
    %v2001 = vsel %vm673, %v1761, %v1969
    %v2003 = vlaneseq
    %v2004 = vshrl.u32 %v2003, 7
    %v2005 = vsub.s32 0, %v2004
    %v2006 = vrot.slane %v733, %v2005
    %v2007 = vcombine.high %v2006, %v2006
    %v2009 = vunpack.c.l.s4 1983009808
    %v2010 = vunpack.c.0.s8 %v2009
    %v2011 = vlaneseq
    %v2012 = vshrl.u32 %v2011, 7
    %v2013 = vsub.s32 %v2010, %v2012
    %v2014 = vrot.slane %v2006, %v2013
    %v2016 = vunpack.c.l.s4 1983009808
    %v2017 = vunpack.c.0.s8 %v2016
    %v2018 = vlaneseq
    %v2019 = vshrl.u32 %v2018, 7
    %v2020 = vsub.s32 %v2017, %v2019
    %v2021 = vrot.slane %v2007, %v2020
    %v2022 = vcombine.high %v2014, %v2014
    %v2023 = vcombine.high %v2021, %v2021
    %v2028 = vadd.f32 %v1986, %v2022
    %v2029 = vadd.f32 %v1987, %v2021
    %v2030 = vadd.f32 %v1988, %v2023
    %v2031 = vadd.f32 %v1989, %v2014
    %v2032 = vadd.f32 %v1990, %v2022
    %v2033 = vadd.f32 %v1991, %v2021
    %v2034 = vadd.f32 %v1992, %v2023
    %v2035 = vadd.f32 %v1993, %v2014
    %v2036 = vadd.f32 %v1994, %v2022
    %v2037 = vadd.f32 %v1995, %v2021
    %v2038 = vadd.f32 %v1996, %v2023
    %v2039 = vadd.f32 %v1997, %v2014
    %v2040 = vadd.f32 %v1998, %v2022
    %v2041 = vadd.f32 %v1999, %v2021
    %v2042 = vadd.f32 %v2000, %v2023
    %v2043 = vadd.f32 %v2001, %v2014
    %v2044 = vmul.f32 %v2028, %v2028
    %v2045 = vmul.f32 %v2029, %v2029
    %v2046 = vmul.f32 %v2030, %v2030
    %v2047 = vmul.f32 %v2031, %v2031
    %v2048 = vmul.f32 %v2032, %v2032
    %v2049 = vmul.f32 %v2033, %v2033
    %v2050 = vmul.f32 %v2034, %v2034
    %v2051 = vmul.f32 %v2035, %v2035
    %v2052 = vmul.f32 %v2036, %v2036
    %v2053 = vmul.f32 %v2037, %v2037
    %v2054 = vmul.f32 %v2038, %v2038
    %v2055 = vmul.f32 %v2039, %v2039
    %v2056 = vmul.f32 %v2040, %v2040
    %v2057 = vmul.f32 %v2041, %v2041
    %v2058 = vmul.f32 %v2042, %v2042
    %v2059 = vmul.f32 %v2043, %v2043
    %v2076 = vcombine.low %v2044, %v2045
    %v2077 = vcombine.low %v2046, %v2047
    %v2079 = vunpack.c.l.s4 1983009808
    %v2080 = vunpack.c.0.s8 %v2079
    %v2081 = vlaneseq
    %v2082 = vshrl.u32 %v2081, 7
    %v2083 = vsub.s32 %v2080, %v2082
    %v2084 = vrot.slane %v2076, %v2083
    %v2086 = vunpack.c.l.s4 1983009808
    %v2087 = vunpack.c.0.s8 %v2086
    %v2088 = vlaneseq
    %v2089 = vshrl.u32 %v2088, 7
    %v2090 = vsub.s32 %v2087, %v2089
    %v2091 = vrot.slane %v2077, %v2090
    %v2092 = vcombine.low %v2084, %v2091
    %v2093 = vcombine.low %v2048, %v2049
    %v2094 = vcombine.low %v2050, %v2051
    %v2096 = vunpack.c.l.s4 1983009808
    %v2097 = vunpack.c.0.s8 %v2096
    %v2098 = vlaneseq
    %v2099 = vshrl.u32 %v2098, 7
    %v2100 = vsub.s32 %v2097, %v2099
    %v2101 = vrot.slane %v2093, %v2100
    %v2103 = vunpack.c.l.s4 1983009808
    %v2104 = vunpack.c.0.s8 %v2103
    %v2105 = vlaneseq
    %v2106 = vshrl.u32 %v2105, 7
    %v2107 = vsub.s32 %v2104, %v2106
    %v2108 = vrot.slane %v2094, %v2107
    %v2109 = vcombine.low %v2101, %v2108
    %v2110 = vcombine.low %v2052, %v2053
    %v2111 = vcombine.low %v2054, %v2055
    %v2113 = vunpack.c.l.s4 1983009808
    %v2114 = vunpack.c.0.s8 %v2113
    %v2115 = vlaneseq
    %v2116 = vshrl.u32 %v2115, 7
    %v2117 = vsub.s32 %v2114, %v2116
    %v2118 = vrot.slane %v2110, %v2117
    %v2120 = vunpack.c.l.s4 1983009808
    %v2121 = vunpack.c.0.s8 %v2120
    %v2122 = vlaneseq
    %v2123 = vshrl.u32 %v2122, 7
    %v2124 = vsub.s32 %v2121, %v2123
    %v2125 = vrot.slane %v2111, %v2124
    %v2126 = vcombine.low %v2118, %v2125
    %v2127 = vcombine.low %v2056, %v2057
    %v2128 = vcombine.low %v2058, %v2059
    %v2130 = vunpack.c.l.s4 1983009808
    %v2131 = vunpack.c.0.s8 %v2130
    %v2132 = vlaneseq
    %v2133 = vshrl.u32 %v2132, 7
    %v2134 = vsub.s32 %v2131, %v2133
    %v2135 = vrot.slane %v2127, %v2134
    %v2137 = vunpack.c.l.s4 1983009808
    %v2138 = vunpack.c.0.s8 %v2137
    %v2139 = vlaneseq
    %v2140 = vshrl.u32 %v2139, 7
    %v2141 = vsub.s32 %v2138, %v2140
    %v2142 = vrot.slane %v2128, %v2141
    %v2143 = vcombine.low %v2135, %v2142
    %vm2148 = vcmask 523264
    %v2149 = vsel %vm2148, %v2092, 0.0
    %2150 = vadd.xlane.f32.xlu0 %v2149
    %v2151 = vpop.xlane.xlu0 %2150
    %vm2152 = vcmask 522240
    %v2153 = vsel %vm2152, %v2109, 0.0
    %2154 = vadd.xlane.f32.xlu0 %v2153
    %v2155 = vpop.xlane.xlu0 %2154
    %v2156 = vsel %vm2148, %v2126, 0.0
    %2157 = vadd.xlane.f32.xlu0 %v2156
    %v2158 = vpop.xlane.xlu0 %2157
    %v2159 = vsel %vm2152, %v2143, 0.0
    %2160 = vadd.xlane.f32.xlu0 %v2159
    %v2161 = vpop.xlane.xlu0 %2160
    %v2162 = vadd.f32 %v2151, 1e-12
    %v2163 = vadd.f32 %v2155, 1e-12
    %v2164 = vadd.f32 %v2158, 1e-12
    %v2165 = vadd.f32 %v2161, 1e-12
    %v2166 = vrsqrt.pop %v2162
    %v2167 = vrsqrt.pop %v2163
    %v2168 = vrsqrt.pop %v2164
    %v2169 = vrsqrt.pop %v2165
    %v2175 = vunpack.c.l.s4 269488144
    %v2176 = vunpack.c.0.s8 %v2175
    %v2177 = vlaneseq
    %v2178 = vshrl.u32 %v2177, 7
    %v2179 = vsub.s32 %v2176, %v2178
    %v2180 = vrot.slane %v2166, %v2179
    %v2182 = vunpack.c.l.s4 842150450
    %v2183 = vunpack.c.0.s8 %v2182
    %v2184 = vlaneseq
    %v2185 = vshrl.u32 %v2184, 7
    %v2186 = vsub.s32 %v2183, %v2185
    %v2187 = vrot.slane %v2166, %v2186
    %v2189 = vunpack.c.l.s4 1414812756
    %v2190 = vunpack.c.0.s8 %v2189
    %v2191 = vlaneseq
    %v2192 = vshrl.u32 %v2191, 7
    %v2193 = vsub.s32 %v2190, %v2192
    %v2194 = vrot.slane %v2166, %v2193
    %v2196 = vunpack.c.l.s4 1987475062
    %v2197 = vunpack.c.0.s8 %v2196
    %v2198 = vlaneseq
    %v2199 = vshrl.u32 %v2198, 7
    %v2200 = vsub.s32 %v2197, %v2199
    %v2201 = vrot.slane %v2166, %v2200
    %v2203 = vunpack.c.l.s4 269488144
    %v2204 = vunpack.c.0.s8 %v2203
    %v2205 = vlaneseq
    %v2206 = vshrl.u32 %v2205, 7
    %v2207 = vsub.s32 %v2204, %v2206
    %v2208 = vrot.slane %v2167, %v2207
    %v2210 = vunpack.c.l.s4 842150450
    %v2211 = vunpack.c.0.s8 %v2210
    %v2212 = vlaneseq
    %v2213 = vshrl.u32 %v2212, 7
    %v2214 = vsub.s32 %v2211, %v2213
    %v2215 = vrot.slane %v2167, %v2214
    %v2217 = vunpack.c.l.s4 1414812756
    %v2218 = vunpack.c.0.s8 %v2217
    %v2219 = vlaneseq
    %v2220 = vshrl.u32 %v2219, 7
    %v2221 = vsub.s32 %v2218, %v2220
    %v2222 = vrot.slane %v2167, %v2221
    %v2224 = vunpack.c.l.s4 1987475062
    %v2225 = vunpack.c.0.s8 %v2224
    %v2226 = vlaneseq
    %v2227 = vshrl.u32 %v2226, 7
    %v2228 = vsub.s32 %v2225, %v2227
    %v2229 = vrot.slane %v2167, %v2228
    %v2231 = vunpack.c.l.s4 269488144
    %v2232 = vunpack.c.0.s8 %v2231
    %v2233 = vlaneseq
    %v2234 = vshrl.u32 %v2233, 7
    %v2235 = vsub.s32 %v2232, %v2234
    %v2236 = vrot.slane %v2168, %v2235
    %v2238 = vunpack.c.l.s4 842150450
    %v2239 = vunpack.c.0.s8 %v2238
    %v2240 = vlaneseq
    %v2241 = vshrl.u32 %v2240, 7
    %v2242 = vsub.s32 %v2239, %v2241
    %v2243 = vrot.slane %v2168, %v2242
    %v2245 = vunpack.c.l.s4 1414812756
    %v2246 = vunpack.c.0.s8 %v2245
    %v2247 = vlaneseq
    %v2248 = vshrl.u32 %v2247, 7
    %v2249 = vsub.s32 %v2246, %v2248
    %v2250 = vrot.slane %v2168, %v2249
    %v2252 = vunpack.c.l.s4 1987475062
    %v2253 = vunpack.c.0.s8 %v2252
    %v2254 = vlaneseq
    %v2255 = vshrl.u32 %v2254, 7
    %v2256 = vsub.s32 %v2253, %v2255
    %v2257 = vrot.slane %v2168, %v2256
    %v2259 = vunpack.c.l.s4 269488144
    %v2260 = vunpack.c.0.s8 %v2259
    %v2261 = vlaneseq
    %v2262 = vshrl.u32 %v2261, 7
    %v2263 = vsub.s32 %v2260, %v2262
    %v2264 = vrot.slane %v2169, %v2263
    %v2266 = vunpack.c.l.s4 842150450
    %v2267 = vunpack.c.0.s8 %v2266
    %v2268 = vlaneseq
    %v2269 = vshrl.u32 %v2268, 7
    %v2270 = vsub.s32 %v2267, %v2269
    %v2271 = vrot.slane %v2169, %v2270
    %v2273 = vunpack.c.l.s4 1414812756
    %v2274 = vunpack.c.0.s8 %v2273
    %v2275 = vlaneseq
    %v2276 = vshrl.u32 %v2275, 7
    %v2277 = vsub.s32 %v2274, %v2276
    %v2278 = vrot.slane %v2169, %v2277
    %v2280 = vunpack.c.l.s4 1987475062
    %v2281 = vunpack.c.0.s8 %v2280
    %v2282 = vlaneseq
    %v2283 = vshrl.u32 %v2282, 7
    %v2284 = vsub.s32 %v2281, %v2283
    %v2285 = vrot.slane %v2169, %v2284
    %v2302 = vmul.f32 %v2028, %v2180
    %v2303 = vmul.f32 %v2029, %v2187
    %v2304 = vmul.f32 %v2030, %v2194
    %v2305 = vmul.f32 %v2031, %v2201
    %v2306 = vmul.f32 %v2032, %v2208
    %v2307 = vmul.f32 %v2033, %v2215
    %v2308 = vmul.f32 %v2034, %v2222
    %v2309 = vmul.f32 %v2035, %v2229
    %v2310 = vmul.f32 %v2036, %v2236
    %v2311 = vmul.f32 %v2037, %v2243
    %v2312 = vmul.f32 %v2038, %v2250
    %v2313 = vmul.f32 %v2039, %v2257
    %v2314 = vmul.f32 %v2040, %v2264
    %v2315 = vmul.f32 %v2041, %v2271
    %v2316 = vmul.f32 %v2042, %v2278
    %v2317 = vmul.f32 %v2043, %v2285
    %v2334 = vcombine.low %v2302, %v2303
    %v2335 = vcombine.low %v2304, %v2305
    %v2337 = vunpack.c.l.s4 1983009808
    %v2338 = vunpack.c.0.s8 %v2337
    %v2339 = vlaneseq
    %v2340 = vshrl.u32 %v2339, 7
    %v2341 = vsub.s32 %v2338, %v2340
    %v2342 = vrot.slane %v2334, %v2341
    %v2344 = vunpack.c.l.s4 1983009808
    %v2345 = vunpack.c.0.s8 %v2344
    %v2346 = vlaneseq
    %v2347 = vshrl.u32 %v2346, 7
    %v2348 = vsub.s32 %v2345, %v2347
    %v2349 = vrot.slane %v2335, %v2348
    %v2350 = vcombine.low %v2342, %v2349
    %v2351 = vcombine.low %v2306, %v2307
    %v2352 = vcombine.low %v2308, %v2309
    %v2354 = vunpack.c.l.s4 1983009808
    %v2355 = vunpack.c.0.s8 %v2354
    %v2356 = vlaneseq
    %v2357 = vshrl.u32 %v2356, 7
    %v2358 = vsub.s32 %v2355, %v2357
    %v2359 = vrot.slane %v2351, %v2358
    %v2361 = vunpack.c.l.s4 1983009808
    %v2362 = vunpack.c.0.s8 %v2361
    %v2363 = vlaneseq
    %v2364 = vshrl.u32 %v2363, 7
    %v2365 = vsub.s32 %v2362, %v2364
    %v2366 = vrot.slane %v2352, %v2365
    %v2367 = vcombine.low %v2359, %v2366
    %v2368 = vcombine.low %v2310, %v2311
    %v2369 = vcombine.low %v2312, %v2313
    %v2371 = vunpack.c.l.s4 1983009808
    %v2372 = vunpack.c.0.s8 %v2371
    %v2373 = vlaneseq
    %v2374 = vshrl.u32 %v2373, 7
    %v2375 = vsub.s32 %v2372, %v2374
    %v2376 = vrot.slane %v2368, %v2375
    %v2378 = vunpack.c.l.s4 1983009808
    %v2379 = vunpack.c.0.s8 %v2378
    %v2380 = vlaneseq
    %v2381 = vshrl.u32 %v2380, 7
    %v2382 = vsub.s32 %v2379, %v2381
    %v2383 = vrot.slane %v2369, %v2382
    %v2384 = vcombine.low %v2376, %v2383
    %v2385 = vcombine.low %v2314, %v2315
    %v2386 = vcombine.low %v2316, %v2317
    %v2388 = vunpack.c.l.s4 1983009808
    %v2389 = vunpack.c.0.s8 %v2388
    %v2390 = vlaneseq
    %v2391 = vshrl.u32 %v2390, 7
    %v2392 = vsub.s32 %v2389, %v2391
    %v2393 = vrot.slane %v2385, %v2392
    %v2395 = vunpack.c.l.s4 1983009808
    %v2396 = vunpack.c.0.s8 %v2395
    %v2397 = vlaneseq
    %v2398 = vshrl.u32 %v2397, 7
    %v2399 = vsub.s32 %v2396, %v2398
    %v2400 = vrot.slane %v2386, %v2399
    %v2401 = vcombine.low %v2393, %v2400
    %v2406 = vpack.c.bf16 %v2367, %v2350
    %v2407 = vpack.c.bf16 %v2401, %v2384
    %v2410 = vcombine.high %v2406, %v2406
    %v2412 = vunpack.c.l.s4 1966171168
    %v2413 = vunpack.c.0.s8 %v2412
    %v2414 = vlaneseq
    %v2415 = vshrl.u32 %v2414, 7
    %v2416 = vsub.s32 %v2413, %v2415
    %v2417 = vrot.slane %v2406, %v2416
    %v2419 = vunpack.c.l.s4 1966171168
    %v2420 = vunpack.c.0.s8 %v2419
    %v2421 = vlaneseq
    %v2422 = vshrl.u32 %v2421, 7
    %v2423 = vsub.s32 %v2420, %v2422
    %v2424 = vrot.slane %v2410, %v2423
    %v2425 = vcombine.high %v2417, %v2417
    %v2426 = vcombine.high %v2424, %v2424
    %v2428 = vunpack.c.l.s4 1966171168
    %v2429 = vunpack.c.0.s8 %v2428
    %v2430 = vlaneseq
    %v2431 = vshrl.u32 %v2430, 7
    %v2432 = vsub.s32 %v2429, %v2431
    %v2433 = vrot.slane %v2417, %v2432
    %v2435 = vunpack.c.l.s4 1966171168
    %v2436 = vunpack.c.0.s8 %v2435
    %v2437 = vlaneseq
    %v2438 = vshrl.u32 %v2437, 7
    %v2439 = vsub.s32 %v2436, %v2438
    %v2440 = vrot.slane %v2424, %v2439
    %v2442 = vunpack.c.l.s4 1966171168
    %v2443 = vunpack.c.0.s8 %v2442
    %v2444 = vlaneseq
    %v2445 = vshrl.u32 %v2444, 7
    %v2446 = vsub.s32 %v2443, %v2445
    %v2447 = vrot.slane %v2425, %v2446
    %v2449 = vunpack.c.l.s4 1966171168
    %v2450 = vunpack.c.0.s8 %v2449
    %v2451 = vlaneseq
    %v2452 = vshrl.u32 %v2451, 7
    %v2453 = vsub.s32 %v2450, %v2452
    %v2454 = vrot.slane %v2426, %v2453
    %v2455 = vcombine.high %v2433, %v2433
    %v2456 = vcombine.high %v2440, %v2440
    %v2457 = vcombine.high %v2447, %v2447
    %v2458 = vcombine.high %v2454, %v2454
    %v2459 = vcombine.high %v2407, %v2407
    %v2461 = vunpack.c.l.s4 1966171168
    %v2462 = vunpack.c.0.s8 %v2461
    %v2463 = vlaneseq
    %v2464 = vshrl.u32 %v2463, 7
    %v2465 = vsub.s32 %v2462, %v2464
    %v2466 = vrot.slane %v2407, %v2465
    %v2468 = vunpack.c.l.s4 1966171168
    %v2469 = vunpack.c.0.s8 %v2468
    %v2470 = vlaneseq
    %v2471 = vshrl.u32 %v2470, 7
    %v2472 = vsub.s32 %v2469, %v2471
    %v2473 = vrot.slane %v2459, %v2472
    %v2474 = vcombine.high %v2466, %v2466
    %v2475 = vcombine.high %v2473, %v2473
    %v2477 = vunpack.c.l.s4 1966171168
    %v2478 = vunpack.c.0.s8 %v2477
    %v2479 = vlaneseq
    %v2480 = vshrl.u32 %v2479, 7
    %v2481 = vsub.s32 %v2478, %v2480
    %v2482 = vrot.slane %v2466, %v2481
    %v2484 = vunpack.c.l.s4 1966171168
    %v2485 = vunpack.c.0.s8 %v2484
    %v2486 = vlaneseq
    %v2487 = vshrl.u32 %v2486, 7
    %v2488 = vsub.s32 %v2485, %v2487
    %v2489 = vrot.slane %v2473, %v2488
    %v2491 = vunpack.c.l.s4 1966171168
    %v2492 = vunpack.c.0.s8 %v2491
    %v2493 = vlaneseq
    %v2494 = vshrl.u32 %v2493, 7
    %v2495 = vsub.s32 %v2492, %v2494
    %v2496 = vrot.slane %v2474, %v2495
    %v2498 = vunpack.c.l.s4 1966171168
    %v2499 = vunpack.c.0.s8 %v2498
    %v2500 = vlaneseq
    %v2501 = vshrl.u32 %v2500, 7
    %v2502 = vsub.s32 %v2499, %v2501
    %v2503 = vrot.slane %v2475, %v2502
    %v2504 = vcombine.high %v2482, %v2482
    %v2505 = vcombine.high %v2489, %v2489
    %v2506 = vcombine.high %v2496, %v2496
    %v2507 = vcombine.high %v2503, %v2503
    %v2508 = vunpack.i.l.s16 %v2433
    %v2509 = vunpack.i.h.s16 %v2433
    %v2510 = vunpack.i.l.s16 %v2447
    %v2511 = vunpack.i.h.s16 %v2447
    %v2512 = vunpack.i.l.s16 %v2455
    %v2513 = vunpack.i.h.s16 %v2455
    %v2514 = vunpack.i.l.s16 %v2457
    %v2515 = vunpack.i.h.s16 %v2457
    %v2516 = vunpack.i.l.s16 %v2440
    %v2517 = vunpack.i.h.s16 %v2440
    %v2518 = vunpack.i.l.s16 %v2454
    %v2519 = vunpack.i.h.s16 %v2454
    %v2520 = vunpack.i.l.s16 %v2456
    %v2521 = vunpack.i.h.s16 %v2456
    %v2522 = vunpack.i.l.s16 %v2458
    %v2523 = vunpack.i.l.s16 %v2482
    %v2524 = vunpack.i.h.s16 %v2482
    %v2525 = vunpack.i.l.s16 %v2496
    %v2526 = vunpack.i.h.s16 %v2496
    %v2527 = vunpack.i.l.s16 %v2504
    %v2528 = vunpack.i.h.s16 %v2504
    %v2529 = vunpack.i.l.s16 %v2506
    %v2530 = vunpack.i.h.s16 %v2506
    %v2531 = vunpack.i.l.s16 %v2489
    %v2532 = vunpack.i.h.s16 %v2489
    %v2533 = vunpack.i.l.s16 %v2503
    %v2534 = vunpack.i.h.s16 %v2503
    %v2535 = vunpack.i.l.s16 %v2505
    %v2536 = vunpack.i.h.s16 %v2505
    %v2537 = vunpack.i.l.s16 %v2507
    %v2538 = vld [vmem:[#allocation5] sm:$0xff]
    %v2539 = vld [vmem:[#allocation5 + $0x8] sm:$0xff]
    %v2540 = vld [vmem:[#allocation5 + $0x10] sm:$0xff]
    %v2541 = vld [vmem:[#allocation5 + $0x18] sm:$0xff]
    %v2542 = vld [vmem:[#allocation5 + $0x20] sm:$0xff]
    %v2543 = vld [vmem:[#allocation5 + $0x28] sm:$0xff]
    %v2544 = vld [vmem:[#allocation5 + $0x30] sm:$0xff]
    %v2545 = vld [vmem:[#allocation5 + $0x38] sm:$0xff]
    %v2546 = vpack.i.b16 %v2509, %v2508
    %v2547 = vpack.i.b16 %v2511, %v2510
    %v2548 = vpack.i.b16 %v2513, %v2512
    %v2549 = vpack.i.b16 %v2515, %v2514
    %v2550 = vpack.i.b16 %v2517, %v2516
    %v2551 = vpack.i.b16 %v2519, %v2518
    %v2552 = vpack.i.b16 %v2521, %v2520
    %v2553 = vpack.i.b16 %v2523, %v2522
    %v2554 = vpack.i.b16 %v2525, %v2524
    %v2555 = vpack.i.b16 %v2527, %v2526
    %v2556 = vpack.i.b16 %v2529, %v2528
    %v2557 = vpack.i.b16 %v2531, %v2530
    %v2558 = vpack.i.b16 %v2533, %v2532
    %v2559 = vpack.i.b16 %v2535, %v2534
    %v2560 = vpack.i.b16 %v2537, %v2536
    %v2561 = vcombine.low %v2546, %v2547
    %v2562 = vcombine.low %v2548, %v2549
    %v2563 = vcombine.low %v2550, %v2551
    %v2564 = vcombine.low %v2552, %v2553
    %v2566 = vunpack.c.l.s4 1966171168
    %v2567 = vunpack.c.0.s8 %v2566
    %v2568 = vlaneseq
    %v2569 = vshrl.u32 %v2568, 7
    %v2570 = vsub.s32 %v2567, %v2569
    %v2571 = vrot.slane %v2561, %v2570
    %v2573 = vunpack.c.l.s4 1966171168
    %v2574 = vunpack.c.0.s8 %v2573
    %v2575 = vlaneseq
    %v2576 = vshrl.u32 %v2575, 7
    %v2577 = vsub.s32 %v2574, %v2576
    %v2578 = vrot.slane %v2562, %v2577
    %v2580 = vunpack.c.l.s4 1966171168
    %v2581 = vunpack.c.0.s8 %v2580
    %v2582 = vlaneseq
    %v2583 = vshrl.u32 %v2582, 7
    %v2584 = vsub.s32 %v2581, %v2583
    %v2585 = vrot.slane %v2563, %v2584
    %v2587 = vunpack.c.l.s4 1966171168
    %v2588 = vunpack.c.0.s8 %v2587
    %v2589 = vlaneseq
    %v2590 = vshrl.u32 %v2589, 7
    %v2591 = vsub.s32 %v2588, %v2590
    %v2592 = vrot.slane %v2564, %v2591
    %v2593 = vcombine.low %v2571, %v2578
    %v2594 = vcombine.low %v2585, %v2592
    %v2596 = vunpack.c.l.s4 1966171168
    %v2597 = vunpack.c.0.s8 %v2596
    %v2598 = vlaneseq
    %v2599 = vshrl.u32 %v2598, 7
    %v2600 = vsub.s32 %v2597, %v2599
    %v2601 = vrot.slane %v2593, %v2600
    %v2603 = vunpack.c.l.s4 1966171168
    %v2604 = vunpack.c.0.s8 %v2603
    %v2605 = vlaneseq
    %v2606 = vshrl.u32 %v2605, 7
    %v2607 = vsub.s32 %v2604, %v2606
    %v2608 = vrot.slane %v2594, %v2607
    %v2609 = vcombine.low %v2601, %v2608
    %v2610 = vcombine.low %v2554, %v2555
    %v2611 = vcombine.low %v2556, %v2557
    %v2612 = vcombine.low %v2558, %v2559
    %v2614 = vunpack.c.l.s4 1966171168
    %v2615 = vunpack.c.0.s8 %v2614
    %v2616 = vlaneseq
    %v2617 = vshrl.u32 %v2616, 7
    %v2618 = vsub.s32 %v2615, %v2617
    %v2619 = vrot.slane %v2610, %v2618
    %v2621 = vunpack.c.l.s4 1966171168
    %v2622 = vunpack.c.0.s8 %v2621
    %v2623 = vlaneseq
    %v2624 = vshrl.u32 %v2623, 7
    %v2625 = vsub.s32 %v2622, %v2624
    %v2626 = vrot.slane %v2611, %v2625
    %v2628 = vunpack.c.l.s4 1966171168
    %v2629 = vunpack.c.0.s8 %v2628
    %v2630 = vlaneseq
    %v2631 = vshrl.u32 %v2630, 7
    %v2632 = vsub.s32 %v2629, %v2631
    %v2633 = vrot.slane %v2612, %v2632
    %v2635 = vunpack.c.l.s4 1966171168
    %v2636 = vunpack.c.0.s8 %v2635
    %v2637 = vlaneseq
    %v2638 = vshrl.u32 %v2637, 7
    %v2639 = vsub.s32 %v2636, %v2638
    %v2640 = vrot.slane %v2560, %v2639
    %v2641 = vcombine.low %v2619, %v2626
    %v2642 = vcombine.low %v2633, %v2640
    %v2644 = vunpack.c.l.s4 1966171168
    %v2645 = vunpack.c.0.s8 %v2644
    %v2646 = vlaneseq
    %v2647 = vshrl.u32 %v2646, 7
    %v2648 = vsub.s32 %v2645, %v2647
    %v2649 = vrot.slane %v2641, %v2648
    %v2651 = vunpack.c.l.s4 1966171168
    %v2652 = vunpack.c.0.s8 %v2651
    %v2653 = vlaneseq
    %v2654 = vshrl.u32 %v2653, 7
    %v2655 = vsub.s32 %v2652, %v2654
    %v2656 = vrot.slane %v2642, %v2655
    %v2657 = vcombine.low %v2649, %v2656
    %v2666 = vunpack.c.l.b16 %v2538
    %v2667 = vunpack.c.h.b16 %v2538
    %v2668 = vunpack.c.l.b16 %v2539
    %v2669 = vunpack.c.h.b16 %v2539
    %v2670 = vunpack.c.l.b16 %v2540
    %v2671 = vunpack.c.h.b16 %v2540
    %v2672 = vunpack.c.l.b16 %v2541
    %v2673 = vunpack.c.h.b16 %v2541
    %v2674 = vunpack.c.l.b16 %v2542
    %v2675 = vunpack.c.h.b16 %v2542
    %v2676 = vunpack.c.l.b16 %v2543
    %v2677 = vunpack.c.h.b16 %v2543
    %v2678 = vunpack.c.l.b16 %v2544
    %v2679 = vunpack.c.h.b16 %v2544
    %v2680 = vunpack.c.l.b16 %v2545
    %v2681 = vunpack.c.h.b16 %v2545
    %v2682 = vpack.c.b16 %v2668, %v2666
    %v2683 = vpack.c.b16 %v2669, %v2667
    %v2684 = vpack.c.b16 %v2672, %v2670
    %v2685 = vpack.c.b16 %v2673, %v2671
    %v2686 = vpack.c.b16 %v2676, %v2674
    %v2687 = vpack.c.b16 %v2677, %v2675
    %v2688 = vpack.c.b16 %v2680, %v2678
    %v2689 = vpack.c.b16 %v2681, %v2679
    %v2699 = vsel %vm2148, %v2609, 0
    %v2702 = vsel %vm2148, %v2657, 0
    %2704 = vmatprep.subr.bf16.mxu0 0
    %2705 = vmatpush1.bf16.msra.mxu0 0
    %2706 = vmatprep.subr.bf16.mxu0 0
    %2707 = vmatpush1.bf16.msra.mxu0 0
    %2708 = vmatprep.subr.bf16.mxu0 0
    %2709 = vmatpush1.bf16.msra.mxu0 0
    %2710 = vmatprep.subr.bf16.mxu0 0
    %2711 = vmatpush1.bf16.msra.mxu0 0
    %2712 = vmatprep.subr.bf16.mxu0 %v2689
    %2713 = vmatpush1.bf16.msra.mxu0 %v2688
    %2714 = vmatprep.subr.bf16.mxu0 %v2687
    %2715 = vmatpush1.bf16.msra.mxu0 %v2686
    %2716 = vmatprep.subr.bf16.mxu0 %v2685
    %2717 = vmatpush1.bf16.msra.mxu0 %v2684
    %2718 = vmatprep.subr.bf16.mxu0 %v2683
    %2719 = vmatpush1.bf16.msra.mxu0 %v2682
    %2720 = vmatprep.subr.bf16.mxu0 0
    %2721 = vmatpush2.bf16.msra.mxu0 0
    %2722 = vmatprep.subr.bf16.mxu0 0
    %2723 = vmatpush2.bf16.msra.mxu0 0
    %2724 = vmatprep.subr.bf16.mxu0 0
    %2725 = vmatpush2.bf16.msra.mxu0 0
    %2726 = vmatprep.subr.bf16.mxu0 0
    %2727 = vmatpush2.bf16.msra.mxu0 0
    %2728 = vmatprep.subr.bf16.mxu0 0
    %2729 = vmatpush2.bf16.msra.mxu0 0
    %2730 = vmatprep.subr.bf16.mxu0 0
    %2731 = vmatpush2.bf16.msra.mxu0 0
    %2732 = vmatprep.subr.bf16.mxu0 0
    %2733 = vmatpush2.bf16.msra.mxu0 0
    %2734 = vmatprep.subr.bf16.mxu0 0
    %2735 = vmatpush2.bf16.msra.mxu0 0
    %2736 = vmatprep.mubr.bf16.mxu0 0
    %2737 = vmatmul.mubr.bf16.gmra.mxu0 %v2699
    %v2738 = vpop.f32.mrf.mxu0
    %v2739 = vadd.f32 0.0, %v2738
    %v2740 = vpop.f32.mrf.mxu0
    %v2741 = vadd.f32 0.0, %v2740
    %v2742 = vpop.f32.mrf.mxu0
    %v2743 = vadd.f32 0.0, %v2742
    %v2744 = vpop.f32.mrf.mxu0
    %v2745 = vadd.f32 0.0, %v2744
    %2746 = vmatprep.mubr.bf16.mxu0 0
    %2747 = vmatmul.mubr.bf16.gmra.mxu0 %v2702
    %v2748 = vpop.f32.mrf.mxu0
    %v2749 = vadd.f32 0.0, %v2748
    %v2750 = vpop.f32.mrf.mxu0
    %v2751 = vadd.f32 0.0, %v2750
    %v2752 = vpop.f32.mrf.mxu0
    %v2753 = vadd.f32 0.0, %v2752
    %v2754 = vpop.f32.mrf.mxu0
    %v2755 = vadd.f32 0.0, %v2754
    %2756 = vdwg.mxu0
    %v2757 = vmul.f32 %v2739, 2.0
    %v2758 = vmul.f32 %v2741, 2.0
    %v2759 = vmul.f32 %v2743, 2.0
    %v2760 = vmul.f32 %v2745, 2.0
    %v2761 = vmul.f32 %v2749, 2.0
    %v2762 = vmul.f32 %v2751, 2.0
    %v2763 = vmul.f32 %v2753, 2.0
    %v2764 = vmul.f32 %v2755, 2.0
    %v2773 = vcombine.low %v2757, %v2758
    %v2774 = vcombine.high %v2757, %v2758
    %v2776 = vunpack.c.l.s4 1966171168
    %v2777 = vunpack.c.0.s8 %v2776
    %v2778 = vlaneseq
    %v2779 = vshrl.u32 %v2778, 7
    %v2780 = vsub.s32 %v2777, %v2779
    %v2781 = vrot.slane %v2773, %v2780
    %v2783 = vunpack.c.l.s4 1966171168
    %v2784 = vunpack.c.0.s8 %v2783
    %v2785 = vlaneseq
    %v2786 = vshrl.u32 %v2785, 7
    %v2787 = vsub.s32 %v2784, %v2786
    %v2788 = vrot.slane %v2774, %v2787
    %v2789 = vcombine.high %v2781, %v2781
    %v2790 = vcombine.high %v2788, %v2788
    %v2792 = vunpack.c.l.s4 1966171168
    %v2793 = vunpack.c.0.s8 %v2792
    %v2794 = vlaneseq
    %v2795 = vshrl.u32 %v2794, 7
    %v2796 = vsub.s32 %v2793, %v2795
    %v2797 = vrot.slane %v2781, %v2796
    %v2799 = vunpack.c.l.s4 1966171168
    %v2800 = vunpack.c.0.s8 %v2799
    %v2801 = vlaneseq
    %v2802 = vshrl.u32 %v2801, 7
    %v2803 = vsub.s32 %v2800, %v2802
    %v2804 = vrot.slane %v2788, %v2803
    %v2806 = vunpack.c.l.s4 1966171168
    %v2807 = vunpack.c.0.s8 %v2806
    %v2808 = vlaneseq
    %v2809 = vshrl.u32 %v2808, 7
    %v2810 = vsub.s32 %v2807, %v2809
    %v2811 = vrot.slane %v2789, %v2810
    %v2813 = vunpack.c.l.s4 1966171168
    %v2814 = vunpack.c.0.s8 %v2813
    %v2815 = vlaneseq
    %v2816 = vshrl.u32 %v2815, 7
    %v2817 = vsub.s32 %v2814, %v2816
    %v2818 = vrot.slane %v2790, %v2817
    %v2819 = vcombine.high %v2797, %v2797
    %v2820 = vcombine.high %v2804, %v2804
    %v2821 = vcombine.high %v2811, %v2811
    %v2822 = vcombine.high %v2818, %v2818
    %v2823 = vcombine.low %v2759, %v2760
    %v2824 = vcombine.high %v2759, %v2760
    %v2826 = vunpack.c.l.s4 1966171168
    %v2827 = vunpack.c.0.s8 %v2826
    %v2828 = vlaneseq
    %v2829 = vshrl.u32 %v2828, 7
    %v2830 = vsub.s32 %v2827, %v2829
    %v2831 = vrot.slane %v2823, %v2830
    %v2833 = vunpack.c.l.s4 1966171168
    %v2834 = vunpack.c.0.s8 %v2833
    %v2835 = vlaneseq
    %v2836 = vshrl.u32 %v2835, 7
    %v2837 = vsub.s32 %v2834, %v2836
    %v2838 = vrot.slane %v2824, %v2837
    %v2839 = vcombine.high %v2831, %v2831
    %v2840 = vcombine.high %v2838, %v2838
    %v2842 = vunpack.c.l.s4 1966171168
    %v2843 = vunpack.c.0.s8 %v2842
    %v2844 = vlaneseq
    %v2845 = vshrl.u32 %v2844, 7
    %v2846 = vsub.s32 %v2843, %v2845
    %v2847 = vrot.slane %v2831, %v2846
    %v2849 = vunpack.c.l.s4 1966171168
    %v2850 = vunpack.c.0.s8 %v2849
    %v2851 = vlaneseq
    %v2852 = vshrl.u32 %v2851, 7
    %v2853 = vsub.s32 %v2850, %v2852
    %v2854 = vrot.slane %v2838, %v2853
    %v2856 = vunpack.c.l.s4 1966171168
    %v2857 = vunpack.c.0.s8 %v2856
    %v2858 = vlaneseq
    %v2859 = vshrl.u32 %v2858, 7
    %v2860 = vsub.s32 %v2857, %v2859
    %v2861 = vrot.slane %v2839, %v2860
    %v2863 = vunpack.c.l.s4 1966171168
    %v2864 = vunpack.c.0.s8 %v2863
    %v2865 = vlaneseq
    %v2866 = vshrl.u32 %v2865, 7
    %v2867 = vsub.s32 %v2864, %v2866
    %v2868 = vrot.slane %v2840, %v2867
    %v2869 = vcombine.high %v2847, %v2847
    %v2870 = vcombine.high %v2854, %v2854
    %v2871 = vcombine.high %v2861, %v2861
    %v2872 = vcombine.high %v2868, %v2868
    %v2873 = vcombine.low %v2761, %v2762
    %v2874 = vcombine.high %v2761, %v2762
    %v2876 = vunpack.c.l.s4 1966171168
    %v2877 = vunpack.c.0.s8 %v2876
    %v2878 = vlaneseq
    %v2879 = vshrl.u32 %v2878, 7
    %v2880 = vsub.s32 %v2877, %v2879
    %v2881 = vrot.slane %v2873, %v2880
    %v2883 = vunpack.c.l.s4 1966171168
    %v2884 = vunpack.c.0.s8 %v2883
    %v2885 = vlaneseq
    %v2886 = vshrl.u32 %v2885, 7
    %v2887 = vsub.s32 %v2884, %v2886
    %v2888 = vrot.slane %v2874, %v2887
    %v2889 = vcombine.high %v2881, %v2881
    %v2890 = vcombine.high %v2888, %v2888
    %v2892 = vunpack.c.l.s4 1966171168
    %v2893 = vunpack.c.0.s8 %v2892
    %v2894 = vlaneseq
    %v2895 = vshrl.u32 %v2894, 7
    %v2896 = vsub.s32 %v2893, %v2895
    %v2897 = vrot.slane %v2881, %v2896
    %v2899 = vunpack.c.l.s4 1966171168
    %v2900 = vunpack.c.0.s8 %v2899
    %v2901 = vlaneseq
    %v2902 = vshrl.u32 %v2901, 7
    %v2903 = vsub.s32 %v2900, %v2902
    %v2904 = vrot.slane %v2888, %v2903
    %v2906 = vunpack.c.l.s4 1966171168
    %v2907 = vunpack.c.0.s8 %v2906
    %v2908 = vlaneseq
    %v2909 = vshrl.u32 %v2908, 7
    %v2910 = vsub.s32 %v2907, %v2909
    %v2911 = vrot.slane %v2889, %v2910
    %v2913 = vunpack.c.l.s4 1966171168
    %v2914 = vunpack.c.0.s8 %v2913
    %v2915 = vlaneseq
    %v2916 = vshrl.u32 %v2915, 7
    %v2917 = vsub.s32 %v2914, %v2916
    %v2918 = vrot.slane %v2890, %v2917
    %v2919 = vcombine.high %v2897, %v2897
    %v2920 = vcombine.high %v2904, %v2904
    %v2921 = vcombine.high %v2911, %v2911
    %v2922 = vcombine.high %v2918, %v2918
    %v2923 = vcombine.low %v2763, %v2764
    %v2924 = vcombine.high %v2763, %v2764
    %v2926 = vunpack.c.l.s4 1966171168
    %v2927 = vunpack.c.0.s8 %v2926
    %v2928 = vlaneseq
    %v2929 = vshrl.u32 %v2928, 7
    %v2930 = vsub.s32 %v2927, %v2929
    %v2931 = vrot.slane %v2923, %v2930
    %v2933 = vunpack.c.l.s4 1966171168
    %v2934 = vunpack.c.0.s8 %v2933
    %v2935 = vlaneseq
    %v2936 = vshrl.u32 %v2935, 7
    %v2937 = vsub.s32 %v2934, %v2936
    %v2938 = vrot.slane %v2924, %v2937
    %v2939 = vcombine.high %v2931, %v2931
    %v2940 = vcombine.high %v2938, %v2938
    %v2942 = vunpack.c.l.s4 1966171168
    %v2943 = vunpack.c.0.s8 %v2942
    %v2944 = vlaneseq
    %v2945 = vshrl.u32 %v2944, 7
    %v2946 = vsub.s32 %v2943, %v2945
    %v2947 = vrot.slane %v2931, %v2946
    %v2949 = vunpack.c.l.s4 1966171168
    %v2950 = vunpack.c.0.s8 %v2949
    %v2951 = vlaneseq
    %v2952 = vshrl.u32 %v2951, 7
    %v2953 = vsub.s32 %v2950, %v2952
    %v2954 = vrot.slane %v2938, %v2953
    %v2956 = vunpack.c.l.s4 1966171168
    %v2957 = vunpack.c.0.s8 %v2956
    %v2958 = vlaneseq
    %v2959 = vshrl.u32 %v2958, 7
    %v2960 = vsub.s32 %v2957, %v2959
    %v2961 = vrot.slane %v2939, %v2960
    %v2963 = vunpack.c.l.s4 1966171168
    %v2964 = vunpack.c.0.s8 %v2963
    %v2965 = vlaneseq
    %v2966 = vshrl.u32 %v2965, 7
    %v2967 = vsub.s32 %v2964, %v2966
    %v2968 = vrot.slane %v2940, %v2967
    %v2969 = vcombine.high %v2947, %v2947
    %v2970 = vcombine.high %v2961, %v2961
    %v3001 = vcombine.low %v2797, %v2811
    %v3002 = vcombine.low %v2819, %v2821
    %v3003 = vcombine.low %v2804, %v2818
    %v3004 = vcombine.low %v2820, %v2822
    %v3006 = vunpack.c.l.s4 1966171168
    %v3007 = vunpack.c.0.s8 %v3006
    %v3008 = vlaneseq
    %v3009 = vshrl.u32 %v3008, 7
    %v3010 = vsub.s32 %v3007, %v3009
    %v3011 = vrot.slane %v3001, %v3010
    %v3013 = vunpack.c.l.s4 1966171168
    %v3014 = vunpack.c.0.s8 %v3013
    %v3015 = vlaneseq
    %v3016 = vshrl.u32 %v3015, 7
    %v3017 = vsub.s32 %v3014, %v3016
    %v3018 = vrot.slane %v3002, %v3017
    %v3020 = vunpack.c.l.s4 1966171168
    %v3021 = vunpack.c.0.s8 %v3020
    %v3022 = vlaneseq
    %v3023 = vshrl.u32 %v3022, 7
    %v3024 = vsub.s32 %v3021, %v3023
    %v3025 = vrot.slane %v3003, %v3024
    %v3027 = vunpack.c.l.s4 1966171168
    %v3028 = vunpack.c.0.s8 %v3027
    %v3029 = vlaneseq
    %v3030 = vshrl.u32 %v3029, 7
    %v3031 = vsub.s32 %v3028, %v3030
    %v3032 = vrot.slane %v3004, %v3031
    %v3033 = vcombine.low %v3011, %v3018
    %v3034 = vcombine.high %v3011, %v3018
    %v3035 = vcombine.low %v3025, %v3032
    %v3036 = vcombine.high %v3025, %v3032
    %v3038 = vunpack.c.l.s4 1966171168
    %v3039 = vunpack.c.0.s8 %v3038
    %v3040 = vlaneseq
    %v3041 = vshrl.u32 %v3040, 7
    %v3042 = vsub.s32 %v3039, %v3041
    %v3043 = vrot.slane %v3033, %v3042
    %v3045 = vunpack.c.l.s4 1966171168
    %v3046 = vunpack.c.0.s8 %v3045
    %v3047 = vlaneseq
    %v3048 = vshrl.u32 %v3047, 7
    %v3049 = vsub.s32 %v3046, %v3048
    %v3050 = vrot.slane %v3034, %v3049
    %v3052 = vunpack.c.l.s4 1966171168
    %v3053 = vunpack.c.0.s8 %v3052
    %v3054 = vlaneseq
    %v3055 = vshrl.u32 %v3054, 7
    %v3056 = vsub.s32 %v3053, %v3055
    %v3057 = vrot.slane %v3035, %v3056
    %v3059 = vunpack.c.l.s4 1966171168
    %v3060 = vunpack.c.0.s8 %v3059
    %v3061 = vlaneseq
    %v3062 = vshrl.u32 %v3061, 7
    %v3063 = vsub.s32 %v3060, %v3062
    %v3064 = vrot.slane %v3036, %v3063
    %v3065 = vcombine.low %v3043, %v3057
    %v3066 = vcombine.low %v3050, %v3064
    %v3067 = vcombine.low %v2847, %v2861
    %v3068 = vcombine.low %v2869, %v2871
    %v3069 = vcombine.low %v2854, %v2868
    %v3071 = vunpack.c.l.s4 1966171168
    %v3072 = vunpack.c.0.s8 %v3071
    %v3073 = vlaneseq
    %v3074 = vshrl.u32 %v3073, 7
    %v3075 = vsub.s32 %v3072, %v3074
    %v3076 = vrot.slane %v3067, %v3075
    %v3078 = vunpack.c.l.s4 1966171168
    %v3079 = vunpack.c.0.s8 %v3078
    %v3080 = vlaneseq
    %v3081 = vshrl.u32 %v3080, 7
    %v3082 = vsub.s32 %v3079, %v3081
    %v3083 = vrot.slane %v3068, %v3082
    %v3085 = vunpack.c.l.s4 1966171168
    %v3086 = vunpack.c.0.s8 %v3085
    %v3087 = vlaneseq
    %v3088 = vshrl.u32 %v3087, 7
    %v3089 = vsub.s32 %v3086, %v3088
    %v3090 = vrot.slane %v3069, %v3089
    %v3092 = vunpack.c.l.s4 1966171168
    %v3093 = vunpack.c.0.s8 %v3092
    %v3094 = vlaneseq
    %v3095 = vshrl.u32 %v3094, 7
    %v3096 = vsub.s32 %v3093, %v3095
    %v3097 = vrot.slane %v2870, %v3096
    %v3098 = vcombine.low %v3076, %v3083
    %v3099 = vcombine.high %v3076, %v3083
    %v3100 = vcombine.low %v3090, %v3097
    %v3101 = vcombine.high %v3090, %v3097
    %v3103 = vunpack.c.l.s4 1966171168
    %v3104 = vunpack.c.0.s8 %v3103
    %v3105 = vlaneseq
    %v3106 = vshrl.u32 %v3105, 7
    %v3107 = vsub.s32 %v3104, %v3106
    %v3108 = vrot.slane %v3098, %v3107
    %v3110 = vunpack.c.l.s4 1966171168
    %v3111 = vunpack.c.0.s8 %v3110
    %v3112 = vlaneseq
    %v3113 = vshrl.u32 %v3112, 7
    %v3114 = vsub.s32 %v3111, %v3113
    %v3115 = vrot.slane %v3099, %v3114
    %v3117 = vunpack.c.l.s4 1966171168
    %v3118 = vunpack.c.0.s8 %v3117
    %v3119 = vlaneseq
    %v3120 = vshrl.u32 %v3119, 7
    %v3121 = vsub.s32 %v3118, %v3120
    %v3122 = vrot.slane %v3100, %v3121
    %v3124 = vunpack.c.l.s4 1966171168
    %v3125 = vunpack.c.0.s8 %v3124
    %v3126 = vlaneseq
    %v3127 = vshrl.u32 %v3126, 7
    %v3128 = vsub.s32 %v3125, %v3127
    %v3129 = vrot.slane %v3101, %v3128
    %v3130 = vcombine.low %v3108, %v3122
    %v3131 = vcombine.low %v3115, %v3129
    %v3132 = vcombine.low %v2872, %v2897
    %v3133 = vcombine.low %v2911, %v2919
    %v3134 = vcombine.low %v2921, %v2904
    %v3135 = vcombine.low %v2918, %v2920
    %v3137 = vunpack.c.l.s4 1966171168
    %v3138 = vunpack.c.0.s8 %v3137
    %v3139 = vlaneseq
    %v3140 = vshrl.u32 %v3139, 7
    %v3141 = vsub.s32 %v3138, %v3140
    %v3142 = vrot.slane %v3132, %v3141
    %v3144 = vunpack.c.l.s4 1966171168
    %v3145 = vunpack.c.0.s8 %v3144
    %v3146 = vlaneseq
    %v3147 = vshrl.u32 %v3146, 7
    %v3148 = vsub.s32 %v3145, %v3147
    %v3149 = vrot.slane %v3133, %v3148
    %v3151 = vunpack.c.l.s4 1966171168
    %v3152 = vunpack.c.0.s8 %v3151
    %v3153 = vlaneseq
    %v3154 = vshrl.u32 %v3153, 7
    %v3155 = vsub.s32 %v3152, %v3154
    %v3156 = vrot.slane %v3134, %v3155
    %v3158 = vunpack.c.l.s4 1966171168
    %v3159 = vunpack.c.0.s8 %v3158
    %v3160 = vlaneseq
    %v3161 = vshrl.u32 %v3160, 7
    %v3162 = vsub.s32 %v3159, %v3161
    %v3163 = vrot.slane %v3135, %v3162
    %v3164 = vcombine.low %v3142, %v3149
    %v3165 = vcombine.high %v3142, %v3149
    %v3166 = vcombine.low %v3156, %v3163
    %v3167 = vcombine.high %v3156, %v3163
    %v3169 = vunpack.c.l.s4 1966171168
    %v3170 = vunpack.c.0.s8 %v3169
    %v3171 = vlaneseq
    %v3172 = vshrl.u32 %v3171, 7
    %v3173 = vsub.s32 %v3170, %v3172
    %v3174 = vrot.slane %v3164, %v3173
    %v3176 = vunpack.c.l.s4 1966171168
    %v3177 = vunpack.c.0.s8 %v3176
    %v3178 = vlaneseq
    %v3179 = vshrl.u32 %v3178, 7
    %v3180 = vsub.s32 %v3177, %v3179
    %v3181 = vrot.slane %v3165, %v3180
    %v3183 = vunpack.c.l.s4 1966171168
    %v3184 = vunpack.c.0.s8 %v3183
    %v3185 = vlaneseq
    %v3186 = vshrl.u32 %v3185, 7
    %v3187 = vsub.s32 %v3184, %v3186
    %v3188 = vrot.slane %v3166, %v3187
    %v3190 = vunpack.c.l.s4 1966171168
    %v3191 = vunpack.c.0.s8 %v3190
    %v3192 = vlaneseq
    %v3193 = vshrl.u32 %v3192, 7
    %v3194 = vsub.s32 %v3191, %v3193
    %v3195 = vrot.slane %v3167, %v3194
    %v3196 = vcombine.low %v3174, %v3188
    %v3197 = vcombine.low %v3181, %v3195
    %v3198 = vcombine.low %v2922, %v2947
    %v3199 = vcombine.low %v2961, %v2969
    %v3200 = vcombine.low %v2970, %v2954
    %v3202 = vunpack.c.l.s4 1966171168
    %v3203 = vunpack.c.0.s8 %v3202
    %v3204 = vlaneseq
    %v3205 = vshrl.u32 %v3204, 7
    %v3206 = vsub.s32 %v3203, %v3205
    %v3207 = vrot.slane %v3198, %v3206
    %v3209 = vunpack.c.l.s4 1966171168
    %v3210 = vunpack.c.0.s8 %v3209
    %v3211 = vlaneseq
    %v3212 = vshrl.u32 %v3211, 7
    %v3213 = vsub.s32 %v3210, %v3212
    %v3214 = vrot.slane %v3199, %v3213
    %v3216 = vunpack.c.l.s4 1966171168
    %v3217 = vunpack.c.0.s8 %v3216
    %v3218 = vlaneseq
    %v3219 = vshrl.u32 %v3218, 7
    %v3220 = vsub.s32 %v3217, %v3219
    %v3221 = vrot.slane %v3200, %v3220
    %v3223 = vunpack.c.l.s4 1966171168
    %v3224 = vunpack.c.0.s8 %v3223
    %v3225 = vlaneseq
    %v3226 = vshrl.u32 %v3225, 7
    %v3227 = vsub.s32 %v3224, %v3226
    %v3228 = vrot.slane %v2968, %v3227
    %v3229 = vcombine.low %v3207, %v3214
    %v3230 = vcombine.high %v3207, %v3214
    %v3231 = vcombine.low %v3221, %v3228
    %v3232 = vcombine.high %v3221, %v3228
    %v3234 = vunpack.c.l.s4 1966171168
    %v3235 = vunpack.c.0.s8 %v3234
    %v3236 = vlaneseq
    %v3237 = vshrl.u32 %v3236, 7
    %v3238 = vsub.s32 %v3235, %v3237
    %v3239 = vrot.slane %v3229, %v3238
    %v3241 = vunpack.c.l.s4 1966171168
    %v3242 = vunpack.c.0.s8 %v3241
    %v3243 = vlaneseq
    %v3244 = vshrl.u32 %v3243, 7
    %v3245 = vsub.s32 %v3242, %v3244
    %v3246 = vrot.slane %v3230, %v3245
    %v3248 = vunpack.c.l.s4 1966171168
    %v3249 = vunpack.c.0.s8 %v3248
    %v3250 = vlaneseq
    %v3251 = vshrl.u32 %v3250, 7
    %v3252 = vsub.s32 %v3249, %v3251
    %v3253 = vrot.slane %v3231, %v3252
    %v3255 = vunpack.c.l.s4 1966171168
    %v3256 = vunpack.c.0.s8 %v3255
    %v3257 = vlaneseq
    %v3258 = vshrl.u32 %v3257, 7
    %v3259 = vsub.s32 %v3256, %v3258
    %v3260 = vrot.slane %v3232, %v3259
    %v3261 = vcombine.low %v3239, %v3253
    %v3262 = vcombine.low %v3246, %v3260
    %v3271 = vmax.f32 %v3065, %v3066
    %3272 = vmax.xlane.f32.xlu0 %v3271
    %v3273 = vpop.xlane.xlu0 %3272
    %vm3274 = vcmask 1046528
    %v3275 = vsel %vm3274, %v3130, -inf
    %v3276 = vsel %vm3274, %v3131, -inf
    %v3277 = vmax.f32 %v3275, %v3276
    %3278 = vmax.xlane.f32.xlu0 %v3277
    %v3279 = vpop.xlane.xlu0 %3278
    %v3280 = vmax.f32 %v3196, %v3197
    %3281 = vmax.xlane.f32.xlu0 %v3280
    %v3282 = vpop.xlane.xlu0 %3281
    %v3283 = vsel %vm3274, %v3261, -inf
    %v3284 = vsel %vm3274, %v3262, -inf
    %v3285 = vmax.f32 %v3283, %v3284
    %3286 = vmax.xlane.f32.xlu0 %v3285
    %v3287 = vpop.xlane.xlu0 %3286
    %v3292 = vlaneseq
    %v3293 = vshrl.u32 %v3292, 7
    %v3294 = vsub.s32 0, %v3293
    %v3295 = vrot.slane %v3273, %v3294
    %v3296 = vlaneseq
    %v3297 = vshrl.u32 %v3296, 7
    %v3298 = vsub.s32 1, %v3297
    %v3299 = vrot.slane %v3273, %v3298
    %v3300 = vlaneseq
    %v3301 = vshrl.u32 %v3300, 7
    %v3302 = vsub.s32 2, %v3301
    %v3303 = vrot.slane %v3273, %v3302
    %v3304 = vlaneseq
    %v3305 = vshrl.u32 %v3304, 7
    %v3306 = vsub.s32 3, %v3305
    %v3307 = vrot.slane %v3273, %v3306
    %v3308 = vlaneseq
    %v3309 = vshrl.u32 %v3308, 7
    %v3310 = vsub.s32 4, %v3309
    %v3311 = vrot.slane %v3273, %v3310
    %v3312 = vlaneseq
    %v3313 = vshrl.u32 %v3312, 7
    %v3314 = vsub.s32 5, %v3313
    %v3315 = vrot.slane %v3273, %v3314
    %v3316 = vlaneseq
    %v3317 = vshrl.u32 %v3316, 7
    %v3318 = vsub.s32 6, %v3317
    %v3319 = vrot.slane %v3273, %v3318
    %v3320 = vlaneseq
    %v3321 = vshrl.u32 %v3320, 7
    %v3322 = vsub.s32 7, %v3321
    %v3323 = vrot.slane %v3273, %v3322
    %v3324 = vlaneseq
    %v3325 = vshrl.u32 %v3324, 7
    %v3326 = vsub.s32 0, %v3325
    %v3327 = vrot.slane %v3279, %v3326
    %v3328 = vlaneseq
    %v3329 = vshrl.u32 %v3328, 7
    %v3330 = vsub.s32 1, %v3329
    %v3331 = vrot.slane %v3279, %v3330
    %v3332 = vlaneseq
    %v3333 = vshrl.u32 %v3332, 7
    %v3334 = vsub.s32 2, %v3333
    %v3335 = vrot.slane %v3279, %v3334
    %v3336 = vlaneseq
    %v3337 = vshrl.u32 %v3336, 7
    %v3338 = vsub.s32 3, %v3337
    %v3339 = vrot.slane %v3279, %v3338
    %v3340 = vlaneseq
    %v3341 = vshrl.u32 %v3340, 7
    %v3342 = vsub.s32 4, %v3341
    %v3343 = vrot.slane %v3279, %v3342
    %v3344 = vlaneseq
    %v3345 = vshrl.u32 %v3344, 7
    %v3346 = vsub.s32 5, %v3345
    %v3347 = vrot.slane %v3279, %v3346
    %v3348 = vlaneseq
    %v3349 = vshrl.u32 %v3348, 7
    %v3350 = vsub.s32 6, %v3349
    %v3351 = vrot.slane %v3279, %v3350
    %v3352 = vlaneseq
    %v3353 = vshrl.u32 %v3352, 7
    %v3354 = vsub.s32 0, %v3353
    %v3355 = vrot.slane %v3282, %v3354
    %v3356 = vlaneseq
    %v3357 = vshrl.u32 %v3356, 7
    %v3358 = vsub.s32 1, %v3357
    %v3359 = vrot.slane %v3282, %v3358
    %v3360 = vlaneseq
    %v3361 = vshrl.u32 %v3360, 7
    %v3362 = vsub.s32 2, %v3361
    %v3363 = vrot.slane %v3282, %v3362
    %v3364 = vlaneseq
    %v3365 = vshrl.u32 %v3364, 7
    %v3366 = vsub.s32 3, %v3365
    %v3367 = vrot.slane %v3282, %v3366
    %v3368 = vlaneseq
    %v3369 = vshrl.u32 %v3368, 7
    %v3370 = vsub.s32 4, %v3369
    %v3371 = vrot.slane %v3282, %v3370
    %v3372 = vlaneseq
    %v3373 = vshrl.u32 %v3372, 7
    %v3374 = vsub.s32 5, %v3373
    %v3375 = vrot.slane %v3282, %v3374
    %v3376 = vlaneseq
    %v3377 = vshrl.u32 %v3376, 7
    %v3378 = vsub.s32 6, %v3377
    %v3379 = vrot.slane %v3282, %v3378
    %v3380 = vlaneseq
    %v3381 = vshrl.u32 %v3380, 7
    %v3382 = vsub.s32 7, %v3381
    %v3383 = vrot.slane %v3282, %v3382
    %v3384 = vlaneseq
    %v3385 = vshrl.u32 %v3384, 7
    %v3386 = vsub.s32 0, %v3385
    %v3387 = vrot.slane %v3287, %v3386
    %v3388 = vlaneseq
    %v3389 = vshrl.u32 %v3388, 7
    %v3390 = vsub.s32 1, %v3389
    %v3391 = vrot.slane %v3287, %v3390
    %v3392 = vlaneseq
    %v3393 = vshrl.u32 %v3392, 7
    %v3394 = vsub.s32 2, %v3393
    %v3395 = vrot.slane %v3287, %v3394
    %v3396 = vlaneseq
    %v3397 = vshrl.u32 %v3396, 7
    %v3398 = vsub.s32 3, %v3397
    %v3399 = vrot.slane %v3287, %v3398
    %v3400 = vlaneseq
    %v3401 = vshrl.u32 %v3400, 7
    %v3402 = vsub.s32 4, %v3401
    %v3403 = vrot.slane %v3287, %v3402
    %v3404 = vlaneseq
    %v3405 = vshrl.u32 %v3404, 7
    %v3406 = vsub.s32 5, %v3405
    %v3407 = vrot.slane %v3287, %v3406
    %v3408 = vlaneseq
    %v3409 = vshrl.u32 %v3408, 7
    %v3410 = vsub.s32 6, %v3409
    %v3411 = vrot.slane %v3287, %v3410
    %v3442 = vsub.f32 %v2797, %v3295
    %v3443 = vsub.f32 %v2811, %v3299
    %v3444 = vsub.f32 %v2819, %v3303
    %v3445 = vsub.f32 %v2821, %v3307
    %v3446 = vsub.f32 %v2804, %v3311
    %v3447 = vsub.f32 %v2818, %v3315
    %v3448 = vsub.f32 %v2820, %v3319
    %v3449 = vsub.f32 %v2822, %v3323
    %v3450 = vsub.f32 %v2847, %v3327
    %v3451 = vsub.f32 %v2861, %v3331
    %v3452 = vsub.f32 %v2869, %v3335
    %v3453 = vsub.f32 %v2871, %v3339
    %v3454 = vsub.f32 %v2854, %v3343
    %v3455 = vsub.f32 %v2868, %v3347
    %v3456 = vsub.f32 %v2870, %v3351
    %v3457 = vsub.f32 %v2872, %v3355
    %v3458 = vsub.f32 %v2897, %v3359
    %v3459 = vsub.f32 %v2911, %v3363
    %v3460 = vsub.f32 %v2919, %v3367
    %v3461 = vsub.f32 %v2921, %v3371
    %v3462 = vsub.f32 %v2904, %v3375
    %v3463 = vsub.f32 %v2918, %v3379
    %v3464 = vsub.f32 %v2920, %v3383
    %v3465 = vsub.f32 %v2922, %v3387
    %v3466 = vsub.f32 %v2947, %v3391
    %v3467 = vsub.f32 %v2961, %v3395
    %v3468 = vsub.f32 %v2969, %v3399
    %v3469 = vsub.f32 %v2970, %v3403
    %v3470 = vsub.f32 %v2954, %v3407
    %v3471 = vsub.f32 %v2968, %v3411
    %v3472 = vmul.f32 %v3442, 1.442695
    %v3473 = vpow.pop %v3472
    %v3474 = vmul.f32 %v3443, 1.442695
    %v3475 = vpow.pop %v3474
    %v3476 = vmul.f32 %v3444, 1.442695
    %v3477 = vpow.pop %v3476
    %v3478 = vmul.f32 %v3445, 1.442695
    %v3479 = vpow.pop %v3478
    %v3480 = vmul.f32 %v3446, 1.442695
    %v3481 = vpow.pop %v3480
    %v3482 = vmul.f32 %v3447, 1.442695
    %v3483 = vpow.pop %v3482
    %v3484 = vmul.f32 %v3448, 1.442695
    %v3485 = vpow.pop %v3484
    %v3486 = vmul.f32 %v3449, 1.442695
    %v3487 = vpow.pop %v3486
    %v3488 = vmul.f32 %v3450, 1.442695
    %v3489 = vpow.pop %v3488
    %v3490 = vmul.f32 %v3451, 1.442695
    %v3491 = vpow.pop %v3490
    %v3492 = vmul.f32 %v3452, 1.442695
    %v3493 = vpow.pop %v3492
    %v3494 = vmul.f32 %v3453, 1.442695
    %v3495 = vpow.pop %v3494
    %v3496 = vmul.f32 %v3454, 1.442695
    %v3497 = vpow.pop %v3496
    %v3498 = vmul.f32 %v3455, 1.442695
    %v3499 = vpow.pop %v3498
    %v3500 = vmul.f32 %v3456, 1.442695
    %v3501 = vpow.pop %v3500
    %v3502 = vmul.f32 %v3457, 1.442695
    %v3503 = vpow.pop %v3502
    %v3504 = vmul.f32 %v3458, 1.442695
    %v3505 = vpow.pop %v3504
    %v3506 = vmul.f32 %v3459, 1.442695
    %v3507 = vpow.pop %v3506
    %v3508 = vmul.f32 %v3460, 1.442695
    %v3509 = vpow.pop %v3508
    %v3510 = vmul.f32 %v3461, 1.442695
    %v3511 = vpow.pop %v3510
    %v3512 = vmul.f32 %v3462, 1.442695
    %v3513 = vpow.pop %v3512
    %v3514 = vmul.f32 %v3463, 1.442695
    %v3515 = vpow.pop %v3514
    %v3516 = vmul.f32 %v3464, 1.442695
    %v3517 = vpow.pop %v3516
    %v3518 = vmul.f32 %v3465, 1.442695
    %v3519 = vpow.pop %v3518
    %v3520 = vmul.f32 %v3466, 1.442695
    %v3521 = vpow.pop %v3520
    %v3522 = vmul.f32 %v3467, 1.442695
    %v3523 = vpow.pop %v3522
    %v3524 = vmul.f32 %v3468, 1.442695
    %v3525 = vpow.pop %v3524
    %v3526 = vmul.f32 %v3469, 1.442695
    %v3527 = vpow.pop %v3526
    %v3528 = vmul.f32 %v3470, 1.442695
    %v3529 = vpow.pop %v3528
    %v3530 = vmul.f32 %v3471, 1.442695
    %v3531 = vpow.pop %v3530
    %v3562 = vcombine.low %v3473, %v3475
    %v3563 = vcombine.low %v3477, %v3479
    %v3564 = vcombine.low %v3481, %v3483
    %v3565 = vcombine.low %v3485, %v3487
    %v3567 = vunpack.c.l.s4 1966171168
    %v3568 = vunpack.c.0.s8 %v3567
    %v3569 = vlaneseq
    %v3570 = vshrl.u32 %v3569, 7
    %v3571 = vsub.s32 %v3568, %v3570
    %v3572 = vrot.slane %v3562, %v3571
    %v3574 = vunpack.c.l.s4 1966171168
    %v3575 = vunpack.c.0.s8 %v3574
    %v3576 = vlaneseq
    %v3577 = vshrl.u32 %v3576, 7
    %v3578 = vsub.s32 %v3575, %v3577
    %v3579 = vrot.slane %v3563, %v3578
    %v3581 = vunpack.c.l.s4 1966171168
    %v3582 = vunpack.c.0.s8 %v3581
    %v3583 = vlaneseq
    %v3584 = vshrl.u32 %v3583, 7
    %v3585 = vsub.s32 %v3582, %v3584
    %v3586 = vrot.slane %v3564, %v3585
    %v3588 = vunpack.c.l.s4 1966171168
    %v3589 = vunpack.c.0.s8 %v3588
    %v3590 = vlaneseq
    %v3591 = vshrl.u32 %v3590, 7
    %v3592 = vsub.s32 %v3589, %v3591
    %v3593 = vrot.slane %v3565, %v3592
    %v3594 = vcombine.low %v3572, %v3579
    %v3595 = vcombine.high %v3572, %v3579
    %v3596 = vcombine.low %v3586, %v3593
    %v3597 = vcombine.high %v3586, %v3593
    %v3599 = vunpack.c.l.s4 1966171168
    %v3600 = vunpack.c.0.s8 %v3599
    %v3601 = vlaneseq
    %v3602 = vshrl.u32 %v3601, 7
    %v3603 = vsub.s32 %v3600, %v3602
    %v3604 = vrot.slane %v3594, %v3603
    %v3606 = vunpack.c.l.s4 1966171168
    %v3607 = vunpack.c.0.s8 %v3606
    %v3608 = vlaneseq
    %v3609 = vshrl.u32 %v3608, 7
    %v3610 = vsub.s32 %v3607, %v3609
    %v3611 = vrot.slane %v3595, %v3610
    %v3613 = vunpack.c.l.s4 1966171168
    %v3614 = vunpack.c.0.s8 %v3613
    %v3615 = vlaneseq
    %v3616 = vshrl.u32 %v3615, 7
    %v3617 = vsub.s32 %v3614, %v3616
    %v3618 = vrot.slane %v3596, %v3617
    %v3620 = vunpack.c.l.s4 1966171168
    %v3621 = vunpack.c.0.s8 %v3620
    %v3622 = vlaneseq
    %v3623 = vshrl.u32 %v3622, 7
    %v3624 = vsub.s32 %v3621, %v3623
    %v3625 = vrot.slane %v3597, %v3624
    %v3626 = vcombine.low %v3604, %v3618
    %v3627 = vcombine.low %v3611, %v3625
    %v3628 = vcombine.low %v3489, %v3491
    %v3629 = vcombine.low %v3493, %v3495
    %v3630 = vcombine.low %v3497, %v3499
    %v3632 = vunpack.c.l.s4 1966171168
    %v3633 = vunpack.c.0.s8 %v3632
    %v3634 = vlaneseq
    %v3635 = vshrl.u32 %v3634, 7
    %v3636 = vsub.s32 %v3633, %v3635
    %v3637 = vrot.slane %v3628, %v3636
    %v3639 = vunpack.c.l.s4 1966171168
    %v3640 = vunpack.c.0.s8 %v3639
    %v3641 = vlaneseq
    %v3642 = vshrl.u32 %v3641, 7
    %v3643 = vsub.s32 %v3640, %v3642
    %v3644 = vrot.slane %v3629, %v3643
    %v3646 = vunpack.c.l.s4 1966171168
    %v3647 = vunpack.c.0.s8 %v3646
    %v3648 = vlaneseq
    %v3649 = vshrl.u32 %v3648, 7
    %v3650 = vsub.s32 %v3647, %v3649
    %v3651 = vrot.slane %v3630, %v3650
    %v3653 = vunpack.c.l.s4 1966171168
    %v3654 = vunpack.c.0.s8 %v3653
    %v3655 = vlaneseq
    %v3656 = vshrl.u32 %v3655, 7
    %v3657 = vsub.s32 %v3654, %v3656
    %v3658 = vrot.slane %v3501, %v3657
    %v3659 = vcombine.low %v3637, %v3644
    %v3660 = vcombine.high %v3637, %v3644
    %v3661 = vcombine.low %v3651, %v3658
    %v3662 = vcombine.high %v3651, %v3658
    %v3664 = vunpack.c.l.s4 1966171168
    %v3665 = vunpack.c.0.s8 %v3664
    %v3666 = vlaneseq
    %v3667 = vshrl.u32 %v3666, 7
    %v3668 = vsub.s32 %v3665, %v3667
    %v3669 = vrot.slane %v3659, %v3668
    %v3671 = vunpack.c.l.s4 1966171168
    %v3672 = vunpack.c.0.s8 %v3671
    %v3673 = vlaneseq
    %v3674 = vshrl.u32 %v3673, 7
    %v3675 = vsub.s32 %v3672, %v3674
    %v3676 = vrot.slane %v3660, %v3675
    %v3678 = vunpack.c.l.s4 1966171168
    %v3679 = vunpack.c.0.s8 %v3678
    %v3680 = vlaneseq
    %v3681 = vshrl.u32 %v3680, 7
    %v3682 = vsub.s32 %v3679, %v3681
    %v3683 = vrot.slane %v3661, %v3682
    %v3685 = vunpack.c.l.s4 1966171168
    %v3686 = vunpack.c.0.s8 %v3685
    %v3687 = vlaneseq
    %v3688 = vshrl.u32 %v3687, 7
    %v3689 = vsub.s32 %v3686, %v3688
    %v3690 = vrot.slane %v3662, %v3689
    %v3691 = vcombine.low %v3669, %v3683
    %v3692 = vcombine.low %v3676, %v3690
    %v3693 = vcombine.low %v3503, %v3505
    %v3694 = vcombine.low %v3507, %v3509
    %v3695 = vcombine.low %v3511, %v3513
    %v3696 = vcombine.low %v3515, %v3517
    %v3698 = vunpack.c.l.s4 1966171168
    %v3699 = vunpack.c.0.s8 %v3698
    %v3700 = vlaneseq
    %v3701 = vshrl.u32 %v3700, 7
    %v3702 = vsub.s32 %v3699, %v3701
    %v3703 = vrot.slane %v3693, %v3702
    %v3705 = vunpack.c.l.s4 1966171168
    %v3706 = vunpack.c.0.s8 %v3705
    %v3707 = vlaneseq
    %v3708 = vshrl.u32 %v3707, 7
    %v3709 = vsub.s32 %v3706, %v3708
    %v3710 = vrot.slane %v3694, %v3709
    %v3712 = vunpack.c.l.s4 1966171168
    %v3713 = vunpack.c.0.s8 %v3712
    %v3714 = vlaneseq
    %v3715 = vshrl.u32 %v3714, 7
    %v3716 = vsub.s32 %v3713, %v3715
    %v3717 = vrot.slane %v3695, %v3716
    %v3719 = vunpack.c.l.s4 1966171168
    %v3720 = vunpack.c.0.s8 %v3719
    %v3721 = vlaneseq
    %v3722 = vshrl.u32 %v3721, 7
    %v3723 = vsub.s32 %v3720, %v3722
    %v3724 = vrot.slane %v3696, %v3723
    %v3725 = vcombine.low %v3703, %v3710
    %v3726 = vcombine.high %v3703, %v3710
    %v3727 = vcombine.low %v3717, %v3724
    %v3728 = vcombine.high %v3717, %v3724
    %v3730 = vunpack.c.l.s4 1966171168
    %v3731 = vunpack.c.0.s8 %v3730
    %v3732 = vlaneseq
    %v3733 = vshrl.u32 %v3732, 7
    %v3734 = vsub.s32 %v3731, %v3733
    %v3735 = vrot.slane %v3725, %v3734
    %v3737 = vunpack.c.l.s4 1966171168
    %v3738 = vunpack.c.0.s8 %v3737
    %v3739 = vlaneseq
    %v3740 = vshrl.u32 %v3739, 7
    %v3741 = vsub.s32 %v3738, %v3740
    %v3742 = vrot.slane %v3726, %v3741
    %v3744 = vunpack.c.l.s4 1966171168
    %v3745 = vunpack.c.0.s8 %v3744
    %v3746 = vlaneseq
    %v3747 = vshrl.u32 %v3746, 7
    %v3748 = vsub.s32 %v3745, %v3747
    %v3749 = vrot.slane %v3727, %v3748
    %v3751 = vunpack.c.l.s4 1966171168
    %v3752 = vunpack.c.0.s8 %v3751
    %v3753 = vlaneseq
    %v3754 = vshrl.u32 %v3753, 7
    %v3755 = vsub.s32 %v3752, %v3754
    %v3756 = vrot.slane %v3728, %v3755
    %v3757 = vcombine.low %v3735, %v3749
    %v3758 = vcombine.low %v3742, %v3756
    %v3759 = vcombine.low %v3519, %v3521
    %v3760 = vcombine.low %v3523, %v3525
    %v3761 = vcombine.low %v3527, %v3529
    %v3763 = vunpack.c.l.s4 1966171168
    %v3764 = vunpack.c.0.s8 %v3763
    %v3765 = vlaneseq
    %v3766 = vshrl.u32 %v3765, 7
    %v3767 = vsub.s32 %v3764, %v3766
    %v3768 = vrot.slane %v3759, %v3767
    %v3770 = vunpack.c.l.s4 1966171168
    %v3771 = vunpack.c.0.s8 %v3770
    %v3772 = vlaneseq
    %v3773 = vshrl.u32 %v3772, 7
    %v3774 = vsub.s32 %v3771, %v3773
    %v3775 = vrot.slane %v3760, %v3774
    %v3777 = vunpack.c.l.s4 1966171168
    %v3778 = vunpack.c.0.s8 %v3777
    %v3779 = vlaneseq
    %v3780 = vshrl.u32 %v3779, 7
    %v3781 = vsub.s32 %v3778, %v3780
    %v3782 = vrot.slane %v3761, %v3781
    %v3784 = vunpack.c.l.s4 1966171168
    %v3785 = vunpack.c.0.s8 %v3784
    %v3786 = vlaneseq
    %v3787 = vshrl.u32 %v3786, 7
    %v3788 = vsub.s32 %v3785, %v3787
    %v3789 = vrot.slane %v3531, %v3788
    %v3790 = vcombine.low %v3768, %v3775
    %v3791 = vcombine.high %v3768, %v3775
    %v3792 = vcombine.low %v3782, %v3789
    %v3793 = vcombine.high %v3782, %v3789
    %v3795 = vunpack.c.l.s4 1966171168
    %v3796 = vunpack.c.0.s8 %v3795
    %v3797 = vlaneseq
    %v3798 = vshrl.u32 %v3797, 7
    %v3799 = vsub.s32 %v3796, %v3798
    %v3800 = vrot.slane %v3790, %v3799
    %v3802 = vunpack.c.l.s4 1966171168
    %v3803 = vunpack.c.0.s8 %v3802
    %v3804 = vlaneseq
    %v3805 = vshrl.u32 %v3804, 7
    %v3806 = vsub.s32 %v3803, %v3805
    %v3807 = vrot.slane %v3791, %v3806
    %v3809 = vunpack.c.l.s4 1966171168
    %v3810 = vunpack.c.0.s8 %v3809
    %v3811 = vlaneseq
    %v3812 = vshrl.u32 %v3811, 7
    %v3813 = vsub.s32 %v3810, %v3812
    %v3814 = vrot.slane %v3792, %v3813
    %v3816 = vunpack.c.l.s4 1966171168
    %v3817 = vunpack.c.0.s8 %v3816
    %v3818 = vlaneseq
    %v3819 = vshrl.u32 %v3818, 7
    %v3820 = vsub.s32 %v3817, %v3819
    %v3821 = vrot.slane %v3793, %v3820
    %v3822 = vcombine.low %v3800, %v3814
    %v3823 = vcombine.low %v3807, %v3821
    %v3832 = vadd.f32 %v3626, %v3627
    %3833 = vadd.xlane.f32.xlu0 %v3832
    %v3834 = vpop.xlane.xlu0 %3833
    %v3835 = vsel %vm3274, %v3691, 0.0
    %v3836 = vsel %vm3274, %v3692, 0.0
    %v3837 = vadd.f32 %v3835, %v3836
    %3838 = vadd.xlane.f32.xlu0 %v3837
    %v3839 = vpop.xlane.xlu0 %3838
    %v3840 = vadd.f32 %v3757, %v3758
    %3841 = vadd.xlane.f32.xlu0 %v3840
    %v3842 = vpop.xlane.xlu0 %3841
    %v3843 = vsel %vm3274, %v3822, 0.0
    %v3844 = vsel %vm3274, %v3823, 0.0
    %v3845 = vadd.f32 %v3843, %v3844
    %3846 = vadd.xlane.f32.xlu0 %v3845
    %v3847 = vpop.xlane.xlu0 %3846
    %v3848 = vlog2.pop %v3834
    %v3849 = vmul.f32 %v3848, 0.6931472
    %v3850 = vlog2.pop %v3839
    %v3851 = vmul.f32 %v3850, 0.6931472
    %v3852 = vlog2.pop %v3842
    %v3853 = vmul.f32 %v3852, 0.6931472
    %v3854 = vlog2.pop %v3847
    %v3855 = vmul.f32 %v3854, 0.6931472
    %v3856 = vadd.f32 %v3273, %v3849
    %v3857 = vadd.f32 %v3279, %v3851
    %v3858 = vadd.f32 %v3282, %v3853
    %v3859 = vadd.f32 %v3287, %v3855
    %v3860 = vld [vmem:[%s10] sm:$0x3]
    %v3861 = vlaneseq
    %v3862 = vand.u32 %v3861, 127
    %v3863 = vadd.s32 %v3862, 128
    %v3864 = vlaneseq
    %v3865 = vshrl.u32 %v3864, 7
    %v3866 = vsub.s32 0, %v3865
    %v3867 = vrot.slane %v3860, %v3866
    %3869 = vbcast.lane.b32.xlu0 %v3867, 256
    %v3870 = vpop.permute.xlu0 %3869
    %s3872 = sor.u32 256, 8
    %3873 = vbcast.lane.b32.xlu0 %v3867, %s3872
    %v3874 = vpop.permute.xlu0 %3873
    %v3875 = vlaneseq
    %v3876 = vshrl.u32 %v3875, 7
    %v3877 = vsub.s32 1, %v3876
    %v3878 = vrot.slane %v3860, %v3877
    %3880 = vbcast.lane.b32.xlu0 %v3878, 256
    %v3881 = vpop.permute.xlu0 %3880
    %s3883 = sor.u32 256, 8
    %3884 = vbcast.lane.b32.xlu0 %v3878, %s3883
    %v3885 = vpop.permute.xlu0 %3884
    %vm3886 = vcmp.eq.s32.totalorder %v3862, %v3870
    %vm3887 = vcmp.eq.s32.totalorder %v3863, %v3870
    %vm3888 = vcmp.eq.s32.totalorder %v3862, %v3874
    %vm3889 = vcmp.eq.s32.totalorder %v3863, %v3874
    %vm3890 = vcmp.eq.s32.totalorder %v3862, %v3881
    %vm3891 = vcmp.eq.s32.totalorder %v3863, %v3881
    %vm3892 = vcmp.eq.s32.totalorder %v3862, %v3885
    %vm3893 = vcmp.eq.s32.totalorder %v3863, %v3885
    %v3894 = vsel %vm3886, %v3065, 0.0
    %v3895 = vsel %vm3887, %v3066, 0.0
    %v3896 = vsel %vm3888, %v3130, 0.0
    %v3897 = vsel %vm3889, %v3131, 0.0
    %v3898 = vsel %vm3890, %v3196, 0.0
    %v3899 = vsel %vm3891, %v3197, 0.0
    %v3900 = vsel %vm3892, %v3261, 0.0
    %v3901 = vsel %vm3893, %v3262, 0.0
    %v3902 = vadd.f32 %v3894, %v3895
    %v3903 = vsel %vm3274, %v3896, 0.0
    %v3904 = vadd.f32 %v3902, %v3903
    %v3905 = vsel %vm3274, %v3897, 0.0
    %v3906 = vadd.f32 %v3904, %v3905
    %v3907 = vadd.f32 %v3906, %v3898
    %v3908 = vadd.f32 %v3907, %v3899
    %v3909 = vsel %vm3274, %v3900, 0.0
    %v3910 = vadd.f32 %v3908, %v3909
    %v3911 = vsel %vm3274, %v3901, 0.0
    %v3912 = vadd.f32 %v3910, %v3911
    %3913 = vadd.xlane.f32.xlu0 %v3912
    %v3914 = vpop.xlane.xlu0 %3913
    %v3915 = vrot.slane %v3914, 4
    %v3916 = vadd.f32 %v3914, %v3915
    %v3917 = vrot.slane %v3916, 2
    %v3918 = vadd.f32 %v3916, %v3917
    %v3919 = vrot.slane %v3918, 1
    %v3920 = vadd.f32 %v3918, %v3919
    %s3921 = vtos %v3920
    %vm3922 = vcmask 7168
    %v3923 = vsel %vm3922, %v3856, 0.0
    %vm3924 = vcmask 6144
    %v3925 = vsel %vm3924, %v3857, 0.0
    %v3926 = vadd.f32 %v3923, %v3925
    %v3927 = vsel %vm3922, %v3858, 0.0
    %v3928 = vadd.f32 %v3926, %v3927
    %v3929 = vsel %vm3924, %v3859, 0.0
    %v3930 = vadd.f32 %v3928, %v3929
    %3931 = vadd.xlane.f32.xlu0 %v3930
    %v3932 = vpop.xlane.xlu0 %3931
    %v3933 = vrot.slane %v3932, 4
    %v3934 = vadd.f32 %v3932, %v3933
    %v3935 = vrot.slane %v3934, 2
    %v3936 = vadd.f32 %v3934, %v3935
    %v3937 = vrot.slane %v3936, 1
    %v3938 = vadd.f32 %v3936, %v3937
    %s3939 = vtos %v3938
    %s3940 = ssub.f32 %s3939, %s3921
    %s3941 = scalar_lea.smem [#allocation7], 0
    %3942 = sst [smem:[%s3941]] %s3940
    %vm3943 = vcmp.eq.f32.partialorder %v2797, %v3295
    %vm3944 = vcmp.eq.f32.partialorder %v2811, %v3299
    %vm3945 = vcmp.eq.f32.partialorder %v2819, %v3303
    %vm3946 = vcmp.eq.f32.partialorder %v2821, %v3307
    %vm3947 = vcmp.eq.f32.partialorder %v2804, %v3311
    %vm3948 = vcmp.eq.f32.partialorder %v2818, %v3315
    %vm3949 = vcmp.eq.f32.partialorder %v2820, %v3319
    %vm3950 = vcmp.eq.f32.partialorder %v2822, %v3323
    %vm3951 = vcmp.eq.f32.partialorder %v2847, %v3327
    %vm3952 = vcmp.eq.f32.partialorder %v2861, %v3331
    %vm3953 = vcmp.eq.f32.partialorder %v2869, %v3335
    %vm3954 = vcmp.eq.f32.partialorder %v2871, %v3339
    %vm3955 = vcmp.eq.f32.partialorder %v2854, %v3343
    %vm3956 = vcmp.eq.f32.partialorder %v2868, %v3347
    %vm3957 = vcmp.eq.f32.partialorder %v2870, %v3351
    %vm3958 = vcmp.eq.f32.partialorder %v2872, %v3355
    %vm3959 = vcmp.eq.f32.partialorder %v2897, %v3359
    %vm3960 = vcmp.eq.f32.partialorder %v2911, %v3363
    %vm3961 = vcmp.eq.f32.partialorder %v2919, %v3367
    %vm3962 = vcmp.eq.f32.partialorder %v2921, %v3371
    %vm3963 = vcmp.eq.f32.partialorder %v2904, %v3375
    %vm3964 = vcmp.eq.f32.partialorder %v2918, %v3379
    %vm3965 = vcmp.eq.f32.partialorder %v2920, %v3383
    %vm3966 = vcmp.eq.f32.partialorder %v2922, %v3387
    %vm3967 = vcmp.eq.f32.partialorder %v2947, %v3391
    %vm3968 = vcmp.eq.f32.partialorder %v2961, %v3395
    %vm3969 = vcmp.eq.f32.partialorder %v2969, %v3399
    %vm3970 = vcmp.eq.f32.partialorder %v2970, %v3403
    %vm3971 = vcmp.eq.f32.partialorder %v2954, %v3407
    %vm3972 = vcmp.eq.f32.partialorder %v2968, %v3411
    %v3973 = vcombine.low %v3862, %v3863
    %v3974 = vcombine.high %v3862, %v3863
    %v3976 = vunpack.c.l.s4 1966171168
    %v3977 = vunpack.c.0.s8 %v3976
    %v3978 = vlaneseq
    %v3979 = vshrl.u32 %v3978, 7
    %v3980 = vsub.s32 %v3977, %v3979
    %v3981 = vrot.slane %v3973, %v3980
    %v3983 = vunpack.c.l.s4 1966171168
    %v3984 = vunpack.c.0.s8 %v3983
    %v3985 = vlaneseq
    %v3986 = vshrl.u32 %v3985, 7
    %v3987 = vsub.s32 %v3984, %v3986
    %v3988 = vrot.slane %v3974, %v3987
    %v3989 = vcombine.high %v3981, %v3981
    %v3990 = vcombine.high %v3988, %v3988
    %v3992 = vunpack.c.l.s4 1966171168
    %v3993 = vunpack.c.0.s8 %v3992
    %v3994 = vlaneseq
    %v3995 = vshrl.u32 %v3994, 7
    %v3996 = vsub.s32 %v3993, %v3995
    %v3997 = vrot.slane %v3981, %v3996
    %v3999 = vunpack.c.l.s4 1966171168
    %v4000 = vunpack.c.0.s8 %v3999
    %v4001 = vlaneseq
    %v4002 = vshrl.u32 %v4001, 7
    %v4003 = vsub.s32 %v4000, %v4002
    %v4004 = vrot.slane %v3988, %v4003
    %v4006 = vunpack.c.l.s4 1966171168
    %v4007 = vunpack.c.0.s8 %v4006
    %v4008 = vlaneseq
    %v4009 = vshrl.u32 %v4008, 7
    %v4010 = vsub.s32 %v4007, %v4009
    %v4011 = vrot.slane %v3989, %v4010
    %v4013 = vunpack.c.l.s4 1966171168
    %v4014 = vunpack.c.0.s8 %v4013
    %v4015 = vlaneseq
    %v4016 = vshrl.u32 %v4015, 7
    %v4017 = vsub.s32 %v4014, %v4016
    %v4018 = vrot.slane %v3990, %v4017
    %v4019 = vcombine.high %v3997, %v3997
    %v4020 = vcombine.high %v4004, %v4004
    %v4021 = vcombine.high %v4011, %v4011
    %v4022 = vcombine.high %v4018, %v4018
    %v4023 = vsel %vm3943, %v3997, 256
    %v4024 = vsel %vm3944, %v4011, 256
    %v4025 = vsel %vm3945, %v4019, 256
    %v4026 = vsel %vm3946, %v4021, 256
    %v4027 = vsel %vm3947, %v4004, 256
    %v4028 = vsel %vm3948, %v4018, 256
    %v4029 = vsel %vm3949, %v4020, 256
    %v4030 = vsel %vm3950, %v4022, 256
    %v4031 = vsel %vm3951, %v3997, 256
    %v4032 = vsel %vm3952, %v4011, 256
    %v4033 = vsel %vm3953, %v4019, 256
    %v4034 = vsel %vm3954, %v4021, 256
    %v4035 = vsel %vm3955, %v4004, 256
    %v4036 = vsel %vm3956, %v4018, 256
    %v4037 = vsel %vm3957, %v4020, 256
    %v4038 = vsel %vm3958, %v3997, 256
    %v4039 = vsel %vm3959, %v4011, 256
    %v4040 = vsel %vm3960, %v4019, 256
    %v4041 = vsel %vm3961, %v4021, 256
    %v4042 = vsel %vm3962, %v4004, 256
    %v4043 = vsel %vm3963, %v4018, 256
    %v4044 = vsel %vm3964, %v4020, 256
    %v4045 = vsel %vm3965, %v4022, 256
    %v4046 = vsel %vm3966, %v3997, 256
    %v4047 = vsel %vm3967, %v4011, 256
    %v4048 = vsel %vm3968, %v4019, 256
    %v4049 = vsel %vm3969, %v4021, 256
    %v4050 = vsel %vm3970, %v4004, 256
    %v4051 = vsel %vm3971, %v4018, 256
    %v4052 = vsel %vm3972, %v4020, 256
    %v4053 = vcombine.low %v4023, %v4024
    %v4054 = vcombine.low %v4025, %v4026
    %v4055 = vcombine.low %v4027, %v4028
    %v4056 = vcombine.low %v4029, %v4030
    %v4058 = vunpack.c.l.s4 1966171168
    %v4059 = vunpack.c.0.s8 %v4058
    %v4060 = vlaneseq
    %v4061 = vshrl.u32 %v4060, 7
    %v4062 = vsub.s32 %v4059, %v4061
    %v4063 = vrot.slane %v4053, %v4062
    %v4065 = vunpack.c.l.s4 1966171168
    %v4066 = vunpack.c.0.s8 %v4065
    %v4067 = vlaneseq
    %v4068 = vshrl.u32 %v4067, 7
    %v4069 = vsub.s32 %v4066, %v4068
    %v4070 = vrot.slane %v4054, %v4069
    %v4072 = vunpack.c.l.s4 1966171168
    %v4073 = vunpack.c.0.s8 %v4072
    %v4074 = vlaneseq
    %v4075 = vshrl.u32 %v4074, 7
    %v4076 = vsub.s32 %v4073, %v4075
    %v4077 = vrot.slane %v4055, %v4076
    %v4079 = vunpack.c.l.s4 1966171168
    %v4080 = vunpack.c.0.s8 %v4079
    %v4081 = vlaneseq
    %v4082 = vshrl.u32 %v4081, 7
    %v4083 = vsub.s32 %v4080, %v4082
    %v4084 = vrot.slane %v4056, %v4083
    %v4085 = vcombine.low %v4063, %v4070
    %v4086 = vcombine.high %v4063, %v4070
    %v4087 = vcombine.low %v4077, %v4084
    %v4088 = vcombine.high %v4077, %v4084
    %v4090 = vunpack.c.l.s4 1966171168
    %v4091 = vunpack.c.0.s8 %v4090
    %v4092 = vlaneseq
    %v4093 = vshrl.u32 %v4092, 7
    %v4094 = vsub.s32 %v4091, %v4093
    %v4095 = vrot.slane %v4085, %v4094
    %v4097 = vunpack.c.l.s4 1966171168
    %v4098 = vunpack.c.0.s8 %v4097
    %v4099 = vlaneseq
    %v4100 = vshrl.u32 %v4099, 7
    %v4101 = vsub.s32 %v4098, %v4100
    %v4102 = vrot.slane %v4086, %v4101
    %v4104 = vunpack.c.l.s4 1966171168
    %v4105 = vunpack.c.0.s8 %v4104
    %v4106 = vlaneseq
    %v4107 = vshrl.u32 %v4106, 7
    %v4108 = vsub.s32 %v4105, %v4107
    %v4109 = vrot.slane %v4087, %v4108
    %v4111 = vunpack.c.l.s4 1966171168
    %v4112 = vunpack.c.0.s8 %v4111
    %v4113 = vlaneseq
    %v4114 = vshrl.u32 %v4113, 7
    %v4115 = vsub.s32 %v4112, %v4114
    %v4116 = vrot.slane %v4088, %v4115
    %v4117 = vcombine.low %v4095, %v4109
    %v4118 = vcombine.low %v4102, %v4116
    %v4119 = vcombine.low %v4031, %v4032
    %v4120 = vcombine.low %v4033, %v4034
    %v4121 = vcombine.low %v4035, %v4036
    %v4123 = vunpack.c.l.s4 1966171168
    %v4124 = vunpack.c.0.s8 %v4123
    %v4125 = vlaneseq
    %v4126 = vshrl.u32 %v4125, 7
    %v4127 = vsub.s32 %v4124, %v4126
    %v4128 = vrot.slane %v4119, %v4127
    %v4130 = vunpack.c.l.s4 1966171168
    %v4131 = vunpack.c.0.s8 %v4130
    %v4132 = vlaneseq
    %v4133 = vshrl.u32 %v4132, 7
    %v4134 = vsub.s32 %v4131, %v4133
    %v4135 = vrot.slane %v4120, %v4134
    %v4137 = vunpack.c.l.s4 1966171168
    %v4138 = vunpack.c.0.s8 %v4137
    %v4139 = vlaneseq
    %v4140 = vshrl.u32 %v4139, 7
    %v4141 = vsub.s32 %v4138, %v4140
    %v4142 = vrot.slane %v4121, %v4141
    %v4144 = vunpack.c.l.s4 1966171168
    %v4145 = vunpack.c.0.s8 %v4144
    %v4146 = vlaneseq
    %v4147 = vshrl.u32 %v4146, 7
    %v4148 = vsub.s32 %v4145, %v4147
    %v4149 = vrot.slane %v4037, %v4148
    %v4150 = vcombine.low %v4128, %v4135
    %v4151 = vcombine.high %v4128, %v4135
    %v4152 = vcombine.low %v4142, %v4149
    %v4153 = vcombine.high %v4142, %v4149
    %v4155 = vunpack.c.l.s4 1966171168
    %v4156 = vunpack.c.0.s8 %v4155
    %v4157 = vlaneseq
    %v4158 = vshrl.u32 %v4157, 7
    %v4159 = vsub.s32 %v4156, %v4158
    %v4160 = vrot.slane %v4150, %v4159
    %v4162 = vunpack.c.l.s4 1966171168
    %v4163 = vunpack.c.0.s8 %v4162
    %v4164 = vlaneseq
    %v4165 = vshrl.u32 %v4164, 7
    %v4166 = vsub.s32 %v4163, %v4165
    %v4167 = vrot.slane %v4151, %v4166
    %v4169 = vunpack.c.l.s4 1966171168
    %v4170 = vunpack.c.0.s8 %v4169
    %v4171 = vlaneseq
    %v4172 = vshrl.u32 %v4171, 7
    %v4173 = vsub.s32 %v4170, %v4172
    %v4174 = vrot.slane %v4152, %v4173
    %v4176 = vunpack.c.l.s4 1966171168
    %v4177 = vunpack.c.0.s8 %v4176
    %v4178 = vlaneseq
    %v4179 = vshrl.u32 %v4178, 7
    %v4180 = vsub.s32 %v4177, %v4179
    %v4181 = vrot.slane %v4153, %v4180
    %v4182 = vcombine.low %v4160, %v4174
    %v4183 = vcombine.low %v4167, %v4181
    %v4184 = vcombine.low %v4038, %v4039
    %v4185 = vcombine.low %v4040, %v4041
    %v4186 = vcombine.low %v4042, %v4043
    %v4187 = vcombine.low %v4044, %v4045
    %v4189 = vunpack.c.l.s4 1966171168
    %v4190 = vunpack.c.0.s8 %v4189
    %v4191 = vlaneseq
    %v4192 = vshrl.u32 %v4191, 7
    %v4193 = vsub.s32 %v4190, %v4192
    %v4194 = vrot.slane %v4184, %v4193
    %v4196 = vunpack.c.l.s4 1966171168
    %v4197 = vunpack.c.0.s8 %v4196
    %v4198 = vlaneseq
    %v4199 = vshrl.u32 %v4198, 7
    %v4200 = vsub.s32 %v4197, %v4199
    %v4201 = vrot.slane %v4185, %v4200
    %v4203 = vunpack.c.l.s4 1966171168
    %v4204 = vunpack.c.0.s8 %v4203
    %v4205 = vlaneseq
    %v4206 = vshrl.u32 %v4205, 7
    %v4207 = vsub.s32 %v4204, %v4206
    %v4208 = vrot.slane %v4186, %v4207
    %v4210 = vunpack.c.l.s4 1966171168
    %v4211 = vunpack.c.0.s8 %v4210
    %v4212 = vlaneseq
    %v4213 = vshrl.u32 %v4212, 7
    %v4214 = vsub.s32 %v4211, %v4213
    %v4215 = vrot.slane %v4187, %v4214
    %v4216 = vcombine.low %v4194, %v4201
    %v4217 = vcombine.high %v4194, %v4201
    %v4218 = vcombine.low %v4208, %v4215
    %v4219 = vcombine.high %v4208, %v4215
    %v4221 = vunpack.c.l.s4 1966171168
    %v4222 = vunpack.c.0.s8 %v4221
    %v4223 = vlaneseq
    %v4224 = vshrl.u32 %v4223, 7
    %v4225 = vsub.s32 %v4222, %v4224
    %v4226 = vrot.slane %v4216, %v4225
    %v4228 = vunpack.c.l.s4 1966171168
    %v4229 = vunpack.c.0.s8 %v4228
    %v4230 = vlaneseq
    %v4231 = vshrl.u32 %v4230, 7
    %v4232 = vsub.s32 %v4229, %v4231
    %v4233 = vrot.slane %v4217, %v4232
    %v4235 = vunpack.c.l.s4 1966171168
    %v4236 = vunpack.c.0.s8 %v4235
    %v4237 = vlaneseq
    %v4238 = vshrl.u32 %v4237, 7
    %v4239 = vsub.s32 %v4236, %v4238
    %v4240 = vrot.slane %v4218, %v4239
    %v4242 = vunpack.c.l.s4 1966171168
    %v4243 = vunpack.c.0.s8 %v4242
    %v4244 = vlaneseq
    %v4245 = vshrl.u32 %v4244, 7
    %v4246 = vsub.s32 %v4243, %v4245
    %v4247 = vrot.slane %v4219, %v4246
    %v4248 = vcombine.low %v4226, %v4240
    %v4249 = vcombine.low %v4233, %v4247
    %v4250 = vcombine.low %v4046, %v4047
    %v4251 = vcombine.low %v4048, %v4049
    %v4252 = vcombine.low %v4050, %v4051
    %v4254 = vunpack.c.l.s4 1966171168
    %v4255 = vunpack.c.0.s8 %v4254
    %v4256 = vlaneseq
    %v4257 = vshrl.u32 %v4256, 7
    %v4258 = vsub.s32 %v4255, %v4257
    %v4259 = vrot.slane %v4250, %v4258
    %v4261 = vunpack.c.l.s4 1966171168
    %v4262 = vunpack.c.0.s8 %v4261
    %v4263 = vlaneseq
    %v4264 = vshrl.u32 %v4263, 7
    %v4265 = vsub.s32 %v4262, %v4264
    %v4266 = vrot.slane %v4251, %v4265
    %v4268 = vunpack.c.l.s4 1966171168
    %v4269 = vunpack.c.0.s8 %v4268
    %v4270 = vlaneseq
    %v4271 = vshrl.u32 %v4270, 7
    %v4272 = vsub.s32 %v4269, %v4271
    %v4273 = vrot.slane %v4252, %v4272
    %v4275 = vunpack.c.l.s4 1966171168
    %v4276 = vunpack.c.0.s8 %v4275
    %v4277 = vlaneseq
    %v4278 = vshrl.u32 %v4277, 7
    %v4279 = vsub.s32 %v4276, %v4278
    %v4280 = vrot.slane %v4052, %v4279
    %v4281 = vcombine.low %v4259, %v4266
    %v4282 = vcombine.high %v4259, %v4266
    %v4283 = vcombine.low %v4273, %v4280
    %v4284 = vcombine.high %v4273, %v4280
    %v4286 = vunpack.c.l.s4 1966171168
    %v4287 = vunpack.c.0.s8 %v4286
    %v4288 = vlaneseq
    %v4289 = vshrl.u32 %v4288, 7
    %v4290 = vsub.s32 %v4287, %v4289
    %v4291 = vrot.slane %v4281, %v4290
    %v4293 = vunpack.c.l.s4 1966171168
    %v4294 = vunpack.c.0.s8 %v4293
    %v4295 = vlaneseq
    %v4296 = vshrl.u32 %v4295, 7
    %v4297 = vsub.s32 %v4294, %v4296
    %v4298 = vrot.slane %v4282, %v4297
    %v4300 = vunpack.c.l.s4 1966171168
    %v4301 = vunpack.c.0.s8 %v4300
    %v4302 = vlaneseq
    %v4303 = vshrl.u32 %v4302, 7
    %v4304 = vsub.s32 %v4301, %v4303
    %v4305 = vrot.slane %v4283, %v4304
    %v4307 = vunpack.c.l.s4 1966171168
    %v4308 = vunpack.c.0.s8 %v4307
    %v4309 = vlaneseq
    %v4310 = vshrl.u32 %v4309, 7
    %v4311 = vsub.s32 %v4308, %v4310
    %v4312 = vrot.slane %v4284, %v4311
    %v4313 = vcombine.low %v4291, %v4305
    %v4314 = vcombine.low %v4298, %v4312
    %vm4315 = vcmp.lt.s32.totalorder %v4117, %v4118
    %v4316 = vsel %vm4315, %v4117, %v4118
    %v4317 = vand.u32 %v4316, 65535
    %v4318 = vshra.s32 %v4316, 16
    %v4319 = vcvt.s32.f32 %v4317
    %v4320 = vcvt.s32.f32 %v4318
    %4321 = vmin.xlane.f32.xlu0 %v4320
    %v4322 = vpop.xlane.xlu0 %4321
    %vm4323 = vcmp.eq.f32.partialorder %v4320, %v4322
    %v4324 = vsel %vm4323, %v4319, inf
    %4325 = vmin.xlane.f32.xlu0 %v4324
    %v4326 = vpop.xlane.xlu0 %4325
    %v4327 = vcvt.f32.s32 %v4326
    %v4328 = vcvt.f32.s32 %v4322
    %v4329 = vshll.u32 %v4328, 16
    %v4330 = vadd.s32 %v4329, %v4327
    %v4331 = vsel %vm3274, %v4182, 2147483647
    %v4332 = vsel %vm3274, %v4183, 2147483647
    %vm4333 = vcmp.lt.s32.totalorder %v4331, %v4332
    %v4334 = vsel %vm4333, %v4331, %v4332
    %v4335 = vand.u32 %v4334, 65535
    %v4336 = vshra.s32 %v4334, 16
    %v4337 = vcvt.s32.f32 %v4335
    %v4338 = vcvt.s32.f32 %v4336
    %4339 = vmin.xlane.f32.xlu0 %v4338
    %v4340 = vpop.xlane.xlu0 %4339
    %vm4341 = vcmp.eq.f32.partialorder %v4338, %v4340
    %v4342 = vsel %vm4341, %v4337, inf
    %4343 = vmin.xlane.f32.xlu0 %v4342
    %v4344 = vpop.xlane.xlu0 %4343
    %v4345 = vcvt.f32.s32 %v4344
    %v4346 = vcvt.f32.s32 %v4340
    %v4347 = vshll.u32 %v4346, 16
    %v4348 = vadd.s32 %v4347, %v4345
    %vm4349 = vcmp.lt.s32.totalorder %v4248, %v4249
    %v4350 = vsel %vm4349, %v4248, %v4249
    %v4351 = vand.u32 %v4350, 65535
    %v4352 = vshra.s32 %v4350, 16
    %v4353 = vcvt.s32.f32 %v4351
    %v4354 = vcvt.s32.f32 %v4352
    %4355 = vmin.xlane.f32.xlu0 %v4354
    %v4356 = vpop.xlane.xlu0 %4355
    %vm4357 = vcmp.eq.f32.partialorder %v4354, %v4356
    %v4358 = vsel %vm4357, %v4353, inf
    %4359 = vmin.xlane.f32.xlu0 %v4358
    %v4360 = vpop.xlane.xlu0 %4359
    %v4361 = vcvt.f32.s32 %v4360
    %v4362 = vcvt.f32.s32 %v4356
    %v4363 = vshll.u32 %v4362, 16
    %v4364 = vadd.s32 %v4363, %v4361
    %v4365 = vsel %vm3274, %v4313, 2147483647
    %v4366 = vsel %vm3274, %v4314, 2147483647
    %vm4367 = vcmp.lt.s32.totalorder %v4365, %v4366
    %v4368 = vsel %vm4367, %v4365, %v4366
    %v4369 = vand.u32 %v4368, 65535
    %v4370 = vshra.s32 %v4368, 16
    %v4371 = vcvt.s32.f32 %v4369
    %v4372 = vcvt.s32.f32 %v4370
    %4373 = vmin.xlane.f32.xlu0 %v4372
    %v4374 = vpop.xlane.xlu0 %4373
    %vm4375 = vcmp.eq.f32.partialorder %v4372, %v4374
    %v4376 = vsel %vm4375, %v4371, inf
    %4377 = vmin.xlane.f32.xlu0 %v4376
    %v4378 = vpop.xlane.xlu0 %4377
    %v4379 = vcvt.f32.s32 %v4378
    %v4380 = vcvt.f32.s32 %v4374
    %v4381 = vshll.u32 %v4380, 16
    %v4382 = vadd.s32 %v4381, %v4379
    %vm4383 = vcmp.eq.s32.totalorder %v4330, %v3870
    %vm4384 = vcmp.eq.s32.totalorder %v4348, %v3874
    %vm4385 = vcmp.eq.s32.totalorder %v4364, %v3881
    %vm4386 = vcmp.eq.s32.totalorder %v4382, %v3885
    %v4387 = vsel %vm4383, 1, 0
    %v4388 = vsel %vm4384, 1, 0
    %v4389 = vsel %vm4385, 1, 0
    %v4390 = vsel %vm4386, 1, 0
    %v4391 = vsel %vm3922, %v4387, 0
    %v4392 = vsel %vm3924, %v4388, 0
    %v4393 = vsel %vm3922, %v4389, 0
    %v4394 = vsel %vm3924, %v4390, 0
    %v4395 = vadd.s32 %v4391, %v4392
    %v4396 = vadd.s32 %v4393, %v4394
    %v4397 = vadd.s32 %v4395, %v4396
    %v4398 = vrot.slane %v4397, 4
    %v4399 = vadd.s32 %v4397, %v4398
    %v4400 = vrot.slane %v4399, 2
    %v4401 = vadd.s32 %v4399, %v4400
    %v4402 = vrot.slane %v4401, 1
    %v4403 = vadd.s32 %v4401, %v4402
    %s4404 = vtos %v4403
    %s4405 = scalar_lea.smem [#allocation8], 0
    %4406 = sst [smem:[%s4405]] %s4404
    %vm4407 = vcmp.ne.s32.totalorder %v3860, 4294967295
    %v4408 = vsel %vm4407, 1, 0
    %v4409 = vcvt.s32.f32 %v4408
    %vm4410 = vcmask 115712
    %v4411 = vsel %vm4410, %v4409, 0.0
    %4412 = vadd.xlane.f32.xlu0 %v4411
    %v4413 = vpop.xlane.xlu0 %4412
    %v4414 = vrot.slane %v4413, 4
    %v4415 = vadd.f32 %v4413, %v4414
    %v4416 = vrot.slane %v4415, 2
    %v4417 = vadd.f32 %v4415, %v4416
    %v4418 = vrot.slane %v4417, 1
    %v4419 = vadd.f32 %v4417, %v4418
    %s4420 = vtos %v4419
    %s4421 = scalar_lea.smem [#allocation10], 0
    %4422 = sst [smem:[%s4421]] %s4420
    // Predicated region
    $region54: #{tpu_custom_call.1} parent=1 // pred_check
      _
    $region55: #{tpu_custom_call.1} parent=1 // pred_check_branch
      %4424 = sbr.rel (0) target = $region57
    $region56: #{tpu_custom_call.1} parent=1 // pred_region
      %s4426 = ssub.s32 16, 16
      %4427 = vsyncadd [#allocation4], %s4426
      %4430 = dma.smem_to_hbm [#allocation7], 16, %s11, [#allocation4]
    $region57: #{tpu_custom_call.1} parent=1 // pred_fallthru
      _
    // Predicated region
    $region58: #{tpu_custom_call.1} parent=1 // pred_check
      _
    $region59: #{tpu_custom_call.1} parent=1 // pred_check_branch
      %4432 = sbr.rel (0) target = $region61
    $region60: #{tpu_custom_call.1} parent=1 // pred_region
      %s4434 = ssub.s32 16, 16
      %4435 = vsyncadd [#allocation9], %s4434
      %4438 = dma.smem_to_hbm [#allocation8], 16, %s12, [#allocation9]
    $region61: #{tpu_custom_call.1} parent=1 // pred_fallthru
      _
    // Predicated region
    $region62: #{tpu_custom_call.1} parent=1 // pred_check
      _
    $region63: #{tpu_custom_call.1} parent=1 // pred_check_branch
      %4440 = sbr.rel (0) target = $region65
    $region64: #{tpu_custom_call.1} parent=1 // pred_region
      %s4442 = ssub.s32 16, 16
      %4443 = vsyncadd [#allocation9], %s4442
      %4446 = dma.smem_to_hbm [#allocation10], 16, %s13, [#allocation9]
    $region65: #{tpu_custom_call.1} parent=1 // pred_fallthru
      _
    // Predicated region
    $region66: #{tpu_custom_call.1} parent=1 // pred_check
      _
    $region67: #{tpu_custom_call.1} parent=1 // pred_check_branch
      %4448 = sbr.rel (0) target = $region69
    $region68: #{tpu_custom_call.1} parent=1 // pred_region
      %4449 = dma.done [#allocation4], 16
    $region69: #{tpu_custom_call.1} parent=1 // pred_fallthru
      _
    // Predicated region
    $region70: #{tpu_custom_call.1} parent=1 // pred_check
      _
    $region71: #{tpu_custom_call.1} parent=1 // pred_check_branch
      %4451 = sbr.rel (0) target = $region73
    $region72: #{tpu_custom_call.1} parent=1 // pred_region
      %4452 = dma.done [#allocation9], 16
    $region73: #{tpu_custom_call.1} parent=1 // pred_fallthru
      _
    // Predicated region
    $region74: #{tpu_custom_call.1} parent=1 // pred_check
      _
    $region75: #{tpu_custom_call.1} parent=1 // pred_check_branch
      %4454 = sbr.rel (0) target = $region77
    $region76: #{tpu_custom_call.1} parent=1 // pred_region
      %4455 = dma.done [#allocation9], 16
    $region77: #{tpu_custom_call.1} parent=1 // pred_fallthru
      _
    %4456 = sfence
    %4457 = vsyncpa [#allocation3], 1
    %4458 = vsyncpa [#allocation6], 1
    %4459 = vsyncpa [#allocation4], 1
    %4460 = vsyncpa [#allocation9], 1

</llo_original>
